<compile_context>
chip_gen: v5e
topology: v5e:2x2
jax: 0.10.0
libtpu: 0.0.40
codegen_flags: <defaults>
</compile_context>

<pallas_src>
import functools

import numpy as np
import jax
import jax.numpy as jnp
from jax import lax
from jax.experimental import pallas as pl
from jax.experimental.pallas import tpu as pltpu

LANE = 128

# ----------------------------------------------------------------------------
# +/-1 flat-row (= +/-1 image-column) shifts.  np.roll semantics: out[r] = v[r-1]
# for _shift_prev, out[r] = v[r+1] for _shift_next; the single wrapped element
# always lands on a masked edge column, so wrap-around never affects the result.
# ----------------------------------------------------------------------------
def _shift_prev(v, use_roll):
    n = v.shape[0]
    if use_roll:
        return pltpu.roll(v, shift=1, axis=0)
    return jnp.concatenate([v[n - 1:n], v[0:n - 1]], axis=0)


def _shift_next(v, use_roll):
    n = v.shape[0]
    if use_roll:
        return pltpu.roll(v, shift=n - 1, axis=0)
    return jnp.concatenate([v[1:n], v[0:1]], axis=0)


_ROLL_OK = None


def _probe_pltpu_roll():
    """One-time check that pltpu.roll lowers here with np.roll semantics."""
    def kernel(x_ref, o_ref):
        o_ref[...] = pltpu.roll(x_ref[...], shift=1, axis=0)

    try:
        x = jnp.arange(16 * 128, dtype=jnp.float32).reshape(16, 128)
        y = pl.pallas_call(
            kernel, out_shape=jax.ShapeDtypeStruct((16, 128), jnp.float32))(x)
        return bool(jnp.allclose(y, jnp.roll(x, 1, axis=0)))
    except Exception:
        return False


def _pltpu_roll_ok():
    global _ROLL_OK
    if _ROLL_OK is None:
        _ROLL_OK = _probe_pltpu_roll()
    return _ROLL_OK


# ----------------------------------------------------------------------------
# Fused double_conv kernel (one batch element per grid step).
# ----------------------------------------------------------------------------
def _double_conv_kernel(x_ref, w1_ref, sb1_ref, w2_ref, sb2_ref, o_ref, *, use_roll):
    # x_ref : (1, H, W, Cp)   channel-padded input (compute dtype)
    # w1_ref: (9*Cp, Cm)      im2col-reshaped conv1 weights
    # sb1_ref: (2, Cm)        row0 = scale, row1 = shift (conv bias + BN folded), f32
    # w2_ref: (9*Cm, Co)      im2col-reshaped conv2 weights
    # sb2_ref: (2, Co)
    # o_ref : (1, H, W, Co)   f32 output (lane-dense: Co is a multiple of 128)
    _, H, W, Cp = x_ref.shape
    Co = sb2_ref.shape[1]
    HW = H * W
    HALO = W                      # one zero image-row above and below
    NPAD = HW + 2 * HALO

    # Column-within-row index of every flattened output position; used to mask the
    # wrap-around element of the +/-1 column shifts (SAME-pad left/right edges).
    col = lax.broadcasted_iota(jnp.int32, (HW, 1), 0) % W
    not_left_edge = col != 0              # j-1 tap invalid at column 0
    not_right_edge = col != (W - 1)       # j+1 tap invalid at column W-1

    def im2col(img_flat):
        """(HW, C) row-major image (f32) -> (HW, 9*C) matrix for a 3x3 SAME conv."""
        c = img_flat.shape[-1]
        zrow = jnp.zeros((HALO, c), img_flat.dtype)
        vpad = jnp.concatenate([zrow, img_flat, zrow], axis=0)      # (NPAD, C), aligned
        prev = _shift_prev(vpad, use_roll)     # prev[r] == vpad[r-1]  (column j-1)
        nxt = _shift_next(vpad, use_roll)      # nxt[r]  == vpad[r+1]  (column j+1)
        taps = []
        for dy in range(3):                    # kernel row kh == dy
            s = dy * HALO                      # aligned slice start (multiple of 8)
            taps.append(jnp.where(not_left_edge, prev[s:s + HW, :], 0.0))   # kw = 0
            taps.append(vpad[s:s + HW, :])                                   # kw = 1
            taps.append(jnp.where(not_right_edge, nxt[s:s + HW, :], 0.0))   # kw = 2
        return jnp.concatenate(taps, axis=-1)  # (HW, 9*C), lane-aligned 128-wide blocks

    # ---- conv1: one MXU matmul, f32 accumulation, fused bias + BN + ReLU ----
    x = x_ref[...].reshape(HW, Cp).astype(jnp.float32)
    p1 = im2col(x).astype(w1_ref.dtype)
    acc1 = jnp.dot(p1, w1_ref[...], preferred_element_type=jnp.float32)
    h = jnp.maximum(acc1 * sb1_ref[0:1, :] + sb1_ref[1:2, :], 0.0)   # (HW, Cm) f32

    # ---- conv2 ----
    p2 = im2col(h).astype(w2_ref.dtype)
    acc2 = jnp.dot(p2, w2_ref[...], preferred_element_type=jnp.float32)
    out = jnp.maximum(acc2 * sb2_ref[0:1, :] + sb2_ref[1:2, :], 0.0)

    o_ref[...] = out.reshape(1, H, W, Co).astype(o_ref.dtype)


def pallas_double_conv(x_nhwc_p, w1m, sb1, w2m, sb2, use_roll):
    N, H, W, Cin_p = x_nhwc_p.shape
    Cm = w1m.shape[1]
    Co = w2m.shape[1]
    kernel = functools.partial(_double_conv_kernel, use_roll=use_roll)
    return pl.pallas_call(
        kernel,
        out_shape=jax.ShapeDtypeStruct((N, H, W, Co), jnp.float32),
        grid_spec=pltpu.PrefetchScalarGridSpec(
            num_scalar_prefetch=0,
            grid=(N,),                       # batch-parallel (feeds both v7x TCs for even N)
            in_specs=[
                pl.BlockSpec((1, H, W, Cin_p), lambda n: (n, 0, 0, 0)),
                # NOTE: weights / scale-shift have constant index_maps; they could be
                # single-buffered (pipeline_mode) when VMEM is tight on deeper blocks.
                pl.BlockSpec((9 * Cin_p, Cm), lambda n: (0, 0)),
                pl.BlockSpec((2, Cm), lambda n: (0, 0)),
                pl.BlockSpec((9 * Cm, Co), lambda n: (0, 0)),
                pl.BlockSpec((2, Co), lambda n: (0, 0)),
            ],
            out_specs=pl.BlockSpec((1, H, W, Co), lambda n: (n, 0, 0, 0)),
        ),
        compiler_params=pltpu.CompilerParams(
            dimension_semantics=("parallel",),
            vmem_limit_bytes=32 * 1024 * 1024,
        ),
    )(x_nhwc_p, w1m, sb1, w2m, sb2)


# ----------------------------------------------------------------------------
# Parameter preparation (wrapper side).
# ----------------------------------------------------------------------------
def _round_up(n, m):
    return ((n + m - 1) // m) * m


def _pad_last(a, target):
    pad = target - a.shape[-1]
    if pad == 0:
        return a
    width = [(0, 0)] * (a.ndim - 1) + [(0, pad)]
    return jnp.pad(a, width)


def _fold_bn(conv_bias, gamma, beta, mean, var, eps=1e-5):
    """Fold conv bias + eval-mode BatchNorm into per-channel (scale, shift)."""
    s = gamma / jnp.sqrt(var + eps)
    b = (conv_bias - mean) * s + beta
    return jnp.stack([s, b], axis=0).astype(jnp.float32)            # (2, C)


def _prep_weight(w_oihw, cin_p, cout_p, dtype):
    """OIHW conv weight -> channel-padded (9*cin_p, cout_p) im2col matrix."""
    w = jnp.transpose(w_oihw, (2, 3, 1, 0))                         # (3, 3, Cin, Cout)
    cin, cout = w.shape[2], w.shape[3]
    w = jnp.pad(w, ((0, 0), (0, 0), (0, cin_p - cin), (0, cout_p - cout)))
    return w.reshape(9 * cin_p, cout_p).astype(dtype)


def inputconv_forward(x_nchw, params, compute_dtype=jnp.float32):
    """PyTorch-equivalent forward of inputconv / double_conv: NCHW in, NCHW out."""
    (w1, b1, g1, be1, m1, v1, w2, b2, g2, be2, m2, v2) = params
    N, Cin, H, W = x_nchw.shape
    Cmid, Cout = w1.shape[0], w2.shape[0]
    if W % 8 != 0:
        raise ValueError("W must be a multiple of 8 (pad the image width if needed)")

    cin_p = _round_up(max(Cin, LANE), LANE)
    cm_p = _round_up(max(Cmid, LANE), LANE)
    co_p = _round_up(max(Cout, LANE), LANE)

    w1m = _prep_weight(w1, cin_p, cm_p, compute_dtype)
    w2m = _prep_weight(w2, cm_p, co_p, compute_dtype)
    sb1 = _pad_last(_fold_bn(b1, g1, be1, m1, v1), cm_p)   # padded scale/shift are 0
    sb2 = _pad_last(_fold_bn(b2, g2, be2, m2, v2), co_p)

    x_nhwc = jnp.transpose(x_nchw, (0, 2, 3, 1))
    x_nhwc = _pad_last(x_nhwc, cin_p).astype(compute_dtype)

    y = pallas_double_conv(x_nhwc, w1m, sb1, w2m, sb2, use_roll=_pltpu_roll_ok())
    y = y[..., :Cout]                                       # drop lane padding
    return jnp.transpose(y, (0, 3, 1, 2))


# ----------------------------------------------------------------------------
# Pure-JAX reference (eval-mode BN folded, same as kernel semantics).
# ----------------------------------------------------------------------------
def _reference_forward(x_nchw, params):
    (w1, b1, g1, be1, m1, v1, w2, b2, g2, be2, m2, v2) = params
    w1h = jnp.transpose(w1, (2, 3, 1, 0))
    w2h = jnp.transpose(w2, (2, 3, 1, 0))
    sb1 = _fold_bn(b1, g1, be1, m1, v1)
    sb2 = _fold_bn(b2, g2, be2, m2, v2)
    x = jnp.transpose(x_nchw, (0, 2, 3, 1))
    dn = ("NHWC", "HWIO", "NHWC")
    y = lax.conv_general_dilated(x, w1h, (1, 1), "SAME", dimension_numbers=dn)
    y = jnp.maximum(y * sb1[0] + sb1[1], 0.0)
    y = lax.conv_general_dilated(y, w2h, (1, 1), "SAME", dimension_numbers=dn)
    y = jnp.maximum(y * sb2[0] + sb2[1], 0.0)
    return jnp.transpose(y, (0, 3, 1, 2))


if __name__ == "__main__":
    key = jax.random.PRNGKey(0)
    N, in_ch, out_ch, H, W = 2, 4, 8, 16, 16
    ks = jax.random.split(key, 13)

    x = jax.random.normal(ks[0], (N, in_ch, H, W), jnp.float32)

    # deterministic synthetic parameters (PyTorch __init__ shapes)
    w1 = 0.1 * jax.random.normal(ks[1], (out_ch, in_ch, 3, 3), jnp.float32)
    b1 = 0.1 * jax.random.normal(ks[2], (out_ch,), jnp.float32)
    g1 = 1.0 + 0.1 * jax.random.normal(ks[3], (out_ch,), jnp.float32)
    be1 = 0.1 * jax.random.normal(ks[4], (out_ch,), jnp.float32)
    m1 = 0.05 * jax.random.normal(ks[5], (out_ch,), jnp.float32)
    v1 = 1.0 + 0.1 * jax.random.uniform(ks[6], (out_ch,), jnp.float32)

    w2 = 0.1 * jax.random.normal(ks[7], (out_ch, out_ch, 3, 3), jnp.float32)
    b2 = 0.1 * jax.random.normal(ks[8], (out_ch,), jnp.float32)
    g2 = 1.0 + 0.1 * jax.random.normal(ks[9], (out_ch,), jnp.float32)
    be2 = 0.1 * jax.random.normal(ks[10], (out_ch,), jnp.float32)
    m2 = 0.05 * jax.random.normal(ks[11], (out_ch,), jnp.float32)
    v2 = 1.0 + 0.1 * jax.random.uniform(ks[12], (out_ch,), jnp.float32)

    params = (w1, b1, g1, be1, m1, v1, w2, b2, g2, be2, m2, v2)

    y_ref = jax.block_until_ready(_reference_forward(x, params))

    # f32 path (tight tolerance)
    y = jax.block_until_ready(inputconv_forward(x, params, compute_dtype=jnp.float32))
    np.testing.assert_allclose(np.asarray(y), np.asarray(y_ref), rtol=1e-4, atol=1e-4)
    assert y.shape == (N, out_ch, H, W)

    # bf16 inputs/weights on the MXU, f32 accumulation + f32 elementwise (v6e/v7x path)
    y_bf = jax.block_until_ready(inputconv_forward(x, params, compute_dtype=jnp.bfloat16))
    np.testing.assert_allclose(np.asarray(y_bf), np.asarray(y_ref), rtol=5e-2, atol=5e-2)

    print("KERNEL_OK")
</pallas_src>

<mosaic_0001>
module attributes {stable_mosaic.version = 11 : i64} {
  func.func @kernel(%arg0: memref<16x128xf32, #tpu.memory_space<vmem>>, %arg1: memref<16x128xf32, #tpu.memory_space<vmem>>) attributes {dimension_semantics = [], scalar_prefetch = 0 : i64, scratch_operands = 0 : i64, tpu.core_type = #tpu.core_type<tc>} {
    %c0 = arith.constant 0 : index
    %c0_0 = arith.constant 0 : index
    %0 = vector.load %arg0[%c0, %c0_0] : memref<16x128xf32, #tpu.memory_space<vmem>>, vector<16x128xf32>
    %c1_i32 = arith.constant 1 : i32
    %1 = tpu.dynamic_rotate %0 by %c1_i32 dim 0 : vector<16x128xf32>, i32 -> vector<16x128xf32>
    %c0_1 = arith.constant 0 : index
    %c0_2 = arith.constant 0 : index
    %2 = vector.load %arg1[%c0_1, %c0_2] : memref<16x128xf32, #tpu.memory_space<vmem>>, vector<16x128xf32>
    tpu.vector_store %arg1[%c0_1, %c0_2], %1 {strides = array<i32>} : memref<16x128xf32, #tpu.memory_space<vmem>>, vector<16x128xf32>,
    return
  }
}

module attributes {stable_mosaic.version = 11 : i64} {
  func.func @_double_conv_kernel(%arg0: i32, %arg1: memref<1x16x16x128xf32, #tpu.memory_space<vmem>>, %arg2: memref<1152x128xf32, #tpu.memory_space<vmem>>, %arg3: memref<2x128xf32, #tpu.memory_space<vmem>>, %arg4: memref<1152x128xf32, #tpu.memory_space<vmem>>, %arg5: memref<2x128xf32, #tpu.memory_space<vmem>>, %arg6: memref<1x16x16x128xf32, #tpu.memory_space<vmem>>) attributes {dimension_semantics = [#tpu.dimension_semantics<parallel>], iteration_bounds = array<i64: 2>, scalar_prefetch = 0 : i64, scratch_operands = 0 : i64, tpu.core_type = #tpu.core_type<tc>, window_params = [{transform_indices = @transform_0, window_bounds = array<i64: 1, 16, 16, 128>}, {pipeline_mode = #tpu.pipeline_mode<synchronous>, transform_indices = @transform_1, window_bounds = array<i64: 1152, 128>}, {pipeline_mode = #tpu.pipeline_mode<synchronous>, transform_indices = @transform_2, window_bounds = array<i64: 2, 128>}, {pipeline_mode = #tpu.pipeline_mode<synchronous>, transform_indices = @transform_3, window_bounds = array<i64: 1152, 128>}, {pipeline_mode = #tpu.pipeline_mode<synchronous>, transform_indices = @transform_4, window_bounds = array<i64: 2, 128>}, {transform_indices = @transform_5, window_bounds = array<i64: 1, 16, 16, 128>}]} {
    %0 = tpu.iota {dimensions = array<i32: 0>} : vector<256x1xi32>
    %c16_i32 = arith.constant 16 : i32
    %c0_i32 = arith.constant 0 : i32
    %1 = arith.cmpi eq, %c16_i32, %c0_i32 : i32
    %c1_i32 = arith.constant 1 : i32
    %2 = arith.select %1, %c1_i32, %c16_i32 : i32
    %3 = vector.broadcast %2 : i32 to vector<256x1xi32>
    %4 = arith.remsi %0, %3 : vector<256x1xi32>
    %c0_i32_0 = arith.constant 0 : i32
    %5 = vector.broadcast %c0_i32_0 : i32 to vector<256x1xi32>
    %6 = arith.cmpi ne, %4, %5 : vector<256x1xi32>
    %c0_i32_1 = arith.constant 0 : i32
    %7 = vector.broadcast %c0_i32_1 : i32 to vector<256x1xi32>
    %8 = arith.cmpi slt, %4, %7 : vector<256x1xi32>
    %c0_i32_2 = arith.constant 0 : i32
    %9 = arith.cmpi slt, %2, %c0_i32_2 : i32
    %10 = vector.broadcast %9 : i1 to vector<256x1xi1>
    %11 = vector.broadcast %10 : vector<256x1xi1> to vector<256x1xi1>
    %12 = arith.xori %8, %11 : vector<256x1xi1>
    %13 = arith.andi %12, %6 : vector<256x1xi1>
    %14 = vector.broadcast %2 : i32 to vector<256x1xi32>
    %15 = arith.addi %4, %14 : vector<256x1xi32>
    %16 = arith.select %13, %15, %4 : vector<256x1xi1>, vector<256x1xi32>
    %c0_i32_3 = arith.constant 0 : i32
    %17 = vector.broadcast %c0_i32_3 : i32 to vector<256x1xi32>
    %18 = arith.cmpi ne, %16, %17 : vector<256x1xi32>
    %c15_i32 = arith.constant 15 : i32
    %19 = vector.broadcast %c15_i32 : i32 to vector<256x1xi32>
    %20 = arith.cmpi ne, %16, %19 : vector<256x1xi32>
    %c0 = arith.constant 0 : index
    %c0_4 = arith.constant 0 : index
    %c0_5 = arith.constant 0 : index
    %c0_6 = arith.constant 0 : index
    %21 = vector.load %arg1[%c0, %c0_4, %c0_5, %c0_6] : memref<1x16x16x128xf32, #tpu.memory_space<vmem>>, vector<1x16x16x128xf32>
    %22 = vector.shape_cast %21 : vector<1x16x16x128xf32> to vector<256x128xf32>
    %cst = arith.constant 0.000000e+00 : f32
    %23 = vector.broadcast %cst : f32 to vector<16x128xf32>
    %24 = tpu.concatenate %23, %22, %23 in 0 : vector<16x128xf32>, vector<256x128xf32>, vector<16x128xf32> -> vector<288x128xf32>
    %25 = vector.extract_strided_slice %24 {offsets = [287, 0], sizes = [1, 128], strides = [1, 1]} : vector<288x128xf32> to vector<1x128xf32>
    %26 = vector.extract_strided_slice %24 {offsets = [0, 0], sizes = [287, 128], strides = [1, 1]} : vector<288x128xf32> to vector<287x128xf32>
    %27 = tpu.concatenate %25, %26 in 0 : vector<1x128xf32>, vector<287x128xf32> -> vector<288x128xf32>
    %28 = vector.extract_strided_slice %24 {offsets = [1, 0], sizes = [287, 128], strides = [1, 1]} : vector<288x128xf32> to vector<287x128xf32>
    %29 = vector.extract_strided_slice %24 {offsets = [0, 0], sizes = [1, 128], strides = [1, 1]} : vector<288x128xf32> to vector<1x128xf32>
    %30 = tpu.concatenate %28, %29 in 0 : vector<287x128xf32>, vector<1x128xf32> -> vector<288x128xf32>
    %31 = vector.extract_strided_slice %27 {offsets = [0, 0], sizes = [256, 128], strides = [1, 1]} : vector<288x128xf32> to vector<256x128xf32>
    %cst_7 = arith.constant 0.000000e+00 : f32
    %32 = vector.shape_cast %18 : vector<256x1xi1> to vector<256x1xi1>
    %33 = vector.broadcast %32 : vector<256x1xi1> to vector<256x128xi1>
    %34 = vector.broadcast %cst_7 : f32 to vector<256x128xf32>
    %35 = arith.select %33, %31, %34 : vector<256x128xi1>, vector<256x128xf32>
    %36 = vector.extract_strided_slice %24 {offsets = [0, 0], sizes = [256, 128], strides = [1, 1]} : vector<288x128xf32> to vector<256x128xf32>
    %37 = vector.extract_strided_slice %30 {offsets = [0, 0], sizes = [256, 128], strides = [1, 1]} : vector<288x128xf32> to vector<256x128xf32>
    %cst_8 = arith.constant 0.000000e+00 : f32
    %38 = vector.shape_cast %20 : vector<256x1xi1> to vector<256x1xi1>
    %39 = vector.broadcast %38 : vector<256x1xi1> to vector<256x128xi1>
    %40 = vector.broadcast %cst_8 : f32 to vector<256x128xf32>
    %41 = arith.select %39, %37, %40 : vector<256x128xi1>, vector<256x128xf32>
    %42 = vector.extract_strided_slice %27 {offsets = [16, 0], sizes = [256, 128], strides = [1, 1]} : vector<288x128xf32> to vector<256x128xf32>
    %cst_9 = arith.constant 0.000000e+00 : f32
    %43 = vector.shape_cast %18 : vector<256x1xi1> to vector<256x1xi1>
    %44 = vector.broadcast %43 : vector<256x1xi1> to vector<256x128xi1>
    %45 = vector.broadcast %cst_9 : f32 to vector<256x128xf32>
    %46 = arith.select %44, %42, %45 : vector<256x128xi1>, vector<256x128xf32>
    %47 = vector.extract_strided_slice %24 {offsets = [16, 0], sizes = [256, 128], strides = [1, 1]} : vector<288x128xf32> to vector<256x128xf32>
    %48 = vector.extract_strided_slice %30 {offsets = [16, 0], sizes = [256, 128], strides = [1, 1]} : vector<288x128xf32> to vector<256x128xf32>
    %cst_10 = arith.constant 0.000000e+00 : f32
    %49 = vector.shape_cast %20 : vector<256x1xi1> to vector<256x1xi1>
    %50 = vector.broadcast %49 : vector<256x1xi1> to vector<256x128xi1>
    %51 = vector.broadcast %cst_10 : f32 to vector<256x128xf32>
    %52 = arith.select %50, %48, %51 : vector<256x128xi1>, vector<256x128xf32>
    %53 = vector.extract_strided_slice %27 {offsets = [32, 0], sizes = [256, 128], strides = [1, 1]} : vector<288x128xf32> to vector<256x128xf32>
    %cst_11 = arith.constant 0.000000e+00 : f32
    %54 = vector.shape_cast %18 : vector<256x1xi1> to vector<256x1xi1>
    %55 = vector.broadcast %54 : vector<256x1xi1> to vector<256x128xi1>
    %56 = vector.broadcast %cst_11 : f32 to vector<256x128xf32>
    %57 = arith.select %55, %53, %56 : vector<256x128xi1>, vector<256x128xf32>
    %58 = vector.extract_strided_slice %24 {offsets = [32, 0], sizes = [256, 128], strides = [1, 1]} : vector<288x128xf32> to vector<256x128xf32>
    %59 = vector.extract_strided_slice %30 {offsets = [32, 0], sizes = [256, 128], strides = [1, 1]} : vector<288x128xf32> to vector<256x128xf32>
    %cst_12 = arith.constant 0.000000e+00 : f32
    %60 = vector.shape_cast %20 : vector<256x1xi1> to vector<256x1xi1>
    %61 = vector.broadcast %60 : vector<256x1xi1> to vector<256x128xi1>
    %62 = vector.broadcast %cst_12 : f32 to vector<256x128xf32>
    %63 = arith.select %61, %59, %62 : vector<256x128xi1>, vector<256x128xf32>
    %64 = tpu.concatenate %35, %36, %41, %46, %47, %52, %57, %58, %63 in 1 : vector<256x128xf32>, vector<256x128xf32>, vector<256x128xf32>, vector<256x128xf32>, vector<256x128xf32>, vector<256x128xf32>, vector<256x128xf32>, vector<256x128xf32>, vector<256x128xf32> -> vector<256x1152xf32>
    %c0_13 = arith.constant 0 : index
    %c0_14 = arith.constant 0 : index
    %65 = vector.load %arg2[%c0_13, %c0_14] : memref<1152x128xf32, #tpu.memory_space<vmem>>, vector<1152x128xf32>
    %cst_15 = arith.constant dense<0.000000e+00> : vector<256x128xf32>
    %66 = tpu.matmul %64, %65, %cst_15 {dimension_numbers = #tpu.dot_dimension_numbers<[1], [0], [0], [1], [0, 0, 1, 1], [], []>} : vector<256x1152xf32>, vector<1152x128xf32>, vector<256x128xf32> -> vector<256x128xf32>
    %c0_16 = arith.constant 0 : index
    %c0_17 = arith.constant 0 : index
    %67 = vector.load %arg3[%c0_16, %c0_17] : memref<2x128xf32, #tpu.memory_space<vmem>>, vector<1x128xf32>
    %68 = vector.broadcast %67 : vector<1x128xf32> to vector<256x128xf32>
    %69 = arith.mulf %66, %68 : vector<256x128xf32>
    %c1 = arith.constant 1 : index
    %c0_18 = arith.constant 0 : index
    %70 = vector.load %arg3[%c1, %c0_18] : memref<2x128xf32, #tpu.memory_space<vmem>>, vector<1x128xf32>
    %71 = vector.broadcast %70 : vector<1x128xf32> to vector<256x128xf32>
    %72 = arith.addf %69, %71 : vector<256x128xf32>
    %cst_19 = arith.constant 0.000000e+00 : f32
    %73 = vector.broadcast %cst_19 : f32 to vector<256x128xf32>
    %74 = arith.maximumf %72, %73 : vector<256x128xf32>
    %cst_20 = arith.constant 0.000000e+00 : f32
    %75 = vector.broadcast %cst_20 : f32 to vector<16x128xf32>
    %76 = tpu.concatenate %75, %74, %75 in 0 : vector<16x128xf32>, vector<256x128xf32>, vector<16x128xf32> -> vector<288x128xf32>
    %77 = vector.extract_strided_slice %76 {offsets = [287, 0], sizes = [1, 128], strides = [1, 1]} : vector<288x128xf32> to vector<1x128xf32>
    %78 = vector.extract_strided_slice %76 {offsets = [0, 0], sizes = [287, 128], strides = [1, 1]} : vector<288x128xf32> to vector<287x128xf32>
    %79 = tpu.concatenate %77, %78 in 0 : vector<1x128xf32>, vector<287x128xf32> -> vector<288x128xf32>
    %80 = vector.extract_strided_slice %76 {offsets = [1, 0], sizes = [287, 128], strides = [1, 1]} : vector<288x128xf32> to vector<287x128xf32>
    %81 = vector.extract_strided_slice %76 {offsets = [0, 0], sizes = [1, 128], strides = [1, 1]} : vector<288x128xf32> to vector<1x128xf32>
    %82 = tpu.concatenate %80, %81 in 0 : vector<287x128xf32>, vector<1x128xf32> -> vector<288x128xf32>
    %83 = vector.extract_strided_slice %79 {offsets = [0, 0], sizes = [256, 128], strides = [1, 1]} : vector<288x128xf32> to vector<256x128xf32>
    %cst_21 = arith.constant 0.000000e+00 : f32
    %84 = vector.shape_cast %18 : vector<256x1xi1> to vector<256x1xi1>
    %85 = vector.broadcast %84 : vector<256x1xi1> to vector<256x128xi1>
    %86 = vector.broadcast %cst_21 : f32 to vector<256x128xf32>
    %87 = arith.select %85, %83, %86 : vector<256x128xi1>, vector<256x128xf32>
    %88 = vector.extract_strided_slice %76 {offsets = [0, 0], sizes = [256, 128], strides = [1, 1]} : vector<288x128xf32> to vector<256x128xf32>
    %89 = vector.extract_strided_slice %82 {offsets = [0, 0], sizes = [256, 128], strides = [1, 1]} : vector<288x128xf32> to vector<256x128xf32>
    %cst_22 = arith.constant 0.000000e+00 : f32
    %90 = vector.shape_cast %20 : vector<256x1xi1> to vector<256x1xi1>
    %91 = vector.broadcast %90 : vector<256x1xi1> to vector<256x128xi1>
    %92 = vector.broadcast %cst_22 : f32 to vector<256x128xf32>
    %93 = arith.select %91, %89, %92 : vector<256x128xi1>, vector<256x128xf32>
    %94 = vector.extract_strided_slice %79 {offsets = [16, 0], sizes = [256, 128], strides = [1, 1]} : vector<288x128xf32> to vector<256x128xf32>
    %cst_23 = arith.constant 0.000000e+00 : f32
    %95 = vector.shape_cast %18 : vector<256x1xi1> to vector<256x1xi1>
    %96 = vector.broadcast %95 : vector<256x1xi1> to vector<256x128xi1>
    %97 = vector.broadcast %cst_23 : f32 to vector<256x128xf32>
    %98 = arith.select %96, %94, %97 : vector<256x128xi1>, vector<256x128xf32>
    %99 = vector.extract_strided_slice %76 {offsets = [16, 0], sizes = [256, 128], strides = [1, 1]} : vector<288x128xf32> to vector<256x128xf32>
    %100 = vector.extract_strided_slice %82 {offsets = [16, 0], sizes = [256, 128], strides = [1, 1]} : vector<288x128xf32> to vector<256x128xf32>
    %cst_24 = arith.constant 0.000000e+00 : f32
    %101 = vector.shape_cast %20 : vector<256x1xi1> to vector<256x1xi1>
    %102 = vector.broadcast %101 : vector<256x1xi1> to vector<256x128xi1>
    %103 = vector.broadcast %cst_24 : f32 to vector<256x128xf32>
    %104 = arith.select %102, %100, %103 : vector<256x128xi1>, vector<256x128xf32>
    %105 = vector.extract_strided_slice %79 {offsets = [32, 0], sizes = [256, 128], strides = [1, 1]} : vector<288x128xf32> to vector<256x128xf32>
    %cst_25 = arith.constant 0.000000e+00 : f32
    %106 = vector.shape_cast %18 : vector<256x1xi1> to vector<256x1xi1>
    %107 = vector.broadcast %106 : vector<256x1xi1> to vector<256x128xi1>
    %108 = vector.broadcast %cst_25 : f32 to vector<256x128xf32>
    %109 = arith.select %107, %105, %108 : vector<256x128xi1>, vector<256x128xf32>
    %110 = vector.extract_strided_slice %76 {offsets = [32, 0], sizes = [256, 128], strides = [1, 1]} : vector<288x128xf32> to vector<256x128xf32>
    %111 = vector.extract_strided_slice %82 {offsets = [32, 0], sizes = [256, 128], strides = [1, 1]} : vector<288x128xf32> to vector<256x128xf32>
    %cst_26 = arith.constant 0.000000e+00 : f32
    %112 = vector.shape_cast %20 : vector<256x1xi1> to vector<256x1xi1>
    %113 = vector.broadcast %112 : vector<256x1xi1> to vector<256x128xi1>
    %114 = vector.broadcast %cst_26 : f32 to vector<256x128xf32>
    %115 = arith.select %113, %111, %114 : vector<256x128xi1>, vector<256x128xf32>
    %116 = tpu.concatenate %87, %88, %93, %98, %99, %104, %109, %110, %115 in 1 : vector<256x128xf32>, vector<256x128xf32>, vector<256x128xf32>, vector<256x128xf32>, vector<256x128xf32>, vector<256x128xf32>, vector<256x128xf32>, vector<256x128xf32>, vector<256x128xf32> -> vector<256x1152xf32>
    %c0_27 = arith.constant 0 : index
    %c0_28 = arith.constant 0 : index
    %117 = vector.load %arg4[%c0_27, %c0_28] : memref<1152x128xf32, #tpu.memory_space<vmem>>, vector<1152x128xf32>
    %cst_29 = arith.constant dense<0.000000e+00> : vector<256x128xf32>
    %118 = tpu.matmul %116, %117, %cst_29 {dimension_numbers = #tpu.dot_dimension_numbers<[1], [0], [0], [1], [0, 0, 1, 1], [], []>} : vector<256x1152xf32>, vector<1152x128xf32>, vector<256x128xf32> -> vector<256x128xf32>
    %c0_30 = arith.constant 0 : index
    %c0_31 = arith.constant 0 : index
    %119 = vector.load %arg5[%c0_30, %c0_31] : memref<2x128xf32, #tpu.memory_space<vmem>>, vector<1x128xf32>
    %120 = vector.broadcast %119 : vector<1x128xf32> to vector<256x128xf32>
    %121 = arith.mulf %118, %120 : vector<256x128xf32>
    %c1_32 = arith.constant 1 : index
    %c0_33 = arith.constant 0 : index
    %122 = vector.load %arg5[%c1_32, %c0_33] : memref<2x128xf32, #tpu.memory_space<vmem>>, vector<1x128xf32>
    %123 = vector.broadcast %122 : vector<1x128xf32> to vector<256x128xf32>
    %124 = arith.addf %121, %123 : vector<256x128xf32>
    %cst_34 = arith.constant 0.000000e+00 : f32
    %125 = vector.broadcast %cst_34 : f32 to vector<256x128xf32>
    %126 = arith.maximumf %124, %125 : vector<256x128xf32>
    %127 = vector.shape_cast %126 : vector<256x128xf32> to vector<1x16x16x128xf32>
    %c0_35 = arith.constant 0 : index
    %c0_36 = arith.constant 0 : index
    %c0_37 = arith.constant 0 : index
    %c0_38 = arith.constant 0 : index
    %128 = vector.load %arg6[%c0_35, %c0_36, %c0_37, %c0_38] : memref<1x16x16x128xf32, #tpu.memory_space<vmem>>, vector<1x16x16x128xf32>
    tpu.vector_store %arg6[%c0_35, %c0_36, %c0_37, %c0_38], %127 {strides = array<i32>} : memref<1x16x16x128xf32, #tpu.memory_space<vmem>>, vector<1x16x16x128xf32>,
    return
  }
  func.func @transform_0(%arg0: i32) -> (i32, i32, i32, i32) {
    %c0_i32 = arith.constant 0 : i32
    %c0_i32_0 = arith.constant 0 : i32
    %c0_i32_1 = arith.constant 0 : i32
    %c0_i32_2 = arith.constant 0 : i32
    return %arg0, %c0_i32, %c0_i32_0, %c0_i32_1 : i32, i32, i32, i32
  }
  func.func @transform_1(%arg0: i32) -> (i32, i32) {
    %c0_i32 = arith.constant 0 : i32
    %c0_i32_0 = arith.constant 0 : i32
    %c0_i32_1 = arith.constant 0 : i32
    return %c0_i32, %c0_i32_0 : i32, i32
  }
  func.func @transform_2(%arg0: i32) -> (i32, i32) {
    %c0_i32 = arith.constant 0 : i32
    %c0_i32_0 = arith.constant 0 : i32
    %c0_i32_1 = arith.constant 0 : i32
    return %c0_i32, %c0_i32_0 : i32, i32
  }
  func.func @transform_3(%arg0: i32) -> (i32, i32) {
    %c0_i32 = arith.constant 0 : i32
    %c0_i32_0 = arith.constant 0 : i32
    %c0_i32_1 = arith.constant 0 : i32
    return %c0_i32, %c0_i32_0 : i32, i32
  }
  func.func @transform_4(%arg0: i32) -> (i32, i32) {
    %c0_i32 = arith.constant 0 : i32
    %c0_i32_0 = arith.constant 0 : i32
    %c0_i32_1 = arith.constant 0 : i32
    return %c0_i32, %c0_i32_0 : i32, i32
  }
  func.func @transform_5(%arg0: i32) -> (i32, i32, i32, i32) {
    %c0_i32 = arith.constant 0 : i32
    %c0_i32_0 = arith.constant 0 : i32
    %c0_i32_1 = arith.constant 0 : i32
    %c0_i32_2 = arith.constant 0 : i32
    return %arg0, %c0_i32, %c0_i32_0, %c0_i32_1 : i32, i32, i32, i32
  }
}

</mosaic_0001>

<llo_original>
// kernel: tpu_custom_call.1
$region0: #{tpu_custom_call.1}
  #allocation0 [shape = 'u32[]', space=smem, size = 0x4, offset = 0x4, fixed_abs, tag = 'smem constant byte address 0x4 - core index']
  #allocation1 [shape = 'u32[72,128]{1,0:T(1,128)}', space=vmem, size = 0x9000, scoped, tag = 'internal scratch']
  %s0 = inlined_call_operand.hbm [shape: f32[16,128], index: 0, kind: input, shape index: {}]
  %s1 = inlined_call_operand.hbm [shape: f32[16,128], index: 1, kind: output, shape index: {}]
  %s2 = sld [smem:[#allocation0]]
  $region18: #{tpu_custom_call.1} parent=0
    _
  %s4 = ssub.s32 1, %s2
  %s5 = scalar_select 0, %s4, %s2
  $region1: #{tpu_custom_call.1} parent=0
    #allocation2 [shape = 'u8[8192]{0}', space=vmem, size = 0x2000, scoped, tag = 'input window, operand 0, single buffered']
    #allocation3 [shape = 's32[1]{0}', space=sflag, size = 0x4, scoped, tag = 'scoped memory for tpu_custom_call.1']
    #allocation4 [shape = 's32[1]{0}', space=sflag, size = 0x4, scoped, tag = 'scoped memory for tpu_custom_call.1']
    #allocation5 [shape = 'u8[8192]{0}', space=vmem, size = 0x2000, scoped, tag = 'output window, operand 0, single buffered']
    %6 = vsyncpa [#allocation3], 0
    %7 = vsyncpa [#allocation4], 0
    // Predicated region
    $region2: #{tpu_custom_call.1} parent=1 // pred_check
      _
    $region3: #{tpu_custom_call.1} parent=1 // pred_check_branch
      %9 = sbr.rel (0) target = $region5
    $region4: #{tpu_custom_call.1} parent=1 // pred_region
      %11 = vsyncadd [#allocation3], 0
      %s12 = sshll.u32 %s0, 4
      %s13 = int_to_ptr.hbm [resolvable:$true] %s12
      %s14 = sshll.u32 [#allocation2], 4
      %s15 = int_to_ptr.vmem [resolvable:$true] %s14
      %20 = dma.hbm_to_vmem [thread:$0]  %s13, 256, %s15, [#allocation3], 128, 128, 8
    $region5: #{tpu_custom_call.1} parent=1 // pred_fallthru
      _
    // Predicated region
    $region6: #{tpu_custom_call.1} parent=1 // pred_check
      _
    $region7: #{tpu_custom_call.1} parent=1 // pred_check_branch
      %22 = sbr.rel (0) target = $region9
    $region8: #{tpu_custom_call.1} parent=1 // pred_region
      %24 = dma.done [#allocation3], 256
    $region9: #{tpu_custom_call.1} parent=1 // pred_fallthru
      _
    %v25 = vld [vmem:[#allocation2] sm:$0xff]
    %v26 = vld [vmem:[#allocation2 + $0x8] sm:$0xff]
    %v27 = vrot.slane %v25, 7
    %v28 = vrot.slane %v26, 7
    %v29 = vlaneseq
    %v30 = vshrl.u32 %v29, 7
    %vm31 = vcmp.lt.s32.totalorder %v30, 1
    %v32 = vsel %vm31, %v27, %v28
    %v33 = vsel %vm31, %v28, %v27
    %34 = vst [vmem:[#allocation5] sm:$0xff] %v33
    %35 = vst [vmem:[#allocation5 + $0x8] sm:$0xff] %v32
    // Predicated region
    $region10: #{tpu_custom_call.1} parent=1 // pred_check
      _
    $region11: #{tpu_custom_call.1} parent=1 // pred_check_branch
      %37 = sbr.rel (0) target = $region13
    $region12: #{tpu_custom_call.1} parent=1 // pred_region
      %39 = vsyncadd [#allocation4], 0
      %s40 = sshll.u32 [#allocation5], 4
      %s41 = int_to_ptr.vmem [resolvable:$true] %s40
      %s42 = sshll.u32 %s1, 4
      %s43 = int_to_ptr.hbm [resolvable:$true] %s42
      %48 = dma.vmem_to_hbm [thread:$0]  %s41, 256, %s43, [#allocation4], 128, 128, 8
    $region13: #{tpu_custom_call.1} parent=1 // pred_fallthru
      _
    // Predicated region
    $region14: #{tpu_custom_call.1} parent=1 // pred_check
      _
    $region15: #{tpu_custom_call.1} parent=1 // pred_check_branch
      %50 = sbr.rel (0) target = $region17
    $region16: #{tpu_custom_call.1} parent=1 // pred_region
      %52 = dma.done [#allocation4], 256
    $region17: #{tpu_custom_call.1} parent=1 // pred_fallthru
      _
    %53 = vsyncpa [#allocation3], 1
    %54 = vsyncpa [#allocation4], 1

// kernel: tpu_custom_call.1
$region0: #{tpu_custom_call.1}
  #allocation0 [shape = 'u32[]', space=smem, size = 0x4, offset = 0x4, fixed_abs, tag = 'smem constant byte address 0x4 - core index']
  #allocation1 [shape = 'u32[72,128]{1,0:T(1,128)}', space=vmem, size = 0x9000, scoped, tag = 'internal scratch']
  %s0 = inlined_call_operand.hbm [shape: f32[2,16,16,128], index: 0, kind: input, shape index: {}]
  %s1 = inlined_call_operand.hbm [shape: f32[1152,128], index: 1, kind: input, shape index: {}]
  %s2 = inlined_call_operand.hbm [shape: f32[2,128], index: 2, kind: input, shape index: {}]
  %s3 = inlined_call_operand.hbm [shape: f32[1152,128], index: 3, kind: input, shape index: {}]
  %s4 = inlined_call_operand.vmem [shape: f32[2,128], index: 4, kind: input, shape index: {}]
  %s5 = inlined_call_operand.hbm [shape: f32[2,16,16,128], index: 5, kind: output, shape index: {}]
  %s6 = sld [smem:[#allocation0]]
  $region69: #{tpu_custom_call.1} parent=0
    _
  %s8 = ssub.s32 1, %s6
  %s9 = scalar_select 0, %s8, %s6
  $region1: #{tpu_custom_call.1} parent=0
    #allocation2 [shape = 'u8[262144]{0}', space=vmem, size = 0x40000, scoped, tag = 'input window, operand 0']
    #allocation3 [shape = 's32[2]{0}', space=sflag, size = 0x8, scoped, tag = 'scoped memory for tpu_custom_call.1']
    #allocation4 [shape = 's32[2]{0}', space=sflag, size = 0x8, scoped, tag = 'scoped memory for tpu_custom_call.1']
    #allocation5 [shape = 'u8[589824]{0}', space=vmem, size = 0x90000, scoped, tag = 'input window, operand 1, single buffered']
    #allocation6 [shape = 's32[1]{0}', space=sflag, size = 0x4, scoped, tag = 'scoped memory for tpu_custom_call.1']
    #allocation7 [shape = 'u8[1024]{0}', space=vmem, size = 0x400, scoped, tag = 'input window, operand 2, single buffered']
    #allocation8 [shape = 'u8[589824]{0}', space=vmem, size = 0x90000, scoped, tag = 'input window, operand 3, single buffered']
    #allocation9 [shape = 's32[1]{0}', space=sflag, size = 0x4, scoped, tag = 'scoped memory for tpu_custom_call.1']
    #allocation10 [shape = 'u8[262144]{0}', space=vmem, size = 0x40000, scoped, tag = 'output window, operand 0']
    %10 = vsyncpa [#allocation3], 0
    %s11 = scalar_lea.sflag [#allocation3], 1
    %12 = vsyncpa %s11, 0
    %13 = vsyncpa [#allocation6], 0
    %14 = vsyncpa [#allocation9], 0
    %15 = vsyncpa [#allocation4], 0
    %s16 = scalar_lea.sflag [#allocation4], 1
    %17 = vsyncpa %s16, 0
    loop: start=0, step=1, limit=4
    $region2: #{tpu_custom_call.1} parent=1 // loop_pre_header
      _
    $region3: #{tpu_custom_call.1} parent=1 // loop_header
      %s19 = sphi 0, %s23
      %p20 = scmp.ge.s32.totalorder %s19, 4
      %s29 = sphi 0, %s31
      %s32 = sphi 0, %s29
      %s33 = sphi 0, %s32
      %s49 = sphi 0, %s33
      %s53 = sphi 0, %s53
      %s55 = sphi 0, %s53
      %s56 = sphi 0, %s55
      %s70 = sphi 0, %s56
      %s74 = sphi 0, %s74
      %s76 = sphi 0, %s74
      %s77 = sphi 0, %s76
      %s91 = sphi 0, %s77
      %s95 = sphi 0, %s95
      %s97 = sphi 0, %s95
      %s98 = sphi 0, %s97
      %s112 = sphi 0, %s98
      %s116 = sphi 0, %s116
      %s118 = sphi 0, %s116
      %s119 = sphi 0, %s118
      %s133 = sphi 0, %s119
      %s139 = sphi 0, %s141
      %s142 = sphi 0, %s139
      %s143 = sphi 0, %s142
      %s159 = sphi 0, %s143
    $region4: #{tpu_custom_call.1} parent=1 // loop_header_branch
      %22 = sbr.rel (%p20) target = $region8
    $region5: #{tpu_custom_call.1} parent=1 // loop_body
      %s24 = ssub.s32 %s19, 1
      %s25 = ssub.s32 %s19, 2
      %s26 = sadd.s32 %s19, 1
      %s27 = ssub.s32 %s19, %s26
      %p28 = scmp.eq.s32.totalorder %s27, 0
      %s30 = sadd.s32 %s29, 1
      %s31 = scalar_select %p28, %s29, %s30
      %p34 = pneg %p28
      %p35 = scmp.eq.s32.totalorder %s19, 1
      %p36 = por %p34, %p35
      %p37 = scmp.ne.s32.totalorder %s29, %s32
      %p38 = scmp.eq.s32.totalorder %s19, 0
      %p39 = por %p37, %p38
      %p40 = scmp.ne.s32.totalorder %s29, %s32
      %p41 = scmp.eq.s32.totalorder %s24, 1
      %p42 = por %p40, %p41
      %p43 = scmp.ne.s32.totalorder %s32, %s33
      %p44 = scmp.eq.s32.totalorder %s24, 0
      %p45 = por %p43, %p44
      %p46 = scmp.ne.s32.totalorder %s32, %s33
      %p47 = scmp.eq.s32.totalorder %s25, 1
      %p48 = por %p46, %p47
      %p50 = scmp.ne.s32.totalorder %s33, %s49
      %p51 = scmp.eq.s32.totalorder %s25, 0
      %p52 = por %p50, %p51
      %s54 = sadd.s32 %s53, 1
      %p57 = scmp.eq.s32.totalorder %s19, 1
      %p58 = scmp.ne.s32.totalorder %s53, %s55
      %p59 = scmp.eq.s32.totalorder %s19, 0
      %p60 = por %p58, %p59
      %p61 = scmp.ne.s32.totalorder %s53, %s55
      %p62 = scmp.eq.s32.totalorder %s24, 1
      %p63 = por %p61, %p62
      %p64 = scmp.ne.s32.totalorder %s55, %s56
      %p65 = scmp.eq.s32.totalorder %s24, 0
      %p66 = por %p64, %p65
      %p67 = scmp.ne.s32.totalorder %s55, %s56
      %p68 = scmp.eq.s32.totalorder %s25, 1
      %p69 = por %p67, %p68
      %p71 = scmp.ne.s32.totalorder %s56, %s70
      %p72 = scmp.eq.s32.totalorder %s25, 0
      %p73 = por %p71, %p72
      %s75 = sadd.s32 %s74, 1
      %p78 = scmp.eq.s32.totalorder %s19, 1
      %p79 = scmp.ne.s32.totalorder %s74, %s76
      %p80 = scmp.eq.s32.totalorder %s19, 0
      %p81 = por %p79, %p80
      %p82 = scmp.ne.s32.totalorder %s74, %s76
      %p83 = scmp.eq.s32.totalorder %s24, 1
      %p84 = por %p82, %p83
      %p85 = scmp.ne.s32.totalorder %s76, %s77
      %p86 = scmp.eq.s32.totalorder %s24, 0
      %p87 = por %p85, %p86
      %p88 = scmp.ne.s32.totalorder %s76, %s77
      %p89 = scmp.eq.s32.totalorder %s25, 1
      %p90 = por %p88, %p89
      %p92 = scmp.ne.s32.totalorder %s77, %s91
      %p93 = scmp.eq.s32.totalorder %s25, 0
      %p94 = por %p92, %p93
      %s96 = sadd.s32 %s95, 1
      %p99 = scmp.eq.s32.totalorder %s19, 1
      %p100 = scmp.ne.s32.totalorder %s95, %s97
      %p101 = scmp.eq.s32.totalorder %s19, 0
      %p102 = por %p100, %p101
      %p103 = scmp.ne.s32.totalorder %s95, %s97
      %p104 = scmp.eq.s32.totalorder %s24, 1
      %p105 = por %p103, %p104
      %p106 = scmp.ne.s32.totalorder %s97, %s98
      %p107 = scmp.eq.s32.totalorder %s24, 0
      %p108 = por %p106, %p107
      %p109 = scmp.ne.s32.totalorder %s97, %s98
      %p110 = scmp.eq.s32.totalorder %s25, 1
      %p111 = por %p109, %p110
      %p113 = scmp.ne.s32.totalorder %s98, %s112
      %p114 = scmp.eq.s32.totalorder %s25, 0
      %p115 = por %p113, %p114
      %s117 = sadd.s32 %s116, 1
      %p120 = scmp.eq.s32.totalorder %s19, 1
      %p121 = scmp.ne.s32.totalorder %s116, %s118
      %p122 = scmp.eq.s32.totalorder %s19, 0
      %p123 = por %p121, %p122
      %p124 = scmp.ne.s32.totalorder %s116, %s118
      %p125 = scmp.eq.s32.totalorder %s24, 1
      %p126 = por %p124, %p125
      %p127 = scmp.ne.s32.totalorder %s118, %s119
      %p128 = scmp.eq.s32.totalorder %s24, 0
      %p129 = por %p127, %p128
      %p130 = scmp.ne.s32.totalorder %s118, %s119
      %p131 = scmp.eq.s32.totalorder %s25, 1
      %p132 = por %p130, %p131
      %p134 = scmp.ne.s32.totalorder %s119, %s133
      %p135 = scmp.eq.s32.totalorder %s25, 0
      %p136 = por %p134, %p135
      %s137 = ssub.s32 %s19, %s26
      %p138 = scmp.eq.s32.totalorder %s137, 0
      %s140 = sadd.s32 %s139, 1
      %s141 = scalar_select %p138, %s139, %s140
      %p144 = pneg %p138
      %p145 = scmp.eq.s32.totalorder %s19, 1
      %p146 = por %p144, %p145
      %p147 = scmp.ne.s32.totalorder %s139, %s142
      %p148 = scmp.eq.s32.totalorder %s19, 0
      %p149 = por %p147, %p148
      %p150 = scmp.ne.s32.totalorder %s139, %s142
      %p151 = scmp.eq.s32.totalorder %s24, 1
      %p152 = por %p150, %p151
      %p153 = scmp.ne.s32.totalorder %s142, %s143
      %p154 = scmp.eq.s32.totalorder %s24, 0
      %p155 = por %p153, %p154
      %p156 = scmp.ne.s32.totalorder %s142, %s143
      %p157 = scmp.eq.s32.totalorder %s25, 1
      %p158 = por %p156, %p157
      %p160 = scmp.ne.s32.totalorder %s143, %s159
      %p161 = scmp.eq.s32.totalorder %s25, 0
      %p162 = por %p160, %p161
      %p163 = scmp.le.s32.totalorder 1, %s19
      %p164 = scmp.lt.s32.totalorder %s19, 3
      %p165 = pnand %p163, %p164
      %p166 = pneg %p165
      // Predicated region
      $region9: #{tpu_custom_call.1} parent=5 // pred_check
        _
      $region10: #{tpu_custom_call.1} parent=5 // pred_check_branch
        %168 = sbr.rel (%p165) target = $region12
      $region11: #{tpu_custom_call.1} parent=5 // pred_region
        %s169 = ssub.s32 %s19, 1
        // Predicated region
        $region13: #{tpu_custom_call.1} parent=11 // pred_check
          %p170 = pneg %p66
        $region14: #{tpu_custom_call.1} parent=11 // pred_check_branch
          %172 = sbr.rel (%p170) target = $region16
        $region15: #{tpu_custom_call.1} parent=11 // pred_region
          %174 = vsyncadd [#allocation6], 0
          %s175 = sshll.u32 %s1, 4
          %s176 = int_to_ptr.hbm [resolvable:$true] %s175
          %s177 = sshll.u32 [#allocation5], 4
          %s178 = int_to_ptr.vmem [resolvable:$true] %s177
          %183 = dma.hbm_to_vmem [thread:$0]  %s176, 18432, %s178, [#allocation6], 128, 128, 8
        $region16: #{tpu_custom_call.1} parent=11 // pred_fallthru
          _
        // Predicated region
        $region17: #{tpu_custom_call.1} parent=11 // pred_check
          %p184 = pneg %p87
        $region18: #{tpu_custom_call.1} parent=11 // pred_check_branch
          %186 = sbr.rel (%p184) target = $region20
        $region19: #{tpu_custom_call.1} parent=11 // pred_region
          %188 = vsyncadd [#allocation6], 0
          %s190 = sshll.u32 %s2, 4
          %s191 = int_to_ptr.hbm [resolvable:$true] %s190
          %s192 = sshll.u32 [#allocation7], 4
          %s193 = int_to_ptr.vmem [resolvable:$true] %s192
          %195 = dma.hbm_to_vmem [thread:$0]  %s191, 32, %s193, [#allocation6]
        $region20: #{tpu_custom_call.1} parent=11 // pred_fallthru
          _
        // Predicated region
        $region21: #{tpu_custom_call.1} parent=11 // pred_check
          %p196 = pneg %p108
        $region22: #{tpu_custom_call.1} parent=11 // pred_check_branch
          %198 = sbr.rel (%p196) target = $region24
        $region23: #{tpu_custom_call.1} parent=11 // pred_region
          %200 = vsyncadd [#allocation9], 0
          %s201 = sshll.u32 %s3, 4
          %s202 = int_to_ptr.hbm [resolvable:$true] %s201
          %s203 = sshll.u32 [#allocation8], 4
          %s204 = int_to_ptr.vmem [resolvable:$true] %s203
          %209 = dma.hbm_to_vmem [thread:$0]  %s202, 18432, %s204, [#allocation9], 128, 128, 8
        $region24: #{tpu_custom_call.1} parent=11 // pred_fallthru
          _
        // Predicated region
        $region25: #{tpu_custom_call.1} parent=11 // pred_check
          %p210 = pneg %p129
        $region26: #{tpu_custom_call.1} parent=11 // pred_check_branch
          %212 = sbr.rel (%p210) target = $region28
        $region27: #{tpu_custom_call.1} parent=11 // pred_region
          _
        $region28: #{tpu_custom_call.1} parent=11 // pred_fallthru
          _
      $region12: #{tpu_custom_call.1} parent=5 // pred_fallthru
        _
      %p213 = scmp.lt.s32.totalorder %s19, 2
      // Predicated region
      $region29: #{tpu_custom_call.1} parent=5 // pred_check
        %p214 = pneg %p213
      $region30: #{tpu_custom_call.1} parent=5 // pred_check_branch
        %216 = sbr.rel (%p214) target = $region32
      $region31: #{tpu_custom_call.1} parent=5 // pred_region
        // Predicated region
        $region33: #{tpu_custom_call.1} parent=31 // pred_check
          %p217 = pneg %p39
        $region34: #{tpu_custom_call.1} parent=31 // pred_check_branch
          %219 = sbr.rel (%p217) target = $region36
        $region35: #{tpu_custom_call.1} parent=31 // pred_region
          %s220 = sand.u32 %s29, 1
          %s221 = scalar_lea.sflag [#allocation3], %s220
          %s222 = sand.u32 %s29, 1
          %s223 = smul.addr %s222, 256
          %s224 = scalar_lea.vmem [#allocation2], %s223
          %226 = vsyncadd %s221, 0
          %s227 = smul.addr %s19, 32
          %s228 = smul.addr %s227, 8
          %s229 = scalar_lea.hbm %s0, %s228
          %s230 = sshll.u32 %s229, 4
          %s231 = int_to_ptr.hbm [resolvable:$true] %s230
          %s232 = sshll.u32 %s224, 4
          %s233 = int_to_ptr.vmem [resolvable:$true] %s232
          %238 = dma.hbm_to_vmem [thread:$0]  %s231, 4096, %s233, %s221, 128, 128, 8
        $region36: #{tpu_custom_call.1} parent=31 // pred_fallthru
          _
      $region32: #{tpu_custom_call.1} parent=5 // pred_fallthru
        _
      %p239 = scmp.le.s32.totalorder 1, %s19
      %p240 = scmp.lt.s32.totalorder %s19, 3
      %p241 = pnand %p239, %p240
      %p242 = pneg %p241
      // Predicated region
      $region37: #{tpu_custom_call.1} parent=5 // pred_check
        _
      $region38: #{tpu_custom_call.1} parent=5 // pred_check_branch
        %244 = sbr.rel (%p241) target = $region40
      $region39: #{tpu_custom_call.1} parent=5 // pred_region
        %s245 = ssub.s32 %s19, 1
        %s246 = sand.u32 %s32, 1
        %s247 = scalar_lea.sflag [#allocation3], %s246
        %s248 = sand.u32 %s32, 1
        %s249 = smul.addr %s248, 256
        %s250 = scalar_lea.vmem [#allocation2], %s249
        // Predicated region
        $region41: #{tpu_custom_call.1} parent=39 // pred_check
          %p251 = pneg %p45
        $region42: #{tpu_custom_call.1} parent=39 // pred_check_branch
          %253 = sbr.rel (%p251) target = $region44
        $region43: #{tpu_custom_call.1} parent=39 // pred_region
          %255 = dma.done %s247, 4096
        $region44: #{tpu_custom_call.1} parent=39 // pred_fallthru
          _
        // Predicated region
        $region45: #{tpu_custom_call.1} parent=39 // pred_check
          %p256 = pneg %p66
        $region46: #{tpu_custom_call.1} parent=39 // pred_check_branch
          %258 = sbr.rel (%p256) target = $region48
        $region47: #{tpu_custom_call.1} parent=39 // pred_region
          %260 = dma.done [#allocation6], 18432
        $region48: #{tpu_custom_call.1} parent=39 // pred_fallthru
          _
        // Predicated region
        $region49: #{tpu_custom_call.1} parent=39 // pred_check
          %p261 = pneg %p87
        $region50: #{tpu_custom_call.1} parent=39 // pred_check_branch
          %263 = sbr.rel (%p261) target = $region52
        $region51: #{tpu_custom_call.1} parent=39 // pred_region
          %265 = dma.done [#allocation6], 32
        $region52: #{tpu_custom_call.1} parent=39 // pred_fallthru
          _
        // Predicated region
        $region53: #{tpu_custom_call.1} parent=39 // pred_check
          %p266 = pneg %p108
        $region54: #{tpu_custom_call.1} parent=39 // pred_check_branch
          %268 = sbr.rel (%p266) target = $region56
        $region55: #{tpu_custom_call.1} parent=39 // pred_region
          %270 = dma.done [#allocation9], 18432
        $region56: #{tpu_custom_call.1} parent=39 // pred_fallthru
          _
        %s271 = sand.u32 %s32, 1
        %s272 = scalar_lea.sflag [#allocation3], %s271
        %s273 = sand.u32 %s32, 1
        %s274 = smul.addr %s273, 256
        %s275 = scalar_lea.vmem [#allocation2], %s274
        %p276 = pneg %p45
        %p277 = pneg %p42
        %p278 = pneg %p66
        %p279 = pneg %p63
        %p280 = pneg %p87
        %p281 = pneg %p84
        %p282 = pneg %p108
        %p283 = pneg %p105
        %p284 = pneg %p129
        %p285 = pneg %p126
        %p286 = pneg %p155
        %p287 = pneg %p152
        %s288 = sand.u32 %s142, 1
        %s289 = scalar_lea.sflag [#allocation4], %s288
        %s290 = sand.u32 %s142, 1
        %s291 = smul.addr %s290, 256
        %s292 = scalar_lea.vmem [#allocation10], %s291
        %v293 = vlaneseq
        %v294 = vshrl.u32 %v293, 7
        %v295 = vadd.s32 %v294, 8
        %v296 = vadd.s32 %v294, 16
        %v297 = vadd.s32 %v294, 24
        %v298 = vadd.s32 %v294, 32
        %v299 = vadd.s32 %v294, 40
        %v300 = vadd.s32 %v294, 48
        %v301 = vadd.s32 %v294, 56
        %v302 = vadd.s32 %v294, 64
        %v303 = vadd.s32 %v294, 72
        %v304 = vadd.s32 %v294, 80
        %v305 = vadd.s32 %v294, 88
        %v306 = vadd.s32 %v294, 96
        %v307 = vadd.s32 %v294, 104
        %v308 = vadd.s32 %v294, 112
        %v309 = vadd.s32 %v294, 120
        %v310 = vadd.s32 %v294, 128
        %v311 = vadd.s32 %v294, 136
        %v312 = vadd.s32 %v294, 144
        %v313 = vadd.s32 %v294, 152
        %v314 = vadd.s32 %v294, 160
        %v315 = vadd.s32 %v294, 168
        %v316 = vadd.s32 %v294, 176
        %v317 = vadd.s32 %v294, 184
        %v318 = vadd.s32 %v294, 192
        %v319 = vadd.s32 %v294, 200
        %v320 = vadd.s32 %v294, 208
        %v321 = vadd.s32 %v294, 216
        %v322 = vadd.s32 %v294, 224
        %v323 = vadd.s32 %v294, 232
        %v324 = vadd.s32 %v294, 240
        %v325 = vadd.s32 %v294, 248
        %vm326 = vcmp.lt.s32.totalorder %v294, 0
        %v327 = vsub.s32 0, %v294
        %v328 = vsel %vm326, %v327, %v294
        %v329 = vshrl.u32 %v328, 4
        %v330 = vand.u32 %v328, 15
        %v331 = vsub.s32 0, %v330
        %v332 = vsel %vm326, %v331, %v330
        %vm333 = vcmp.lt.s32.totalorder %v295, 0
        %v334 = vsub.s32 0, %v295
        %v335 = vsel %vm333, %v334, %v295
        %v336 = vshrl.u32 %v335, 4
        %v337 = vand.u32 %v335, 15
        %v338 = vsub.s32 0, %v337
        %v339 = vsel %vm333, %v338, %v337
        %vm340 = vcmp.lt.s32.totalorder %v296, 0
        %v341 = vsub.s32 0, %v296
        %v342 = vsel %vm340, %v341, %v296
        %v343 = vshrl.u32 %v342, 4
        %v344 = vand.u32 %v342, 15
        %v345 = vsub.s32 0, %v344
        %v346 = vsel %vm340, %v345, %v344
        %vm347 = vcmp.lt.s32.totalorder %v297, 0
        %v348 = vsub.s32 0, %v297
        %v349 = vsel %vm347, %v348, %v297
        %v350 = vshrl.u32 %v349, 4
        %v351 = vand.u32 %v349, 15
        %v352 = vsub.s32 0, %v351
        %v353 = vsel %vm347, %v352, %v351
        %vm354 = vcmp.lt.s32.totalorder %v298, 0
        %v355 = vsub.s32 0, %v298
        %v356 = vsel %vm354, %v355, %v298
        %v357 = vshrl.u32 %v356, 4
        %v358 = vand.u32 %v356, 15
        %v359 = vsub.s32 0, %v358
        %v360 = vsel %vm354, %v359, %v358
        %vm361 = vcmp.lt.s32.totalorder %v299, 0
        %v362 = vsub.s32 0, %v299
        %v363 = vsel %vm361, %v362, %v299
        %v364 = vshrl.u32 %v363, 4
        %v365 = vand.u32 %v363, 15
        %v366 = vsub.s32 0, %v365
        %v367 = vsel %vm361, %v366, %v365
        %vm368 = vcmp.lt.s32.totalorder %v300, 0
        %v369 = vsub.s32 0, %v300
        %v370 = vsel %vm368, %v369, %v300
        %v371 = vshrl.u32 %v370, 4
        %v372 = vand.u32 %v370, 15
        %v373 = vsub.s32 0, %v372
        %v374 = vsel %vm368, %v373, %v372
        %vm375 = vcmp.lt.s32.totalorder %v301, 0
        %v376 = vsub.s32 0, %v301
        %v377 = vsel %vm375, %v376, %v301
        %v378 = vshrl.u32 %v377, 4
        %v379 = vand.u32 %v377, 15
        %v380 = vsub.s32 0, %v379
        %v381 = vsel %vm375, %v380, %v379
        %vm382 = vcmp.lt.s32.totalorder %v302, 0
        %v383 = vsub.s32 0, %v302
        %v384 = vsel %vm382, %v383, %v302
        %v385 = vshrl.u32 %v384, 4
        %v386 = vand.u32 %v384, 15
        %v387 = vsub.s32 0, %v386
        %v388 = vsel %vm382, %v387, %v386
        %vm389 = vcmp.lt.s32.totalorder %v303, 0
        %v390 = vsub.s32 0, %v303
        %v391 = vsel %vm389, %v390, %v303
        %v392 = vshrl.u32 %v391, 4
        %v393 = vand.u32 %v391, 15
        %v394 = vsub.s32 0, %v393
        %v395 = vsel %vm389, %v394, %v393
        %vm396 = vcmp.lt.s32.totalorder %v304, 0
        %v397 = vsub.s32 0, %v304
        %v398 = vsel %vm396, %v397, %v304
        %v399 = vshrl.u32 %v398, 4
        %v400 = vand.u32 %v398, 15
        %v401 = vsub.s32 0, %v400
        %v402 = vsel %vm396, %v401, %v400
        %vm403 = vcmp.lt.s32.totalorder %v305, 0
        %v404 = vsub.s32 0, %v305
        %v405 = vsel %vm403, %v404, %v305
        %v406 = vshrl.u32 %v405, 4
        %v407 = vand.u32 %v405, 15
        %v408 = vsub.s32 0, %v407
        %v409 = vsel %vm403, %v408, %v407
        %vm410 = vcmp.lt.s32.totalorder %v306, 0
        %v411 = vsub.s32 0, %v306
        %v412 = vsel %vm410, %v411, %v306
        %v413 = vshrl.u32 %v412, 4
        %v414 = vand.u32 %v412, 15
        %v415 = vsub.s32 0, %v414
        %v416 = vsel %vm410, %v415, %v414
        %vm417 = vcmp.lt.s32.totalorder %v307, 0
        %v418 = vsub.s32 0, %v307
        %v419 = vsel %vm417, %v418, %v307
        %v420 = vshrl.u32 %v419, 4
        %v421 = vand.u32 %v419, 15
        %v422 = vsub.s32 0, %v421
        %v423 = vsel %vm417, %v422, %v421
        %vm424 = vcmp.lt.s32.totalorder %v308, 0
        %v425 = vsub.s32 0, %v308
        %v426 = vsel %vm424, %v425, %v308
        %v427 = vshrl.u32 %v426, 4
        %v428 = vand.u32 %v426, 15
        %v429 = vsub.s32 0, %v428
        %v430 = vsel %vm424, %v429, %v428
        %vm431 = vcmp.lt.s32.totalorder %v309, 0
        %v432 = vsub.s32 0, %v309
        %v433 = vsel %vm431, %v432, %v309
        %v434 = vshrl.u32 %v433, 4
        %v435 = vand.u32 %v433, 15
        %v436 = vsub.s32 0, %v435
        %v437 = vsel %vm431, %v436, %v435
        %vm438 = vcmp.lt.s32.totalorder %v310, 0
        %v439 = vsub.s32 0, %v310
        %v440 = vsel %vm438, %v439, %v310
        %v441 = vshrl.u32 %v440, 4
        %v442 = vand.u32 %v440, 15
        %v443 = vsub.s32 0, %v442
        %v444 = vsel %vm438, %v443, %v442
        %vm445 = vcmp.lt.s32.totalorder %v311, 0
        %v446 = vsub.s32 0, %v311
        %v447 = vsel %vm445, %v446, %v311
        %v448 = vshrl.u32 %v447, 4
        %v449 = vand.u32 %v447, 15
        %v450 = vsub.s32 0, %v449
        %v451 = vsel %vm445, %v450, %v449
        %vm452 = vcmp.lt.s32.totalorder %v312, 0
        %v453 = vsub.s32 0, %v312
        %v454 = vsel %vm452, %v453, %v312
        %v455 = vshrl.u32 %v454, 4
        %v456 = vand.u32 %v454, 15
        %v457 = vsub.s32 0, %v456
        %v458 = vsel %vm452, %v457, %v456
        %vm459 = vcmp.lt.s32.totalorder %v313, 0
        %v460 = vsub.s32 0, %v313
        %v461 = vsel %vm459, %v460, %v313
        %v462 = vshrl.u32 %v461, 4
        %v463 = vand.u32 %v461, 15
        %v464 = vsub.s32 0, %v463
        %v465 = vsel %vm459, %v464, %v463
        %vm466 = vcmp.lt.s32.totalorder %v314, 0
        %v467 = vsub.s32 0, %v314
        %v468 = vsel %vm466, %v467, %v314
        %v469 = vshrl.u32 %v468, 4
        %v470 = vand.u32 %v468, 15
        %v471 = vsub.s32 0, %v470
        %v472 = vsel %vm466, %v471, %v470
        %vm473 = vcmp.lt.s32.totalorder %v315, 0
        %v474 = vsub.s32 0, %v315
        %v475 = vsel %vm473, %v474, %v315
        %v476 = vshrl.u32 %v475, 4
        %v477 = vand.u32 %v475, 15
        %v478 = vsub.s32 0, %v477
        %v479 = vsel %vm473, %v478, %v477
        %vm480 = vcmp.lt.s32.totalorder %v316, 0
        %v481 = vsub.s32 0, %v316
        %v482 = vsel %vm480, %v481, %v316
        %v483 = vshrl.u32 %v482, 4
        %v484 = vand.u32 %v482, 15
        %v485 = vsub.s32 0, %v484
        %v486 = vsel %vm480, %v485, %v484
        %vm487 = vcmp.lt.s32.totalorder %v317, 0
        %v488 = vsub.s32 0, %v317
        %v489 = vsel %vm487, %v488, %v317
        %v490 = vshrl.u32 %v489, 4
        %v491 = vand.u32 %v489, 15
        %v492 = vsub.s32 0, %v491
        %v493 = vsel %vm487, %v492, %v491
        %vm494 = vcmp.lt.s32.totalorder %v318, 0
        %v495 = vsub.s32 0, %v318
        %v496 = vsel %vm494, %v495, %v318
        %v497 = vshrl.u32 %v496, 4
        %v498 = vand.u32 %v496, 15
        %v499 = vsub.s32 0, %v498
        %v500 = vsel %vm494, %v499, %v498
        %vm501 = vcmp.lt.s32.totalorder %v319, 0
        %v502 = vsub.s32 0, %v319
        %v503 = vsel %vm501, %v502, %v319
        %v504 = vshrl.u32 %v503, 4
        %v505 = vand.u32 %v503, 15
        %v506 = vsub.s32 0, %v505
        %v507 = vsel %vm501, %v506, %v505
        %vm508 = vcmp.lt.s32.totalorder %v320, 0
        %v509 = vsub.s32 0, %v320
        %v510 = vsel %vm508, %v509, %v320
        %v511 = vshrl.u32 %v510, 4
        %v512 = vand.u32 %v510, 15
        %v513 = vsub.s32 0, %v512
        %v514 = vsel %vm508, %v513, %v512
        %vm515 = vcmp.lt.s32.totalorder %v321, 0
        %v516 = vsub.s32 0, %v321
        %v517 = vsel %vm515, %v516, %v321
        %v518 = vshrl.u32 %v517, 4
        %v519 = vand.u32 %v517, 15
        %v520 = vsub.s32 0, %v519
        %v521 = vsel %vm515, %v520, %v519
        %vm522 = vcmp.lt.s32.totalorder %v322, 0
        %v523 = vsub.s32 0, %v322
        %v524 = vsel %vm522, %v523, %v322
        %v525 = vshrl.u32 %v524, 4
        %v526 = vand.u32 %v524, 15
        %v527 = vsub.s32 0, %v526
        %v528 = vsel %vm522, %v527, %v526
        %vm529 = vcmp.lt.s32.totalorder %v323, 0
        %v530 = vsub.s32 0, %v323
        %v531 = vsel %vm529, %v530, %v323
        %v532 = vshrl.u32 %v531, 4
        %v533 = vand.u32 %v531, 15
        %v534 = vsub.s32 0, %v533
        %v535 = vsel %vm529, %v534, %v533
        %vm536 = vcmp.lt.s32.totalorder %v324, 0
        %v537 = vsub.s32 0, %v324
        %v538 = vsel %vm536, %v537, %v324
        %v539 = vshrl.u32 %v538, 4
        %v540 = vand.u32 %v538, 15
        %v541 = vsub.s32 0, %v540
        %v542 = vsel %vm536, %v541, %v540
        %vm543 = vcmp.lt.s32.totalorder %v325, 0
        %v544 = vsub.s32 0, %v325
        %v545 = vsel %vm543, %v544, %v325
        %v546 = vshrl.u32 %v545, 4
        %v547 = vand.u32 %v545, 15
        %v548 = vsub.s32 0, %v547
        %v549 = vsel %vm543, %v548, %v547
        %vm550 = vcmp.ne.s32.totalorder %v332, 0
        %vm551 = vcmp.ne.s32.totalorder %v339, 0
        %vm552 = vcmp.ne.s32.totalorder %v346, 0
        %vm553 = vcmp.ne.s32.totalorder %v353, 0
        %vm554 = vcmp.ne.s32.totalorder %v360, 0
        %vm555 = vcmp.ne.s32.totalorder %v367, 0
        %vm556 = vcmp.ne.s32.totalorder %v374, 0
        %vm557 = vcmp.ne.s32.totalorder %v381, 0
        %vm558 = vcmp.ne.s32.totalorder %v388, 0
        %vm559 = vcmp.ne.s32.totalorder %v395, 0
        %vm560 = vcmp.ne.s32.totalorder %v402, 0
        %vm561 = vcmp.ne.s32.totalorder %v409, 0
        %vm562 = vcmp.ne.s32.totalorder %v416, 0
        %vm563 = vcmp.ne.s32.totalorder %v423, 0
        %vm564 = vcmp.ne.s32.totalorder %v430, 0
        %vm565 = vcmp.ne.s32.totalorder %v437, 0
        %vm566 = vcmp.ne.s32.totalorder %v444, 0
        %vm567 = vcmp.ne.s32.totalorder %v451, 0
        %vm568 = vcmp.ne.s32.totalorder %v458, 0
        %vm569 = vcmp.ne.s32.totalorder %v465, 0
        %vm570 = vcmp.ne.s32.totalorder %v472, 0
        %vm571 = vcmp.ne.s32.totalorder %v479, 0
        %vm572 = vcmp.ne.s32.totalorder %v486, 0
        %vm573 = vcmp.ne.s32.totalorder %v493, 0
        %vm574 = vcmp.ne.s32.totalorder %v500, 0
        %vm575 = vcmp.ne.s32.totalorder %v507, 0
        %vm576 = vcmp.ne.s32.totalorder %v514, 0
        %vm577 = vcmp.ne.s32.totalorder %v521, 0
        %vm578 = vcmp.ne.s32.totalorder %v528, 0
        %vm579 = vcmp.ne.s32.totalorder %v535, 0
        %vm580 = vcmp.ne.s32.totalorder %v542, 0
        %vm581 = vcmp.ne.s32.totalorder %v549, 0
        %vm582 = vcmp.lt.s32.totalorder %v332, 0
        %vm583 = vcmp.lt.s32.totalorder %v339, 0
        %vm584 = vcmp.lt.s32.totalorder %v346, 0
        %vm585 = vcmp.lt.s32.totalorder %v353, 0
        %vm586 = vcmp.lt.s32.totalorder %v360, 0
        %vm587 = vcmp.lt.s32.totalorder %v367, 0
        %vm588 = vcmp.lt.s32.totalorder %v374, 0
        %vm589 = vcmp.lt.s32.totalorder %v381, 0
        %vm590 = vcmp.lt.s32.totalorder %v388, 0
        %vm591 = vcmp.lt.s32.totalorder %v395, 0
        %vm592 = vcmp.lt.s32.totalorder %v402, 0
        %vm593 = vcmp.lt.s32.totalorder %v409, 0
        %vm594 = vcmp.lt.s32.totalorder %v416, 0
        %vm595 = vcmp.lt.s32.totalorder %v423, 0
        %vm596 = vcmp.lt.s32.totalorder %v430, 0
        %vm597 = vcmp.lt.s32.totalorder %v437, 0
        %vm598 = vcmp.lt.s32.totalorder %v444, 0
        %vm599 = vcmp.lt.s32.totalorder %v451, 0
        %vm600 = vcmp.lt.s32.totalorder %v458, 0
        %vm601 = vcmp.lt.s32.totalorder %v465, 0
        %vm602 = vcmp.lt.s32.totalorder %v472, 0
        %vm603 = vcmp.lt.s32.totalorder %v479, 0
        %vm604 = vcmp.lt.s32.totalorder %v486, 0
        %vm605 = vcmp.lt.s32.totalorder %v493, 0
        %vm606 = vcmp.lt.s32.totalorder %v500, 0
        %vm607 = vcmp.lt.s32.totalorder %v507, 0
        %vm608 = vcmp.lt.s32.totalorder %v514, 0
        %vm609 = vcmp.lt.s32.totalorder %v521, 0
        %vm610 = vcmp.lt.s32.totalorder %v528, 0
        %vm611 = vcmp.lt.s32.totalorder %v535, 0
        %vm612 = vcmp.lt.s32.totalorder %v542, 0
        %vm613 = vcmp.lt.s32.totalorder %v549, 0
        %vm614 = vmand %vm582, %vm550
        %vm615 = vmand %vm583, %vm551
        %vm616 = vmand %vm584, %vm552
        %vm617 = vmand %vm585, %vm553
        %vm618 = vmand %vm586, %vm554
        %vm619 = vmand %vm587, %vm555
        %vm620 = vmand %vm588, %vm556
        %vm621 = vmand %vm589, %vm557
        %vm622 = vmand %vm590, %vm558
        %vm623 = vmand %vm591, %vm559
        %vm624 = vmand %vm592, %vm560
        %vm625 = vmand %vm593, %vm561
        %vm626 = vmand %vm594, %vm562
        %vm627 = vmand %vm595, %vm563
        %vm628 = vmand %vm596, %vm564
        %vm629 = vmand %vm597, %vm565
        %vm630 = vmand %vm598, %vm566
        %vm631 = vmand %vm599, %vm567
        %vm632 = vmand %vm600, %vm568
        %vm633 = vmand %vm601, %vm569
        %vm634 = vmand %vm602, %vm570
        %vm635 = vmand %vm603, %vm571
        %vm636 = vmand %vm604, %vm572
        %vm637 = vmand %vm605, %vm573
        %vm638 = vmand %vm606, %vm574
        %vm639 = vmand %vm607, %vm575
        %vm640 = vmand %vm608, %vm576
        %vm641 = vmand %vm609, %vm577
        %vm642 = vmand %vm610, %vm578
        %vm643 = vmand %vm611, %vm579
        %vm644 = vmand %vm612, %vm580
        %vm645 = vmand %vm613, %vm581
        %v646 = vadd.s32 %v332, 16
        %v647 = vadd.s32 %v339, 16
        %v648 = vadd.s32 %v346, 16
        %v649 = vadd.s32 %v353, 16
        %v650 = vadd.s32 %v360, 16
        %v651 = vadd.s32 %v367, 16
        %v652 = vadd.s32 %v374, 16
        %v653 = vadd.s32 %v381, 16
        %v654 = vadd.s32 %v388, 16
        %v655 = vadd.s32 %v395, 16
        %v656 = vadd.s32 %v402, 16
        %v657 = vadd.s32 %v409, 16
        %v658 = vadd.s32 %v416, 16
        %v659 = vadd.s32 %v423, 16
        %v660 = vadd.s32 %v430, 16
        %v661 = vadd.s32 %v437, 16
        %v662 = vadd.s32 %v444, 16
        %v663 = vadd.s32 %v451, 16
        %v664 = vadd.s32 %v458, 16
        %v665 = vadd.s32 %v465, 16
        %v666 = vadd.s32 %v472, 16
        %v667 = vadd.s32 %v479, 16
        %v668 = vadd.s32 %v486, 16
        %v669 = vadd.s32 %v493, 16
        %v670 = vadd.s32 %v500, 16
        %v671 = vadd.s32 %v507, 16
        %v672 = vadd.s32 %v514, 16
        %v673 = vadd.s32 %v521, 16
        %v674 = vadd.s32 %v528, 16
        %v675 = vadd.s32 %v535, 16
        %v676 = vadd.s32 %v542, 16
        %v677 = vadd.s32 %v549, 16
        %v678 = vsel %vm614, %v646, %v332
        %v679 = vsel %vm615, %v647, %v339
        %v680 = vsel %vm616, %v648, %v346
        %v681 = vsel %vm617, %v649, %v353
        %v682 = vsel %vm618, %v650, %v360
        %v683 = vsel %vm619, %v651, %v367
        %v684 = vsel %vm620, %v652, %v374
        %v685 = vsel %vm621, %v653, %v381
        %v686 = vsel %vm622, %v654, %v388
        %v687 = vsel %vm623, %v655, %v395
        %v688 = vsel %vm624, %v656, %v402
        %v689 = vsel %vm625, %v657, %v409
        %v690 = vsel %vm626, %v658, %v416
        %v691 = vsel %vm627, %v659, %v423
        %v692 = vsel %vm628, %v660, %v430
        %v693 = vsel %vm629, %v661, %v437
        %v694 = vsel %vm630, %v662, %v444
        %v695 = vsel %vm631, %v663, %v451
        %v696 = vsel %vm632, %v664, %v458
        %v697 = vsel %vm633, %v665, %v465
        %v698 = vsel %vm634, %v666, %v472
        %v699 = vsel %vm635, %v667, %v479
        %v700 = vsel %vm636, %v668, %v486
        %v701 = vsel %vm637, %v669, %v493
        %v702 = vsel %vm638, %v670, %v500
        %v703 = vsel %vm639, %v671, %v507
        %v704 = vsel %vm640, %v672, %v514
        %v705 = vsel %vm641, %v673, %v521
        %v706 = vsel %vm642, %v674, %v528
        %v707 = vsel %vm643, %v675, %v535
        %v708 = vsel %vm644, %v676, %v542
        %v709 = vsel %vm645, %v677, %v549
        %vm710 = vcmp.ne.s32.totalorder %v678, 0
        %vm711 = vcmp.ne.s32.totalorder %v679, 0
        %vm712 = vcmp.ne.s32.totalorder %v680, 0
        %vm713 = vcmp.ne.s32.totalorder %v681, 0
        %vm714 = vcmp.ne.s32.totalorder %v682, 0
        %vm715 = vcmp.ne.s32.totalorder %v683, 0
        %vm716 = vcmp.ne.s32.totalorder %v684, 0
        %vm717 = vcmp.ne.s32.totalorder %v685, 0
        %vm718 = vcmp.ne.s32.totalorder %v686, 0
        %vm719 = vcmp.ne.s32.totalorder %v687, 0
        %vm720 = vcmp.ne.s32.totalorder %v688, 0
        %vm721 = vcmp.ne.s32.totalorder %v689, 0
        %vm722 = vcmp.ne.s32.totalorder %v690, 0
        %vm723 = vcmp.ne.s32.totalorder %v691, 0
        %vm724 = vcmp.ne.s32.totalorder %v692, 0
        %vm725 = vcmp.ne.s32.totalorder %v693, 0
        %vm726 = vcmp.ne.s32.totalorder %v694, 0
        %vm727 = vcmp.ne.s32.totalorder %v695, 0
        %vm728 = vcmp.ne.s32.totalorder %v696, 0
        %vm729 = vcmp.ne.s32.totalorder %v697, 0
        %vm730 = vcmp.ne.s32.totalorder %v698, 0
        %vm731 = vcmp.ne.s32.totalorder %v699, 0
        %vm732 = vcmp.ne.s32.totalorder %v700, 0
        %vm733 = vcmp.ne.s32.totalorder %v701, 0
        %vm734 = vcmp.ne.s32.totalorder %v702, 0
        %vm735 = vcmp.ne.s32.totalorder %v703, 0
        %vm736 = vcmp.ne.s32.totalorder %v704, 0
        %vm737 = vcmp.ne.s32.totalorder %v705, 0
        %vm738 = vcmp.ne.s32.totalorder %v706, 0
        %vm739 = vcmp.ne.s32.totalorder %v707, 0
        %vm740 = vcmp.ne.s32.totalorder %v708, 0
        %vm741 = vcmp.ne.s32.totalorder %v709, 0
        %vm742 = vcmp.ne.s32.totalorder %v678, 15
        %vm743 = vcmp.ne.s32.totalorder %v679, 15
        %vm744 = vcmp.ne.s32.totalorder %v680, 15
        %vm745 = vcmp.ne.s32.totalorder %v681, 15
        %vm746 = vcmp.ne.s32.totalorder %v682, 15
        %vm747 = vcmp.ne.s32.totalorder %v683, 15
        %vm748 = vcmp.ne.s32.totalorder %v684, 15
        %vm749 = vcmp.ne.s32.totalorder %v685, 15
        %vm750 = vcmp.ne.s32.totalorder %v686, 15
        %vm751 = vcmp.ne.s32.totalorder %v687, 15
        %vm752 = vcmp.ne.s32.totalorder %v688, 15
        %vm753 = vcmp.ne.s32.totalorder %v689, 15
        %vm754 = vcmp.ne.s32.totalorder %v690, 15
        %vm755 = vcmp.ne.s32.totalorder %v691, 15
        %vm756 = vcmp.ne.s32.totalorder %v692, 15
        %vm757 = vcmp.ne.s32.totalorder %v693, 15
        %vm758 = vcmp.ne.s32.totalorder %v694, 15
        %vm759 = vcmp.ne.s32.totalorder %v695, 15
        %vm760 = vcmp.ne.s32.totalorder %v696, 15
        %vm761 = vcmp.ne.s32.totalorder %v697, 15
        %vm762 = vcmp.ne.s32.totalorder %v698, 15
        %vm763 = vcmp.ne.s32.totalorder %v699, 15
        %vm764 = vcmp.ne.s32.totalorder %v700, 15
        %vm765 = vcmp.ne.s32.totalorder %v701, 15
        %vm766 = vcmp.ne.s32.totalorder %v702, 15
        %vm767 = vcmp.ne.s32.totalorder %v703, 15
        %vm768 = vcmp.ne.s32.totalorder %v704, 15
        %vm769 = vcmp.ne.s32.totalorder %v705, 15
        %vm770 = vcmp.ne.s32.totalorder %v706, 15
        %vm771 = vcmp.ne.s32.totalorder %v707, 15
        %vm772 = vcmp.ne.s32.totalorder %v708, 15
        %vm773 = vcmp.ne.s32.totalorder %v709, 15
        %v774 = vld [vmem:[%s250] sm:$0xff]
        %v775 = vld [vmem:[%s250 + $0x8] sm:$0xff]
        %v776 = vld [vmem:[%s250 + $0x10] sm:$0xff]
        %v777 = vld [vmem:[%s250 + $0x18] sm:$0xff]
        %v778 = vld [vmem:[%s250 + $0x20] sm:$0xff]
        %v779 = vld [vmem:[%s250 + $0x28] sm:$0xff]
        %v780 = vld [vmem:[%s250 + $0x30] sm:$0xff]
        %v781 = vld [vmem:[%s250 + $0x38] sm:$0xff]
        %v782 = vld [vmem:[%s250 + $0x40] sm:$0xff]
        %v783 = vld [vmem:[%s250 + $0x48] sm:$0xff]
        %v784 = vld [vmem:[%s250 + $0x50] sm:$0xff]
        %v785 = vld [vmem:[%s250 + $0x58] sm:$0xff]
        %v786 = vld [vmem:[%s250 + $0x60] sm:$0xff]
        %v787 = vld [vmem:[%s250 + $0x68] sm:$0xff]
        %v788 = vld [vmem:[%s250 + $0x70] sm:$0xff]
        %v789 = vld [vmem:[%s250 + $0x78] sm:$0xff]
        %v790 = vld [vmem:[%s250 + $0x80] sm:$0xff]
        %v791 = vld [vmem:[%s250 + $0x88] sm:$0xff]
        %v792 = vld [vmem:[%s250 + $0x90] sm:$0xff]
        %v793 = vld [vmem:[%s250 + $0x98] sm:$0xff]
        %v794 = vld [vmem:[%s250 + $0xa0] sm:$0xff]
        %v795 = vld [vmem:[%s250 + $0xa8] sm:$0xff]
        %v796 = vld [vmem:[%s250 + $0xb0] sm:$0xff]
        %v797 = vld [vmem:[%s250 + $0xb8] sm:$0xff]
        %v798 = vld [vmem:[%s250 + $0xc0] sm:$0xff]
        %v799 = vld [vmem:[%s250 + $0xc8] sm:$0xff]
        %v800 = vld [vmem:[%s250 + $0xd0] sm:$0xff]
        %v801 = vld [vmem:[%s250 + $0xd8] sm:$0xff]
        %v802 = vld [vmem:[%s250 + $0xe0] sm:$0xff]
        %v803 = vld [vmem:[%s250 + $0xe8] sm:$0xff]
        %v804 = vld [vmem:[%s250 + $0xf0] sm:$0xff]
        %v805 = vld [vmem:[%s250 + $0xf8] sm:$0xff]
        %v807 = vrot.slane 0.0, 7
        %vm841 = vcmask 1040384
        %v842 = vsel %vm841, %v807, %v807
        %v843 = vrot.slane %v774, 7
        %v844 = vsel %vm841, %v807, %v843
        %v845 = vrot.slane %v775, 7
        %v846 = vsel %vm841, %v843, %v845
        %v847 = vrot.slane %v776, 7
        %v848 = vsel %vm841, %v845, %v847
        %v849 = vrot.slane %v777, 7
        %v850 = vsel %vm841, %v847, %v849
        %v851 = vrot.slane %v778, 7
        %v852 = vsel %vm841, %v849, %v851
        %v853 = vrot.slane %v779, 7
        %v854 = vsel %vm841, %v851, %v853
        %v855 = vrot.slane %v780, 7
        %v856 = vsel %vm841, %v853, %v855
        %v857 = vrot.slane %v781, 7
        %v858 = vsel %vm841, %v855, %v857
        %v859 = vrot.slane %v782, 7
        %v860 = vsel %vm841, %v857, %v859
        %v861 = vrot.slane %v783, 7
        %v862 = vsel %vm841, %v859, %v861
        %v863 = vrot.slane %v784, 7
        %v864 = vsel %vm841, %v861, %v863
        %v865 = vrot.slane %v785, 7
        %v866 = vsel %vm841, %v863, %v865
        %v867 = vrot.slane %v786, 7
        %v868 = vsel %vm841, %v865, %v867
        %v869 = vrot.slane %v787, 7
        %v870 = vsel %vm841, %v867, %v869
        %v871 = vrot.slane %v788, 7
        %v872 = vsel %vm841, %v869, %v871
        %v873 = vrot.slane %v789, 7
        %v874 = vsel %vm841, %v871, %v873
        %v875 = vrot.slane %v790, 7
        %v876 = vsel %vm841, %v873, %v875
        %v877 = vrot.slane %v791, 7
        %v878 = vsel %vm841, %v875, %v877
        %v879 = vrot.slane %v792, 7
        %v880 = vsel %vm841, %v877, %v879
        %v881 = vrot.slane %v793, 7
        %v882 = vsel %vm841, %v879, %v881
        %v883 = vrot.slane %v794, 7
        %v884 = vsel %vm841, %v881, %v883
        %v885 = vrot.slane %v795, 7
        %v886 = vsel %vm841, %v883, %v885
        %v887 = vrot.slane %v796, 7
        %v888 = vsel %vm841, %v885, %v887
        %v889 = vrot.slane %v797, 7
        %v890 = vsel %vm841, %v887, %v889
        %v891 = vrot.slane %v798, 7
        %v892 = vsel %vm841, %v889, %v891
        %v893 = vrot.slane %v799, 7
        %v894 = vsel %vm841, %v891, %v893
        %v895 = vrot.slane %v800, 7
        %v896 = vsel %vm841, %v893, %v895
        %v897 = vrot.slane %v801, 7
        %v898 = vsel %vm841, %v895, %v897
        %v899 = vrot.slane %v802, 7
        %v900 = vsel %vm841, %v897, %v899
        %v901 = vrot.slane %v803, 7
        %v902 = vsel %vm841, %v899, %v901
        %v903 = vrot.slane %v804, 7
        %v904 = vsel %vm841, %v901, %v903
        %v905 = vrot.slane %v805, 7
        %v906 = vsel %vm841, %v903, %v905
        %v907 = vsel %vm841, %v905, %v807
        %v942 = vsel %vm841, %v807, %v807
        %vm943 = vcmask 1046528
        %v944 = vrot.slane 0.0, 1
        %v945 = vsel %vm943, %v944, %v944
        %v946 = vrot.slane %v774, 1
        %v947 = vsel %vm943, %v944, %v946
        %v948 = vrot.slane %v775, 1
        %v949 = vsel %vm943, %v946, %v948
        %v950 = vrot.slane %v776, 1
        %v951 = vsel %vm943, %v948, %v950
        %v952 = vrot.slane %v777, 1
        %v953 = vsel %vm943, %v950, %v952
        %v954 = vrot.slane %v778, 1
        %v955 = vsel %vm943, %v952, %v954
        %v956 = vrot.slane %v779, 1
        %v957 = vsel %vm943, %v954, %v956
        %v958 = vrot.slane %v780, 1
        %v959 = vsel %vm943, %v956, %v958
        %v960 = vrot.slane %v781, 1
        %v961 = vsel %vm943, %v958, %v960
        %v962 = vrot.slane %v782, 1
        %v963 = vsel %vm943, %v960, %v962
        %v964 = vrot.slane %v783, 1
        %v965 = vsel %vm943, %v962, %v964
        %v966 = vrot.slane %v784, 1
        %v967 = vsel %vm943, %v964, %v966
        %v968 = vrot.slane %v785, 1
        %v969 = vsel %vm943, %v966, %v968
        %v970 = vrot.slane %v786, 1
        %v971 = vsel %vm943, %v968, %v970
        %v972 = vrot.slane %v787, 1
        %v973 = vsel %vm943, %v970, %v972
        %v974 = vrot.slane %v788, 1
        %v975 = vsel %vm943, %v972, %v974
        %v976 = vrot.slane %v789, 1
        %v977 = vsel %vm943, %v974, %v976
        %v978 = vrot.slane %v790, 1
        %v979 = vsel %vm943, %v976, %v978
        %v980 = vrot.slane %v791, 1
        %v981 = vsel %vm943, %v978, %v980
        %v982 = vrot.slane %v792, 1
        %v983 = vsel %vm943, %v980, %v982
        %v984 = vrot.slane %v793, 1
        %v985 = vsel %vm943, %v982, %v984
        %v986 = vrot.slane %v794, 1
        %v987 = vsel %vm943, %v984, %v986
        %v988 = vrot.slane %v795, 1
        %v989 = vsel %vm943, %v986, %v988
        %v990 = vrot.slane %v796, 1
        %v991 = vsel %vm943, %v988, %v990
        %v992 = vrot.slane %v797, 1
        %v993 = vsel %vm943, %v990, %v992
        %v994 = vrot.slane %v798, 1
        %v995 = vsel %vm943, %v992, %v994
        %v996 = vrot.slane %v799, 1
        %v997 = vsel %vm943, %v994, %v996
        %v998 = vrot.slane %v800, 1
        %v999 = vsel %vm943, %v996, %v998
        %v1000 = vrot.slane %v801, 1
        %v1001 = vsel %vm943, %v998, %v1000
        %v1002 = vrot.slane %v802, 1
        %v1003 = vsel %vm943, %v1000, %v1002
        %v1004 = vrot.slane %v803, 1
        %v1005 = vsel %vm943, %v1002, %v1004
        %v1006 = vrot.slane %v804, 1
        %v1007 = vsel %vm943, %v1004, %v1006
        %v1008 = vrot.slane %v805, 1
        %v1009 = vsel %vm943, %v1006, %v1008
        %v1010 = vsel %vm943, %v1008, %v944
        %v1046 = vsel %vm943, %v944, %v944
        %v1047 = vsel %vm710, 1, 0
        %v1048 = vsel %vm711, 1, 0
        %v1049 = vsel %vm712, 1, 0
        %v1050 = vsel %vm713, 1, 0
        %v1051 = vsel %vm714, 1, 0
        %v1052 = vsel %vm715, 1, 0
        %v1053 = vsel %vm716, 1, 0
        %v1054 = vsel %vm717, 1, 0
        %v1055 = vsel %vm718, 1, 0
        %v1056 = vsel %vm719, 1, 0
        %v1057 = vsel %vm720, 1, 0
        %v1058 = vsel %vm721, 1, 0
        %v1059 = vsel %vm722, 1, 0
        %v1060 = vsel %vm723, 1, 0
        %v1061 = vsel %vm724, 1, 0
        %v1062 = vsel %vm725, 1, 0
        %v1063 = vsel %vm726, 1, 0
        %v1064 = vsel %vm727, 1, 0
        %v1065 = vsel %vm728, 1, 0
        %v1066 = vsel %vm729, 1, 0
        %v1067 = vsel %vm730, 1, 0
        %v1068 = vsel %vm731, 1, 0
        %v1069 = vsel %vm732, 1, 0
        %v1070 = vsel %vm733, 1, 0
        %v1071 = vsel %vm734, 1, 0
        %v1072 = vsel %vm735, 1, 0
        %v1073 = vsel %vm736, 1, 0
        %v1074 = vsel %vm737, 1, 0
        %v1075 = vsel %vm738, 1, 0
        %v1076 = vsel %vm739, 1, 0
        %v1077 = vsel %vm740, 1, 0
        %v1078 = vsel %vm741, 1, 0
        %vm1079 = vcmp.eq.s32.totalorder %v1047, 1
        %vm1080 = vcmp.eq.s32.totalorder %v1048, 1
        %vm1081 = vcmp.eq.s32.totalorder %v1049, 1
        %vm1082 = vcmp.eq.s32.totalorder %v1050, 1
        %vm1083 = vcmp.eq.s32.totalorder %v1051, 1
        %vm1084 = vcmp.eq.s32.totalorder %v1052, 1
        %vm1085 = vcmp.eq.s32.totalorder %v1053, 1
        %vm1086 = vcmp.eq.s32.totalorder %v1054, 1
        %vm1087 = vcmp.eq.s32.totalorder %v1055, 1
        %vm1088 = vcmp.eq.s32.totalorder %v1056, 1
        %vm1089 = vcmp.eq.s32.totalorder %v1057, 1
        %vm1090 = vcmp.eq.s32.totalorder %v1058, 1
        %vm1091 = vcmp.eq.s32.totalorder %v1059, 1
        %vm1092 = vcmp.eq.s32.totalorder %v1060, 1
        %vm1093 = vcmp.eq.s32.totalorder %v1061, 1
        %vm1094 = vcmp.eq.s32.totalorder %v1062, 1
        %vm1095 = vcmp.eq.s32.totalorder %v1063, 1
        %vm1096 = vcmp.eq.s32.totalorder %v1064, 1
        %vm1097 = vcmp.eq.s32.totalorder %v1065, 1
        %vm1098 = vcmp.eq.s32.totalorder %v1066, 1
        %vm1099 = vcmp.eq.s32.totalorder %v1067, 1
        %vm1100 = vcmp.eq.s32.totalorder %v1068, 1
        %vm1101 = vcmp.eq.s32.totalorder %v1069, 1
        %vm1102 = vcmp.eq.s32.totalorder %v1070, 1
        %vm1103 = vcmp.eq.s32.totalorder %v1071, 1
        %vm1104 = vcmp.eq.s32.totalorder %v1072, 1
        %vm1105 = vcmp.eq.s32.totalorder %v1073, 1
        %vm1106 = vcmp.eq.s32.totalorder %v1074, 1
        %vm1107 = vcmp.eq.s32.totalorder %v1075, 1
        %vm1108 = vcmp.eq.s32.totalorder %v1076, 1
        %vm1109 = vcmp.eq.s32.totalorder %v1077, 1
        %vm1110 = vcmp.eq.s32.totalorder %v1078, 1
        %v1111 = vsel %vm1079, %v942, 0.0
        %v1112 = vsel %vm1080, %v842, 0.0
        %v1113 = vsel %vm1081, %v844, 0.0
        %v1114 = vsel %vm1082, %v846, 0.0
        %v1115 = vsel %vm1083, %v848, 0.0
        %v1116 = vsel %vm1084, %v850, 0.0
        %v1117 = vsel %vm1085, %v852, 0.0
        %v1118 = vsel %vm1086, %v854, 0.0
        %v1119 = vsel %vm1087, %v856, 0.0
        %v1120 = vsel %vm1088, %v858, 0.0
        %v1121 = vsel %vm1089, %v860, 0.0
        %v1122 = vsel %vm1090, %v862, 0.0
        %v1123 = vsel %vm1091, %v864, 0.0
        %v1124 = vsel %vm1092, %v866, 0.0
        %v1125 = vsel %vm1093, %v868, 0.0
        %v1126 = vsel %vm1094, %v870, 0.0
        %v1127 = vsel %vm1095, %v872, 0.0
        %v1128 = vsel %vm1096, %v874, 0.0
        %v1129 = vsel %vm1097, %v876, 0.0
        %v1130 = vsel %vm1098, %v878, 0.0
        %v1131 = vsel %vm1099, %v880, 0.0
        %v1132 = vsel %vm1100, %v882, 0.0
        %v1133 = vsel %vm1101, %v884, 0.0
        %v1134 = vsel %vm1102, %v886, 0.0
        %v1135 = vsel %vm1103, %v888, 0.0
        %v1136 = vsel %vm1104, %v890, 0.0
        %v1137 = vsel %vm1105, %v892, 0.0
        %v1138 = vsel %vm1106, %v894, 0.0
        %v1139 = vsel %vm1107, %v896, 0.0
        %v1140 = vsel %vm1108, %v898, 0.0
        %v1141 = vsel %vm1109, %v900, 0.0
        %v1142 = vsel %vm1110, %v902, 0.0
        %v1143 = vsel %vm742, 1, 0
        %v1144 = vsel %vm743, 1, 0
        %v1145 = vsel %vm744, 1, 0
        %v1146 = vsel %vm745, 1, 0
        %v1147 = vsel %vm746, 1, 0
        %v1148 = vsel %vm747, 1, 0
        %v1149 = vsel %vm748, 1, 0
        %v1150 = vsel %vm749, 1, 0
        %v1151 = vsel %vm750, 1, 0
        %v1152 = vsel %vm751, 1, 0
        %v1153 = vsel %vm752, 1, 0
        %v1154 = vsel %vm753, 1, 0
        %v1155 = vsel %vm754, 1, 0
        %v1156 = vsel %vm755, 1, 0
        %v1157 = vsel %vm756, 1, 0
        %v1158 = vsel %vm757, 1, 0
        %v1159 = vsel %vm758, 1, 0
        %v1160 = vsel %vm759, 1, 0
        %v1161 = vsel %vm760, 1, 0
        %v1162 = vsel %vm761, 1, 0
        %v1163 = vsel %vm762, 1, 0
        %v1164 = vsel %vm763, 1, 0
        %v1165 = vsel %vm764, 1, 0
        %v1166 = vsel %vm765, 1, 0
        %v1167 = vsel %vm766, 1, 0
        %v1168 = vsel %vm767, 1, 0
        %v1169 = vsel %vm768, 1, 0
        %v1170 = vsel %vm769, 1, 0
        %v1171 = vsel %vm770, 1, 0
        %v1172 = vsel %vm771, 1, 0
        %v1173 = vsel %vm772, 1, 0
        %v1174 = vsel %vm773, 1, 0
        %vm1175 = vcmp.eq.s32.totalorder %v1143, 1
        %vm1176 = vcmp.eq.s32.totalorder %v1144, 1
        %vm1177 = vcmp.eq.s32.totalorder %v1145, 1
        %vm1178 = vcmp.eq.s32.totalorder %v1146, 1
        %vm1179 = vcmp.eq.s32.totalorder %v1147, 1
        %vm1180 = vcmp.eq.s32.totalorder %v1148, 1
        %vm1181 = vcmp.eq.s32.totalorder %v1149, 1
        %vm1182 = vcmp.eq.s32.totalorder %v1150, 1
        %vm1183 = vcmp.eq.s32.totalorder %v1151, 1
        %vm1184 = vcmp.eq.s32.totalorder %v1152, 1
        %vm1185 = vcmp.eq.s32.totalorder %v1153, 1
        %vm1186 = vcmp.eq.s32.totalorder %v1154, 1
        %vm1187 = vcmp.eq.s32.totalorder %v1155, 1
        %vm1188 = vcmp.eq.s32.totalorder %v1156, 1
        %vm1189 = vcmp.eq.s32.totalorder %v1157, 1
        %vm1190 = vcmp.eq.s32.totalorder %v1158, 1
        %vm1191 = vcmp.eq.s32.totalorder %v1159, 1
        %vm1192 = vcmp.eq.s32.totalorder %v1160, 1
        %vm1193 = vcmp.eq.s32.totalorder %v1161, 1
        %vm1194 = vcmp.eq.s32.totalorder %v1162, 1
        %vm1195 = vcmp.eq.s32.totalorder %v1163, 1
        %vm1196 = vcmp.eq.s32.totalorder %v1164, 1
        %vm1197 = vcmp.eq.s32.totalorder %v1165, 1
        %vm1198 = vcmp.eq.s32.totalorder %v1166, 1
        %vm1199 = vcmp.eq.s32.totalorder %v1167, 1
        %vm1200 = vcmp.eq.s32.totalorder %v1168, 1
        %vm1201 = vcmp.eq.s32.totalorder %v1169, 1
        %vm1202 = vcmp.eq.s32.totalorder %v1170, 1
        %vm1203 = vcmp.eq.s32.totalorder %v1171, 1
        %vm1204 = vcmp.eq.s32.totalorder %v1172, 1
        %vm1205 = vcmp.eq.s32.totalorder %v1173, 1
        %vm1206 = vcmp.eq.s32.totalorder %v1174, 1
        %v1207 = vsel %vm1175, %v945, 0.0
        %v1208 = vsel %vm1176, %v947, 0.0
        %v1209 = vsel %vm1177, %v949, 0.0
        %v1210 = vsel %vm1178, %v951, 0.0
        %v1211 = vsel %vm1179, %v953, 0.0
        %v1212 = vsel %vm1180, %v955, 0.0
        %v1213 = vsel %vm1181, %v957, 0.0
        %v1214 = vsel %vm1182, %v959, 0.0
        %v1215 = vsel %vm1183, %v961, 0.0
        %v1216 = vsel %vm1184, %v963, 0.0
        %v1217 = vsel %vm1185, %v965, 0.0
        %v1218 = vsel %vm1186, %v967, 0.0
        %v1219 = vsel %vm1187, %v969, 0.0
        %v1220 = vsel %vm1188, %v971, 0.0
        %v1221 = vsel %vm1189, %v973, 0.0
        %v1222 = vsel %vm1190, %v975, 0.0
        %v1223 = vsel %vm1191, %v977, 0.0
        %v1224 = vsel %vm1192, %v979, 0.0
        %v1225 = vsel %vm1193, %v981, 0.0
        %v1226 = vsel %vm1194, %v983, 0.0
        %v1227 = vsel %vm1195, %v985, 0.0
        %v1228 = vsel %vm1196, %v987, 0.0
        %v1229 = vsel %vm1197, %v989, 0.0
        %v1230 = vsel %vm1198, %v991, 0.0
        %v1231 = vsel %vm1199, %v993, 0.0
        %v1232 = vsel %vm1200, %v995, 0.0
        %v1233 = vsel %vm1201, %v997, 0.0
        %v1234 = vsel %vm1202, %v999, 0.0
        %v1235 = vsel %vm1203, %v1001, 0.0
        %v1236 = vsel %vm1204, %v1003, 0.0
        %v1237 = vsel %vm1205, %v1005, 0.0
        %v1238 = vsel %vm1206, %v1007, 0.0
        %v1239 = vsel %vm1079, %v844, 0.0
        %v1240 = vsel %vm1080, %v846, 0.0
        %v1241 = vsel %vm1081, %v848, 0.0
        %v1242 = vsel %vm1082, %v850, 0.0
        %v1243 = vsel %vm1083, %v852, 0.0
        %v1244 = vsel %vm1084, %v854, 0.0
        %v1245 = vsel %vm1085, %v856, 0.0
        %v1246 = vsel %vm1086, %v858, 0.0
        %v1247 = vsel %vm1087, %v860, 0.0
        %v1248 = vsel %vm1088, %v862, 0.0
        %v1249 = vsel %vm1089, %v864, 0.0
        %v1250 = vsel %vm1090, %v866, 0.0
        %v1251 = vsel %vm1091, %v868, 0.0
        %v1252 = vsel %vm1092, %v870, 0.0
        %v1253 = vsel %vm1093, %v872, 0.0
        %v1254 = vsel %vm1094, %v874, 0.0
        %v1255 = vsel %vm1095, %v876, 0.0
        %v1256 = vsel %vm1096, %v878, 0.0
        %v1257 = vsel %vm1097, %v880, 0.0
        %v1258 = vsel %vm1098, %v882, 0.0
        %v1259 = vsel %vm1099, %v884, 0.0
        %v1260 = vsel %vm1100, %v886, 0.0
        %v1261 = vsel %vm1101, %v888, 0.0
        %v1262 = vsel %vm1102, %v890, 0.0
        %v1263 = vsel %vm1103, %v892, 0.0
        %v1264 = vsel %vm1104, %v894, 0.0
        %v1265 = vsel %vm1105, %v896, 0.0
        %v1266 = vsel %vm1106, %v898, 0.0
        %v1267 = vsel %vm1107, %v900, 0.0
        %v1268 = vsel %vm1108, %v902, 0.0
        %v1269 = vsel %vm1109, %v904, 0.0
        %v1270 = vsel %vm1110, %v906, 0.0
        %v1271 = vsel %vm1175, %v949, 0.0
        %v1272 = vsel %vm1176, %v951, 0.0
        %v1273 = vsel %vm1177, %v953, 0.0
        %v1274 = vsel %vm1178, %v955, 0.0
        %v1275 = vsel %vm1179, %v957, 0.0
        %v1276 = vsel %vm1180, %v959, 0.0
        %v1277 = vsel %vm1181, %v961, 0.0
        %v1278 = vsel %vm1182, %v963, 0.0
        %v1279 = vsel %vm1183, %v965, 0.0
        %v1280 = vsel %vm1184, %v967, 0.0
        %v1281 = vsel %vm1185, %v969, 0.0
        %v1282 = vsel %vm1186, %v971, 0.0
        %v1283 = vsel %vm1187, %v973, 0.0
        %v1284 = vsel %vm1188, %v975, 0.0
        %v1285 = vsel %vm1189, %v977, 0.0
        %v1286 = vsel %vm1190, %v979, 0.0
        %v1287 = vsel %vm1191, %v981, 0.0
        %v1288 = vsel %vm1192, %v983, 0.0
        %v1289 = vsel %vm1193, %v985, 0.0
        %v1290 = vsel %vm1194, %v987, 0.0
        %v1291 = vsel %vm1195, %v989, 0.0
        %v1292 = vsel %vm1196, %v991, 0.0
        %v1293 = vsel %vm1197, %v993, 0.0
        %v1294 = vsel %vm1198, %v995, 0.0
        %v1295 = vsel %vm1199, %v997, 0.0
        %v1296 = vsel %vm1200, %v999, 0.0
        %v1297 = vsel %vm1201, %v1001, 0.0
        %v1298 = vsel %vm1202, %v1003, 0.0
        %v1299 = vsel %vm1203, %v1005, 0.0
        %v1300 = vsel %vm1204, %v1007, 0.0
        %v1301 = vsel %vm1205, %v1009, 0.0
        %v1302 = vsel %vm1206, %v1010, 0.0
        %v1303 = vsel %vm1079, %v848, 0.0
        %v1304 = vsel %vm1080, %v850, 0.0
        %v1305 = vsel %vm1081, %v852, 0.0
        %v1306 = vsel %vm1082, %v854, 0.0
        %v1307 = vsel %vm1083, %v856, 0.0
        %v1308 = vsel %vm1084, %v858, 0.0
        %v1309 = vsel %vm1085, %v860, 0.0
        %v1310 = vsel %vm1086, %v862, 0.0
        %v1311 = vsel %vm1087, %v864, 0.0
        %v1312 = vsel %vm1088, %v866, 0.0
        %v1313 = vsel %vm1089, %v868, 0.0
        %v1314 = vsel %vm1090, %v870, 0.0
        %v1315 = vsel %vm1091, %v872, 0.0
        %v1316 = vsel %vm1092, %v874, 0.0
        %v1317 = vsel %vm1093, %v876, 0.0
        %v1318 = vsel %vm1094, %v878, 0.0
        %v1319 = vsel %vm1095, %v880, 0.0
        %v1320 = vsel %vm1096, %v882, 0.0
        %v1321 = vsel %vm1097, %v884, 0.0
        %v1322 = vsel %vm1098, %v886, 0.0
        %v1323 = vsel %vm1099, %v888, 0.0
        %v1324 = vsel %vm1100, %v890, 0.0
        %v1325 = vsel %vm1101, %v892, 0.0
        %v1326 = vsel %vm1102, %v894, 0.0
        %v1327 = vsel %vm1103, %v896, 0.0
        %v1328 = vsel %vm1104, %v898, 0.0
        %v1329 = vsel %vm1105, %v900, 0.0
        %v1330 = vsel %vm1106, %v902, 0.0
        %v1331 = vsel %vm1107, %v904, 0.0
        %v1332 = vsel %vm1108, %v906, 0.0
        %v1333 = vsel %vm1109, %v907, 0.0
        %v1334 = vsel %vm1110, %v842, 0.0
        %v1335 = vsel %vm1175, %v953, 0.0
        %v1336 = vsel %vm1176, %v955, 0.0
        %v1337 = vsel %vm1177, %v957, 0.0
        %v1338 = vsel %vm1178, %v959, 0.0
        %v1339 = vsel %vm1179, %v961, 0.0
        %v1340 = vsel %vm1180, %v963, 0.0
        %v1341 = vsel %vm1181, %v965, 0.0
        %v1342 = vsel %vm1182, %v967, 0.0
        %v1343 = vsel %vm1183, %v969, 0.0
        %v1344 = vsel %vm1184, %v971, 0.0
        %v1345 = vsel %vm1185, %v973, 0.0
        %v1346 = vsel %vm1186, %v975, 0.0
        %v1347 = vsel %vm1187, %v977, 0.0
        %v1348 = vsel %vm1188, %v979, 0.0
        %v1349 = vsel %vm1189, %v981, 0.0
        %v1350 = vsel %vm1190, %v983, 0.0
        %v1351 = vsel %vm1191, %v985, 0.0
        %v1352 = vsel %vm1192, %v987, 0.0
        %v1353 = vsel %vm1193, %v989, 0.0
        %v1354 = vsel %vm1194, %v991, 0.0
        %v1355 = vsel %vm1195, %v993, 0.0
        %v1356 = vsel %vm1196, %v995, 0.0
        %v1357 = vsel %vm1197, %v997, 0.0
        %v1358 = vsel %vm1198, %v999, 0.0
        %v1359 = vsel %vm1199, %v1001, 0.0
        %v1360 = vsel %vm1200, %v1003, 0.0
        %v1361 = vsel %vm1201, %v1005, 0.0
        %v1362 = vsel %vm1202, %v1007, 0.0
        %v1363 = vsel %vm1203, %v1009, 0.0
        %v1364 = vsel %vm1204, %v1010, 0.0
        %v1365 = vsel %vm1205, %v945, 0.0
        %v1366 = vsel %vm1206, %v1046, 0.0
        %v1367 = vld [vmem:[#allocation5] sm:$0xff]
        %v1368 = vld [vmem:[#allocation5 + $0x8] sm:$0xff]
        %v1369 = vld [vmem:[#allocation5 + $0x10] sm:$0xff]
        %v1370 = vld [vmem:[#allocation5 + $0x18] sm:$0xff]
        %v1371 = vld [vmem:[#allocation5 + $0x20] sm:$0xff]
        %v1372 = vld [vmem:[#allocation5 + $0x28] sm:$0xff]
        %v1373 = vld [vmem:[#allocation5 + $0x30] sm:$0xff]
        %v1374 = vld [vmem:[#allocation5 + $0x38] sm:$0xff]
        %v1375 = vld [vmem:[#allocation5 + $0x40] sm:$0xff]
        %v1376 = vld [vmem:[#allocation5 + $0x48] sm:$0xff]
        %v1377 = vld [vmem:[#allocation5 + $0x50] sm:$0xff]
        %v1378 = vld [vmem:[#allocation5 + $0x58] sm:$0xff]
        %v1379 = vld [vmem:[#allocation5 + $0x60] sm:$0xff]
        %v1380 = vld [vmem:[#allocation5 + $0x68] sm:$0xff]
        %v1381 = vld [vmem:[#allocation5 + $0x70] sm:$0xff]
        %v1382 = vld [vmem:[#allocation5 + $0x78] sm:$0xff]
        %v1383 = vld [vmem:[#allocation5 + $0x80] sm:$0xff]
        %v1384 = vld [vmem:[#allocation5 + $0x88] sm:$0xff]
        %v1385 = vld [vmem:[#allocation5 + $0x90] sm:$0xff]
        %v1386 = vld [vmem:[#allocation5 + $0x98] sm:$0xff]
        %v1387 = vld [vmem:[#allocation5 + $0xa0] sm:$0xff]
        %v1388 = vld [vmem:[#allocation5 + $0xa8] sm:$0xff]
        %v1389 = vld [vmem:[#allocation5 + $0xb0] sm:$0xff]
        %v1390 = vld [vmem:[#allocation5 + $0xb8] sm:$0xff]
        %v1391 = vld [vmem:[#allocation5 + $0xc0] sm:$0xff]
        %v1392 = vld [vmem:[#allocation5 + $0xc8] sm:$0xff]
        %v1393 = vld [vmem:[#allocation5 + $0xd0] sm:$0xff]
        %v1394 = vld [vmem:[#allocation5 + $0xd8] sm:$0xff]
        %v1395 = vld [vmem:[#allocation5 + $0xe0] sm:$0xff]
        %v1396 = vld [vmem:[#allocation5 + $0xe8] sm:$0xff]
        %v1397 = vld [vmem:[#allocation5 + $0xf0] sm:$0xff]
        %v1398 = vld [vmem:[#allocation5 + $0xf8] sm:$0xff]
        %v1399 = vld [vmem:[#allocation5 + $0x100] sm:$0xff]
        %v1400 = vld [vmem:[#allocation5 + $0x108] sm:$0xff]
        %v1401 = vld [vmem:[#allocation5 + $0x110] sm:$0xff]
        %v1402 = vld [vmem:[#allocation5 + $0x118] sm:$0xff]
        %v1403 = vld [vmem:[#allocation5 + $0x120] sm:$0xff]
        %v1404 = vld [vmem:[#allocation5 + $0x128] sm:$0xff]
        %v1405 = vld [vmem:[#allocation5 + $0x130] sm:$0xff]
        %v1406 = vld [vmem:[#allocation5 + $0x138] sm:$0xff]
        %v1407 = vld [vmem:[#allocation5 + $0x140] sm:$0xff]
        %v1408 = vld [vmem:[#allocation5 + $0x148] sm:$0xff]
        %v1409 = vld [vmem:[#allocation5 + $0x150] sm:$0xff]
        %v1410 = vld [vmem:[#allocation5 + $0x158] sm:$0xff]
        %v1411 = vld [vmem:[#allocation5 + $0x160] sm:$0xff]
        %v1412 = vld [vmem:[#allocation5 + $0x168] sm:$0xff]
        %v1413 = vld [vmem:[#allocation5 + $0x170] sm:$0xff]
        %v1414 = vld [vmem:[#allocation5 + $0x178] sm:$0xff]
        %v1415 = vld [vmem:[#allocation5 + $0x180] sm:$0xff]
        %v1416 = vld [vmem:[#allocation5 + $0x188] sm:$0xff]
        %v1417 = vld [vmem:[#allocation5 + $0x190] sm:$0xff]
        %v1418 = vld [vmem:[#allocation5 + $0x198] sm:$0xff]
        %v1419 = vld [vmem:[#allocation5 + $0x1a0] sm:$0xff]
        %v1420 = vld [vmem:[#allocation5 + $0x1a8] sm:$0xff]
        %v1421 = vld [vmem:[#allocation5 + $0x1b0] sm:$0xff]
        %v1422 = vld [vmem:[#allocation5 + $0x1b8] sm:$0xff]
        %v1423 = vld [vmem:[#allocation5 + $0x1c0] sm:$0xff]
        %v1424 = vld [vmem:[#allocation5 + $0x1c8] sm:$0xff]
        %v1425 = vld [vmem:[#allocation5 + $0x1d0] sm:$0xff]
        %v1426 = vld [vmem:[#allocation5 + $0x1d8] sm:$0xff]
        %v1427 = vld [vmem:[#allocation5 + $0x1e0] sm:$0xff]
        %v1428 = vld [vmem:[#allocation5 + $0x1e8] sm:$0xff]
        %v1429 = vld [vmem:[#allocation5 + $0x1f0] sm:$0xff]
        %v1430 = vld [vmem:[#allocation5 + $0x1f8] sm:$0xff]
        %v1431 = vld [vmem:[#allocation5 + $0x200] sm:$0xff]
        %v1432 = vld [vmem:[#allocation5 + $0x208] sm:$0xff]
        %v1433 = vld [vmem:[#allocation5 + $0x210] sm:$0xff]
        %v1434 = vld [vmem:[#allocation5 + $0x218] sm:$0xff]
        %v1435 = vld [vmem:[#allocation5 + $0x220] sm:$0xff]
        %v1436 = vld [vmem:[#allocation5 + $0x228] sm:$0xff]
        %v1437 = vld [vmem:[#allocation5 + $0x230] sm:$0xff]
        %v1438 = vld [vmem:[#allocation5 + $0x238] sm:$0xff]
        %v1439 = vld [vmem:[#allocation5 + $0x240] sm:$0xff]
        %v1440 = vld [vmem:[#allocation5 + $0x248] sm:$0xff]
        %v1441 = vld [vmem:[#allocation5 + $0x250] sm:$0xff]
        %v1442 = vld [vmem:[#allocation5 + $0x258] sm:$0xff]
        %v1443 = vld [vmem:[#allocation5 + $0x260] sm:$0xff]
        %v1444 = vld [vmem:[#allocation5 + $0x268] sm:$0xff]
        %v1445 = vld [vmem:[#allocation5 + $0x270] sm:$0xff]
        %v1446 = vld [vmem:[#allocation5 + $0x278] sm:$0xff]
        %v1447 = vld [vmem:[#allocation5 + $0x280] sm:$0xff]
        %v1448 = vld [vmem:[#allocation5 + $0x288] sm:$0xff]
        %v1449 = vld [vmem:[#allocation5 + $0x290] sm:$0xff]
        %v1450 = vld [vmem:[#allocation5 + $0x298] sm:$0xff]
        %v1451 = vld [vmem:[#allocation5 + $0x2a0] sm:$0xff]
        %v1452 = vld [vmem:[#allocation5 + $0x2a8] sm:$0xff]
        %v1453 = vld [vmem:[#allocation5 + $0x2b0] sm:$0xff]
        %v1454 = vld [vmem:[#allocation5 + $0x2b8] sm:$0xff]
        %v1455 = vld [vmem:[#allocation5 + $0x2c0] sm:$0xff]
        %v1456 = vld [vmem:[#allocation5 + $0x2c8] sm:$0xff]
        %v1457 = vld [vmem:[#allocation5 + $0x2d0] sm:$0xff]
        %v1458 = vld [vmem:[#allocation5 + $0x2d8] sm:$0xff]
        %v1459 = vld [vmem:[#allocation5 + $0x2e0] sm:$0xff]
        %v1460 = vld [vmem:[#allocation5 + $0x2e8] sm:$0xff]
        %v1461 = vld [vmem:[#allocation5 + $0x2f0] sm:$0xff]
        %v1462 = vld [vmem:[#allocation5 + $0x2f8] sm:$0xff]
        %v1463 = vld [vmem:[#allocation5 + $0x300] sm:$0xff]
        %v1464 = vld [vmem:[#allocation5 + $0x308] sm:$0xff]
        %v1465 = vld [vmem:[#allocation5 + $0x310] sm:$0xff]
        %v1466 = vld [vmem:[#allocation5 + $0x318] sm:$0xff]
        %v1467 = vld [vmem:[#allocation5 + $0x320] sm:$0xff]
        %v1468 = vld [vmem:[#allocation5 + $0x328] sm:$0xff]
        %v1469 = vld [vmem:[#allocation5 + $0x330] sm:$0xff]
        %v1470 = vld [vmem:[#allocation5 + $0x338] sm:$0xff]
        %v1471 = vld [vmem:[#allocation5 + $0x340] sm:$0xff]
        %v1472 = vld [vmem:[#allocation5 + $0x348] sm:$0xff]
        %v1473 = vld [vmem:[#allocation5 + $0x350] sm:$0xff]
        %v1474 = vld [vmem:[#allocation5 + $0x358] sm:$0xff]
        %v1475 = vld [vmem:[#allocation5 + $0x360] sm:$0xff]
        %v1476 = vld [vmem:[#allocation5 + $0x368] sm:$0xff]
        %v1477 = vld [vmem:[#allocation5 + $0x370] sm:$0xff]
        %v1478 = vld [vmem:[#allocation5 + $0x378] sm:$0xff]
        %v1479 = vld [vmem:[#allocation5 + $0x380] sm:$0xff]
        %v1480 = vld [vmem:[#allocation5 + $0x388] sm:$0xff]
        %v1481 = vld [vmem:[#allocation5 + $0x390] sm:$0xff]
        %v1482 = vld [vmem:[#allocation5 + $0x398] sm:$0xff]
        %v1483 = vld [vmem:[#allocation5 + $0x3a0] sm:$0xff]
        %v1484 = vld [vmem:[#allocation5 + $0x3a8] sm:$0xff]
        %v1485 = vld [vmem:[#allocation5 + $0x3b0] sm:$0xff]
        %v1486 = vld [vmem:[#allocation5 + $0x3b8] sm:$0xff]
        %v1487 = vld [vmem:[#allocation5 + $0x3c0] sm:$0xff]
        %v1488 = vld [vmem:[#allocation5 + $0x3c8] sm:$0xff]
        %v1489 = vld [vmem:[#allocation5 + $0x3d0] sm:$0xff]
        %v1490 = vld [vmem:[#allocation5 + $0x3d8] sm:$0xff]
        %v1491 = vld [vmem:[#allocation5 + $0x3e0] sm:$0xff]
        %v1492 = vld [vmem:[#allocation5 + $0x3e8] sm:$0xff]
        %v1493 = vld [vmem:[#allocation5 + $0x3f0] sm:$0xff]
        %v1494 = vld [vmem:[#allocation5 + $0x3f8] sm:$0xff]
        %v1495 = vld [vmem:[#allocation5 + $0x400] sm:$0xff]
        %v1496 = vld [vmem:[#allocation5 + $0x408] sm:$0xff]
        %v1497 = vld [vmem:[#allocation5 + $0x410] sm:$0xff]
        %v1498 = vld [vmem:[#allocation5 + $0x418] sm:$0xff]
        %v1499 = vld [vmem:[#allocation5 + $0x420] sm:$0xff]
        %v1500 = vld [vmem:[#allocation5 + $0x428] sm:$0xff]
        %v1501 = vld [vmem:[#allocation5 + $0x430] sm:$0xff]
        %v1502 = vld [vmem:[#allocation5 + $0x438] sm:$0xff]
        %v1503 = vld [vmem:[#allocation5 + $0x440] sm:$0xff]
        %v1504 = vld [vmem:[#allocation5 + $0x448] sm:$0xff]
        %v1505 = vld [vmem:[#allocation5 + $0x450] sm:$0xff]
        %v1506 = vld [vmem:[#allocation5 + $0x458] sm:$0xff]
        %v1507 = vld [vmem:[#allocation5 + $0x460] sm:$0xff]
        %v1508 = vld [vmem:[#allocation5 + $0x468] sm:$0xff]
        %v1509 = vld [vmem:[#allocation5 + $0x470] sm:$0xff]
        %v1510 = vld [vmem:[#allocation5 + $0x478] sm:$0xff]
        %1511 = vmatpush.msra.mxu0 %v1382
        %1512 = vmatpush.msra.mxu0 %v1381
        %1513 = vmatpush.msra.mxu0 %v1380
        %1514 = vmatpush.msra.mxu0 %v1379
        %1515 = vmatpush.msra.mxu0 %v1378
        %1516 = vmatpush.msra.mxu0 %v1377
        %1517 = vmatpush.msra.mxu0 %v1376
        %1518 = vmatpush.msra.mxu0 %v1375
        %1519 = vmatpush.msra.mxu0 %v1374
        %1520 = vmatpush.msra.mxu0 %v1373
        %1521 = vmatpush.msra.mxu0 %v1372
        %1522 = vmatpush.msra.mxu0 %v1371
        %1523 = vmatpush.msra.mxu0 %v1370
        %1524 = vmatpush.msra.mxu0 %v1369
        %1525 = vmatpush.msra.mxu0 %v1368
        %1526 = vmatpush.msra.mxu0 %v1367
        %1527 = vmatmul.f32.gmra.mxu0 %v1111
        %v1528 = vpop.f32.mrf.mxu0
        %v1529 = vadd.f32 0.0, %v1528
        %1530 = vmatmul.f32.gmra.mxu0 %v1112
        %v1531 = vpop.f32.mrf.mxu0
        %v1532 = vadd.f32 0.0, %v1531
        %1533 = vmatmul.f32.gmra.mxu0 %v1113
        %v1534 = vpop.f32.mrf.mxu0
        %v1535 = vadd.f32 0.0, %v1534
        %1536 = vmatmul.f32.gmra.mxu0 %v1114
        %v1537 = vpop.f32.mrf.mxu0
        %v1538 = vadd.f32 0.0, %v1537
        %1539 = vmatmul.f32.gmra.mxu0 %v1115
        %v1540 = vpop.f32.mrf.mxu0
        %v1541 = vadd.f32 0.0, %v1540
        %1542 = vmatmul.f32.gmra.mxu0 %v1116
        %v1543 = vpop.f32.mrf.mxu0
        %v1544 = vadd.f32 0.0, %v1543
        %1545 = vmatmul.f32.gmra.mxu0 %v1117
        %v1546 = vpop.f32.mrf.mxu0
        %v1547 = vadd.f32 0.0, %v1546
        %1548 = vmatmul.f32.gmra.mxu0 %v1118
        %v1549 = vpop.f32.mrf.mxu0
        %v1550 = vadd.f32 0.0, %v1549
        %1551 = vmatmul.f32.gmra.mxu0 %v1119
        %v1552 = vpop.f32.mrf.mxu0
        %v1553 = vadd.f32 0.0, %v1552
        %1554 = vmatmul.f32.gmra.mxu0 %v1120
        %v1555 = vpop.f32.mrf.mxu0
        %v1556 = vadd.f32 0.0, %v1555
        %1557 = vmatmul.f32.gmra.mxu0 %v1121
        %v1558 = vpop.f32.mrf.mxu0
        %v1559 = vadd.f32 0.0, %v1558
        %1560 = vmatmul.f32.gmra.mxu0 %v1122
        %v1561 = vpop.f32.mrf.mxu0
        %v1562 = vadd.f32 0.0, %v1561
        %1563 = vmatmul.f32.gmra.mxu0 %v1123
        %v1564 = vpop.f32.mrf.mxu0
        %v1565 = vadd.f32 0.0, %v1564
        %1566 = vmatmul.f32.gmra.mxu0 %v1124
        %v1567 = vpop.f32.mrf.mxu0
        %v1568 = vadd.f32 0.0, %v1567
        %1569 = vmatmul.f32.gmra.mxu0 %v1125
        %v1570 = vpop.f32.mrf.mxu0
        %v1571 = vadd.f32 0.0, %v1570
        %1572 = vmatmul.f32.gmra.mxu0 %v1126
        %v1573 = vpop.f32.mrf.mxu0
        %v1574 = vadd.f32 0.0, %v1573
        %1575 = vmatmul.f32.gmra.mxu0 %v1127
        %v1576 = vpop.f32.mrf.mxu0
        %v1577 = vadd.f32 0.0, %v1576
        %1578 = vmatmul.f32.gmra.mxu0 %v1128
        %v1579 = vpop.f32.mrf.mxu0
        %v1580 = vadd.f32 0.0, %v1579
        %1581 = vmatmul.f32.gmra.mxu0 %v1129
        %v1582 = vpop.f32.mrf.mxu0
        %v1583 = vadd.f32 0.0, %v1582
        %1584 = vmatmul.f32.gmra.mxu0 %v1130
        %v1585 = vpop.f32.mrf.mxu0
        %v1586 = vadd.f32 0.0, %v1585
        %1587 = vmatmul.f32.gmra.mxu0 %v1131
        %v1588 = vpop.f32.mrf.mxu0
        %v1589 = vadd.f32 0.0, %v1588
        %1590 = vmatmul.f32.gmra.mxu0 %v1132
        %v1591 = vpop.f32.mrf.mxu0
        %v1592 = vadd.f32 0.0, %v1591
        %1593 = vmatmul.f32.gmra.mxu0 %v1133
        %v1594 = vpop.f32.mrf.mxu0
        %v1595 = vadd.f32 0.0, %v1594
        %1596 = vmatmul.f32.gmra.mxu0 %v1134
        %v1597 = vpop.f32.mrf.mxu0
        %v1598 = vadd.f32 0.0, %v1597
        %1599 = vmatmul.f32.gmra.mxu0 %v1135
        %v1600 = vpop.f32.mrf.mxu0
        %v1601 = vadd.f32 0.0, %v1600
        %1602 = vmatmul.f32.gmra.mxu0 %v1136
        %v1603 = vpop.f32.mrf.mxu0
        %v1604 = vadd.f32 0.0, %v1603
        %1605 = vmatmul.f32.gmra.mxu0 %v1137
        %v1606 = vpop.f32.mrf.mxu0
        %v1607 = vadd.f32 0.0, %v1606
        %1608 = vmatmul.f32.gmra.mxu0 %v1138
        %v1609 = vpop.f32.mrf.mxu0
        %v1610 = vadd.f32 0.0, %v1609
        %1611 = vmatmul.f32.gmra.mxu0 %v1139
        %v1612 = vpop.f32.mrf.mxu0
        %v1613 = vadd.f32 0.0, %v1612
        %1614 = vmatmul.f32.gmra.mxu0 %v1140
        %v1615 = vpop.f32.mrf.mxu0
        %v1616 = vadd.f32 0.0, %v1615
        %1617 = vmatmul.f32.gmra.mxu0 %v1141
        %v1618 = vpop.f32.mrf.mxu0
        %v1619 = vadd.f32 0.0, %v1618
        %1620 = vmatmul.f32.gmra.mxu0 %v1142
        %v1621 = vpop.f32.mrf.mxu0
        %v1622 = vadd.f32 0.0, %v1621
        %1623 = vdwg.mxu0
        %1624 = vmatpush.msra.mxu0 %v1398
        %1625 = vmatpush.msra.mxu0 %v1397
        %1626 = vmatpush.msra.mxu0 %v1396
        %1627 = vmatpush.msra.mxu0 %v1395
        %1628 = vmatpush.msra.mxu0 %v1394
        %1629 = vmatpush.msra.mxu0 %v1393
        %1630 = vmatpush.msra.mxu0 %v1392
        %1631 = vmatpush.msra.mxu0 %v1391
        %1632 = vmatpush.msra.mxu0 %v1390
        %1633 = vmatpush.msra.mxu0 %v1389
        %1634 = vmatpush.msra.mxu0 %v1388
        %1635 = vmatpush.msra.mxu0 %v1387
        %1636 = vmatpush.msra.mxu0 %v1386
        %1637 = vmatpush.msra.mxu0 %v1385
        %1638 = vmatpush.msra.mxu0 %v1384
        %1639 = vmatpush.msra.mxu0 %v1383
        %1640 = vmatmul.f32.gmra.mxu0 0.0
        %v1641 = vpop.f32.mrf.mxu0
        %v1642 = vadd.f32 %v1529, %v1641
        %1643 = vmatmul.f32.gmra.mxu0 0.0
        %v1644 = vpop.f32.mrf.mxu0
        %v1645 = vadd.f32 %v1532, %v1644
        %1646 = vmatmul.f32.gmra.mxu0 %v774
        %v1647 = vpop.f32.mrf.mxu0
        %v1648 = vadd.f32 %v1535, %v1647
        %1649 = vmatmul.f32.gmra.mxu0 %v775
        %v1650 = vpop.f32.mrf.mxu0
        %v1651 = vadd.f32 %v1538, %v1650
        %1652 = vmatmul.f32.gmra.mxu0 %v776
        %v1653 = vpop.f32.mrf.mxu0
        %v1654 = vadd.f32 %v1541, %v1653
        %1655 = vmatmul.f32.gmra.mxu0 %v777
        %v1656 = vpop.f32.mrf.mxu0
        %v1657 = vadd.f32 %v1544, %v1656
        %1658 = vmatmul.f32.gmra.mxu0 %v778
        %v1659 = vpop.f32.mrf.mxu0
        %v1660 = vadd.f32 %v1547, %v1659
        %1661 = vmatmul.f32.gmra.mxu0 %v779
        %v1662 = vpop.f32.mrf.mxu0
        %v1663 = vadd.f32 %v1550, %v1662
        %1664 = vmatmul.f32.gmra.mxu0 %v780
        %v1665 = vpop.f32.mrf.mxu0
        %v1666 = vadd.f32 %v1553, %v1665
        %1667 = vmatmul.f32.gmra.mxu0 %v781
        %v1668 = vpop.f32.mrf.mxu0
        %v1669 = vadd.f32 %v1556, %v1668
        %1670 = vmatmul.f32.gmra.mxu0 %v782
        %v1671 = vpop.f32.mrf.mxu0
        %v1672 = vadd.f32 %v1559, %v1671
        %1673 = vmatmul.f32.gmra.mxu0 %v783
        %v1674 = vpop.f32.mrf.mxu0
        %v1675 = vadd.f32 %v1562, %v1674
        %1676 = vmatmul.f32.gmra.mxu0 %v784
        %v1677 = vpop.f32.mrf.mxu0
        %v1678 = vadd.f32 %v1565, %v1677
        %1679 = vmatmul.f32.gmra.mxu0 %v785
        %v1680 = vpop.f32.mrf.mxu0
        %v1681 = vadd.f32 %v1568, %v1680
        %1682 = vmatmul.f32.gmra.mxu0 %v786
        %v1683 = vpop.f32.mrf.mxu0
        %v1684 = vadd.f32 %v1571, %v1683
        %1685 = vmatmul.f32.gmra.mxu0 %v787
        %v1686 = vpop.f32.mrf.mxu0
        %v1687 = vadd.f32 %v1574, %v1686
        %1688 = vmatmul.f32.gmra.mxu0 %v788
        %v1689 = vpop.f32.mrf.mxu0
        %v1690 = vadd.f32 %v1577, %v1689
        %1691 = vmatmul.f32.gmra.mxu0 %v789
        %v1692 = vpop.f32.mrf.mxu0
        %v1693 = vadd.f32 %v1580, %v1692
        %1694 = vmatmul.f32.gmra.mxu0 %v790
        %v1695 = vpop.f32.mrf.mxu0
        %v1696 = vadd.f32 %v1583, %v1695
        %1697 = vmatmul.f32.gmra.mxu0 %v791
        %v1698 = vpop.f32.mrf.mxu0
        %v1699 = vadd.f32 %v1586, %v1698
        %1700 = vmatmul.f32.gmra.mxu0 %v792
        %v1701 = vpop.f32.mrf.mxu0
        %v1702 = vadd.f32 %v1589, %v1701
        %1703 = vmatmul.f32.gmra.mxu0 %v793
        %v1704 = vpop.f32.mrf.mxu0
        %v1705 = vadd.f32 %v1592, %v1704
        %1706 = vmatmul.f32.gmra.mxu0 %v794
        %v1707 = vpop.f32.mrf.mxu0
        %v1708 = vadd.f32 %v1595, %v1707
        %1709 = vmatmul.f32.gmra.mxu0 %v795
        %v1710 = vpop.f32.mrf.mxu0
        %v1711 = vadd.f32 %v1598, %v1710
        %1712 = vmatmul.f32.gmra.mxu0 %v796
        %v1713 = vpop.f32.mrf.mxu0
        %v1714 = vadd.f32 %v1601, %v1713
        %1715 = vmatmul.f32.gmra.mxu0 %v797
        %v1716 = vpop.f32.mrf.mxu0
        %v1717 = vadd.f32 %v1604, %v1716
        %1718 = vmatmul.f32.gmra.mxu0 %v798
        %v1719 = vpop.f32.mrf.mxu0
        %v1720 = vadd.f32 %v1607, %v1719
        %1721 = vmatmul.f32.gmra.mxu0 %v799
        %v1722 = vpop.f32.mrf.mxu0
        %v1723 = vadd.f32 %v1610, %v1722
        %1724 = vmatmul.f32.gmra.mxu0 %v800
        %v1725 = vpop.f32.mrf.mxu0
        %v1726 = vadd.f32 %v1613, %v1725
        %1727 = vmatmul.f32.gmra.mxu0 %v801
        %v1728 = vpop.f32.mrf.mxu0
        %v1729 = vadd.f32 %v1616, %v1728
        %1730 = vmatmul.f32.gmra.mxu0 %v802
        %v1731 = vpop.f32.mrf.mxu0
        %v1732 = vadd.f32 %v1619, %v1731
        %1733 = vmatmul.f32.gmra.mxu0 %v803
        %v1734 = vpop.f32.mrf.mxu0
        %v1735 = vadd.f32 %v1622, %v1734
        %1736 = vdwg.mxu0
        %1737 = vmatpush.msra.mxu0 %v1414
        %1738 = vmatpush.msra.mxu0 %v1413
        %1739 = vmatpush.msra.mxu0 %v1412
        %1740 = vmatpush.msra.mxu0 %v1411
        %1741 = vmatpush.msra.mxu0 %v1410
        %1742 = vmatpush.msra.mxu0 %v1409
        %1743 = vmatpush.msra.mxu0 %v1408
        %1744 = vmatpush.msra.mxu0 %v1407
        %1745 = vmatpush.msra.mxu0 %v1406
        %1746 = vmatpush.msra.mxu0 %v1405
        %1747 = vmatpush.msra.mxu0 %v1404
        %1748 = vmatpush.msra.mxu0 %v1403
        %1749 = vmatpush.msra.mxu0 %v1402
        %1750 = vmatpush.msra.mxu0 %v1401
        %1751 = vmatpush.msra.mxu0 %v1400
        %1752 = vmatpush.msra.mxu0 %v1399
        %1753 = vmatmul.f32.gmra.mxu0 %v1207
        %v1754 = vpop.f32.mrf.mxu0
        %v1755 = vadd.f32 %v1642, %v1754
        %1756 = vmatmul.f32.gmra.mxu0 %v1208
        %v1757 = vpop.f32.mrf.mxu0
        %v1758 = vadd.f32 %v1645, %v1757
        %1759 = vmatmul.f32.gmra.mxu0 %v1209
        %v1760 = vpop.f32.mrf.mxu0
        %v1761 = vadd.f32 %v1648, %v1760
        %1762 = vmatmul.f32.gmra.mxu0 %v1210
        %v1763 = vpop.f32.mrf.mxu0
        %v1764 = vadd.f32 %v1651, %v1763
        %1765 = vmatmul.f32.gmra.mxu0 %v1211
        %v1766 = vpop.f32.mrf.mxu0
        %v1767 = vadd.f32 %v1654, %v1766
        %1768 = vmatmul.f32.gmra.mxu0 %v1212
        %v1769 = vpop.f32.mrf.mxu0
        %v1770 = vadd.f32 %v1657, %v1769
        %1771 = vmatmul.f32.gmra.mxu0 %v1213
        %v1772 = vpop.f32.mrf.mxu0
        %v1773 = vadd.f32 %v1660, %v1772
        %1774 = vmatmul.f32.gmra.mxu0 %v1214
        %v1775 = vpop.f32.mrf.mxu0
        %v1776 = vadd.f32 %v1663, %v1775
        %1777 = vmatmul.f32.gmra.mxu0 %v1215
        %v1778 = vpop.f32.mrf.mxu0
        %v1779 = vadd.f32 %v1666, %v1778
        %1780 = vmatmul.f32.gmra.mxu0 %v1216
        %v1781 = vpop.f32.mrf.mxu0
        %v1782 = vadd.f32 %v1669, %v1781
        %1783 = vmatmul.f32.gmra.mxu0 %v1217
        %v1784 = vpop.f32.mrf.mxu0
        %v1785 = vadd.f32 %v1672, %v1784
        %1786 = vmatmul.f32.gmra.mxu0 %v1218
        %v1787 = vpop.f32.mrf.mxu0
        %v1788 = vadd.f32 %v1675, %v1787
        %1789 = vmatmul.f32.gmra.mxu0 %v1219
        %v1790 = vpop.f32.mrf.mxu0
        %v1791 = vadd.f32 %v1678, %v1790
        %1792 = vmatmul.f32.gmra.mxu0 %v1220
        %v1793 = vpop.f32.mrf.mxu0
        %v1794 = vadd.f32 %v1681, %v1793
        %1795 = vmatmul.f32.gmra.mxu0 %v1221
        %v1796 = vpop.f32.mrf.mxu0
        %v1797 = vadd.f32 %v1684, %v1796
        %1798 = vmatmul.f32.gmra.mxu0 %v1222
        %v1799 = vpop.f32.mrf.mxu0
        %v1800 = vadd.f32 %v1687, %v1799
        %1801 = vmatmul.f32.gmra.mxu0 %v1223
        %v1802 = vpop.f32.mrf.mxu0
        %v1803 = vadd.f32 %v1690, %v1802
        %1804 = vmatmul.f32.gmra.mxu0 %v1224
        %v1805 = vpop.f32.mrf.mxu0
        %v1806 = vadd.f32 %v1693, %v1805
        %1807 = vmatmul.f32.gmra.mxu0 %v1225
        %v1808 = vpop.f32.mrf.mxu0
        %v1809 = vadd.f32 %v1696, %v1808
        %1810 = vmatmul.f32.gmra.mxu0 %v1226
        %v1811 = vpop.f32.mrf.mxu0
        %v1812 = vadd.f32 %v1699, %v1811
        %1813 = vmatmul.f32.gmra.mxu0 %v1227
        %v1814 = vpop.f32.mrf.mxu0
        %v1815 = vadd.f32 %v1702, %v1814
        %1816 = vmatmul.f32.gmra.mxu0 %v1228
        %v1817 = vpop.f32.mrf.mxu0
        %v1818 = vadd.f32 %v1705, %v1817
        %1819 = vmatmul.f32.gmra.mxu0 %v1229
        %v1820 = vpop.f32.mrf.mxu0
        %v1821 = vadd.f32 %v1708, %v1820
        %1822 = vmatmul.f32.gmra.mxu0 %v1230
        %v1823 = vpop.f32.mrf.mxu0
        %v1824 = vadd.f32 %v1711, %v1823
        %1825 = vmatmul.f32.gmra.mxu0 %v1231
        %v1826 = vpop.f32.mrf.mxu0
        %v1827 = vadd.f32 %v1714, %v1826
        %1828 = vmatmul.f32.gmra.mxu0 %v1232
        %v1829 = vpop.f32.mrf.mxu0
        %v1830 = vadd.f32 %v1717, %v1829
        %1831 = vmatmul.f32.gmra.mxu0 %v1233
        %v1832 = vpop.f32.mrf.mxu0
        %v1833 = vadd.f32 %v1720, %v1832
        %1834 = vmatmul.f32.gmra.mxu0 %v1234
        %v1835 = vpop.f32.mrf.mxu0
        %v1836 = vadd.f32 %v1723, %v1835
        %1837 = vmatmul.f32.gmra.mxu0 %v1235
        %v1838 = vpop.f32.mrf.mxu0
        %v1839 = vadd.f32 %v1726, %v1838
        %1840 = vmatmul.f32.gmra.mxu0 %v1236
        %v1841 = vpop.f32.mrf.mxu0
        %v1842 = vadd.f32 %v1729, %v1841
        %1843 = vmatmul.f32.gmra.mxu0 %v1237
        %v1844 = vpop.f32.mrf.mxu0
        %v1845 = vadd.f32 %v1732, %v1844
        %1846 = vmatmul.f32.gmra.mxu0 %v1238
        %v1847 = vpop.f32.mrf.mxu0
        %v1848 = vadd.f32 %v1735, %v1847
        %1849 = vdwg.mxu0
        %1850 = vmatpush.msra.mxu0 %v1430
        %1851 = vmatpush.msra.mxu0 %v1429
        %1852 = vmatpush.msra.mxu0 %v1428
        %1853 = vmatpush.msra.mxu0 %v1427
        %1854 = vmatpush.msra.mxu0 %v1426
        %1855 = vmatpush.msra.mxu0 %v1425
        %1856 = vmatpush.msra.mxu0 %v1424
        %1857 = vmatpush.msra.mxu0 %v1423
        %1858 = vmatpush.msra.mxu0 %v1422
        %1859 = vmatpush.msra.mxu0 %v1421
        %1860 = vmatpush.msra.mxu0 %v1420
        %1861 = vmatpush.msra.mxu0 %v1419
        %1862 = vmatpush.msra.mxu0 %v1418
        %1863 = vmatpush.msra.mxu0 %v1417
        %1864 = vmatpush.msra.mxu0 %v1416
        %1865 = vmatpush.msra.mxu0 %v1415
        %1866 = vmatmul.f32.gmra.mxu0 %v1239
        %v1867 = vpop.f32.mrf.mxu0
        %v1868 = vadd.f32 %v1755, %v1867
        %1869 = vmatmul.f32.gmra.mxu0 %v1240
        %v1870 = vpop.f32.mrf.mxu0
        %v1871 = vadd.f32 %v1758, %v1870
        %1872 = vmatmul.f32.gmra.mxu0 %v1241
        %v1873 = vpop.f32.mrf.mxu0
        %v1874 = vadd.f32 %v1761, %v1873
        %1875 = vmatmul.f32.gmra.mxu0 %v1242
        %v1876 = vpop.f32.mrf.mxu0
        %v1877 = vadd.f32 %v1764, %v1876
        %1878 = vmatmul.f32.gmra.mxu0 %v1243
        %v1879 = vpop.f32.mrf.mxu0
        %v1880 = vadd.f32 %v1767, %v1879
        %1881 = vmatmul.f32.gmra.mxu0 %v1244
        %v1882 = vpop.f32.mrf.mxu0
        %v1883 = vadd.f32 %v1770, %v1882
        %1884 = vmatmul.f32.gmra.mxu0 %v1245
        %v1885 = vpop.f32.mrf.mxu0
        %v1886 = vadd.f32 %v1773, %v1885
        %1887 = vmatmul.f32.gmra.mxu0 %v1246
        %v1888 = vpop.f32.mrf.mxu0
        %v1889 = vadd.f32 %v1776, %v1888
        %1890 = vmatmul.f32.gmra.mxu0 %v1247
        %v1891 = vpop.f32.mrf.mxu0
        %v1892 = vadd.f32 %v1779, %v1891
        %1893 = vmatmul.f32.gmra.mxu0 %v1248
        %v1894 = vpop.f32.mrf.mxu0
        %v1895 = vadd.f32 %v1782, %v1894
        %1896 = vmatmul.f32.gmra.mxu0 %v1249
        %v1897 = vpop.f32.mrf.mxu0
        %v1898 = vadd.f32 %v1785, %v1897
        %1899 = vmatmul.f32.gmra.mxu0 %v1250
        %v1900 = vpop.f32.mrf.mxu0
        %v1901 = vadd.f32 %v1788, %v1900
        %1902 = vmatmul.f32.gmra.mxu0 %v1251
        %v1903 = vpop.f32.mrf.mxu0
        %v1904 = vadd.f32 %v1791, %v1903
        %1905 = vmatmul.f32.gmra.mxu0 %v1252
        %v1906 = vpop.f32.mrf.mxu0
        %v1907 = vadd.f32 %v1794, %v1906
        %1908 = vmatmul.f32.gmra.mxu0 %v1253
        %v1909 = vpop.f32.mrf.mxu0
        %v1910 = vadd.f32 %v1797, %v1909
        %1911 = vmatmul.f32.gmra.mxu0 %v1254
        %v1912 = vpop.f32.mrf.mxu0
        %v1913 = vadd.f32 %v1800, %v1912
        %1914 = vmatmul.f32.gmra.mxu0 %v1255
        %v1915 = vpop.f32.mrf.mxu0
        %v1916 = vadd.f32 %v1803, %v1915
        %1917 = vmatmul.f32.gmra.mxu0 %v1256
        %v1918 = vpop.f32.mrf.mxu0
        %v1919 = vadd.f32 %v1806, %v1918
        %1920 = vmatmul.f32.gmra.mxu0 %v1257
        %v1921 = vpop.f32.mrf.mxu0
        %v1922 = vadd.f32 %v1809, %v1921
        %1923 = vmatmul.f32.gmra.mxu0 %v1258
        %v1924 = vpop.f32.mrf.mxu0
        %v1925 = vadd.f32 %v1812, %v1924
        %1926 = vmatmul.f32.gmra.mxu0 %v1259
        %v1927 = vpop.f32.mrf.mxu0
        %v1928 = vadd.f32 %v1815, %v1927
        %1929 = vmatmul.f32.gmra.mxu0 %v1260
        %v1930 = vpop.f32.mrf.mxu0
        %v1931 = vadd.f32 %v1818, %v1930
        %1932 = vmatmul.f32.gmra.mxu0 %v1261
        %v1933 = vpop.f32.mrf.mxu0
        %v1934 = vadd.f32 %v1821, %v1933
        %1935 = vmatmul.f32.gmra.mxu0 %v1262
        %v1936 = vpop.f32.mrf.mxu0
        %v1937 = vadd.f32 %v1824, %v1936
        %1938 = vmatmul.f32.gmra.mxu0 %v1263
        %v1939 = vpop.f32.mrf.mxu0
        %v1940 = vadd.f32 %v1827, %v1939
        %1941 = vmatmul.f32.gmra.mxu0 %v1264
        %v1942 = vpop.f32.mrf.mxu0
        %v1943 = vadd.f32 %v1830, %v1942
        %1944 = vmatmul.f32.gmra.mxu0 %v1265
        %v1945 = vpop.f32.mrf.mxu0
        %v1946 = vadd.f32 %v1833, %v1945
        %1947 = vmatmul.f32.gmra.mxu0 %v1266
        %v1948 = vpop.f32.mrf.mxu0
        %v1949 = vadd.f32 %v1836, %v1948
        %1950 = vmatmul.f32.gmra.mxu0 %v1267
        %v1951 = vpop.f32.mrf.mxu0
        %v1952 = vadd.f32 %v1839, %v1951
        %1953 = vmatmul.f32.gmra.mxu0 %v1268
        %v1954 = vpop.f32.mrf.mxu0
        %v1955 = vadd.f32 %v1842, %v1954
        %1956 = vmatmul.f32.gmra.mxu0 %v1269
        %v1957 = vpop.f32.mrf.mxu0
        %v1958 = vadd.f32 %v1845, %v1957
        %1959 = vmatmul.f32.gmra.mxu0 %v1270
        %v1960 = vpop.f32.mrf.mxu0
        %v1961 = vadd.f32 %v1848, %v1960
        %1962 = vdwg.mxu0
        %1963 = vmatpush.msra.mxu0 %v1446
        %1964 = vmatpush.msra.mxu0 %v1445
        %1965 = vmatpush.msra.mxu0 %v1444
        %1966 = vmatpush.msra.mxu0 %v1443
        %1967 = vmatpush.msra.mxu0 %v1442
        %1968 = vmatpush.msra.mxu0 %v1441
        %1969 = vmatpush.msra.mxu0 %v1440
        %1970 = vmatpush.msra.mxu0 %v1439
        %1971 = vmatpush.msra.mxu0 %v1438
        %1972 = vmatpush.msra.mxu0 %v1437
        %1973 = vmatpush.msra.mxu0 %v1436
        %1974 = vmatpush.msra.mxu0 %v1435
        %1975 = vmatpush.msra.mxu0 %v1434
        %1976 = vmatpush.msra.mxu0 %v1433
        %1977 = vmatpush.msra.mxu0 %v1432
        %1978 = vmatpush.msra.mxu0 %v1431
        %1979 = vmatmul.f32.gmra.mxu0 %v774
        %v1980 = vpop.f32.mrf.mxu0
        %v1981 = vadd.f32 %v1868, %v1980
        %1982 = vmatmul.f32.gmra.mxu0 %v775
        %v1983 = vpop.f32.mrf.mxu0
        %v1984 = vadd.f32 %v1871, %v1983
        %1985 = vmatmul.f32.gmra.mxu0 %v776
        %v1986 = vpop.f32.mrf.mxu0
        %v1987 = vadd.f32 %v1874, %v1986
        %1988 = vmatmul.f32.gmra.mxu0 %v777
        %v1989 = vpop.f32.mrf.mxu0
        %v1990 = vadd.f32 %v1877, %v1989
        %1991 = vmatmul.f32.gmra.mxu0 %v778
        %v1992 = vpop.f32.mrf.mxu0
        %v1993 = vadd.f32 %v1880, %v1992
        %1994 = vmatmul.f32.gmra.mxu0 %v779
        %v1995 = vpop.f32.mrf.mxu0
        %v1996 = vadd.f32 %v1883, %v1995
        %1997 = vmatmul.f32.gmra.mxu0 %v780
        %v1998 = vpop.f32.mrf.mxu0
        %v1999 = vadd.f32 %v1886, %v1998
        %2000 = vmatmul.f32.gmra.mxu0 %v781
        %v2001 = vpop.f32.mrf.mxu0
        %v2002 = vadd.f32 %v1889, %v2001
        %2003 = vmatmul.f32.gmra.mxu0 %v782
        %v2004 = vpop.f32.mrf.mxu0
        %v2005 = vadd.f32 %v1892, %v2004
        %2006 = vmatmul.f32.gmra.mxu0 %v783
        %v2007 = vpop.f32.mrf.mxu0
        %v2008 = vadd.f32 %v1895, %v2007
        %2009 = vmatmul.f32.gmra.mxu0 %v784
        %v2010 = vpop.f32.mrf.mxu0
        %v2011 = vadd.f32 %v1898, %v2010
        %2012 = vmatmul.f32.gmra.mxu0 %v785
        %v2013 = vpop.f32.mrf.mxu0
        %v2014 = vadd.f32 %v1901, %v2013
        %2015 = vmatmul.f32.gmra.mxu0 %v786
        %v2016 = vpop.f32.mrf.mxu0
        %v2017 = vadd.f32 %v1904, %v2016
        %2018 = vmatmul.f32.gmra.mxu0 %v787
        %v2019 = vpop.f32.mrf.mxu0
        %v2020 = vadd.f32 %v1907, %v2019
        %2021 = vmatmul.f32.gmra.mxu0 %v788
        %v2022 = vpop.f32.mrf.mxu0
        %v2023 = vadd.f32 %v1910, %v2022
        %2024 = vmatmul.f32.gmra.mxu0 %v789
        %v2025 = vpop.f32.mrf.mxu0
        %v2026 = vadd.f32 %v1913, %v2025
        %2027 = vmatmul.f32.gmra.mxu0 %v790
        %v2028 = vpop.f32.mrf.mxu0
        %v2029 = vadd.f32 %v1916, %v2028
        %2030 = vmatmul.f32.gmra.mxu0 %v791
        %v2031 = vpop.f32.mrf.mxu0
        %v2032 = vadd.f32 %v1919, %v2031
        %2033 = vmatmul.f32.gmra.mxu0 %v792
        %v2034 = vpop.f32.mrf.mxu0
        %v2035 = vadd.f32 %v1922, %v2034
        %2036 = vmatmul.f32.gmra.mxu0 %v793
        %v2037 = vpop.f32.mrf.mxu0
        %v2038 = vadd.f32 %v1925, %v2037
        %2039 = vmatmul.f32.gmra.mxu0 %v794
        %v2040 = vpop.f32.mrf.mxu0
        %v2041 = vadd.f32 %v1928, %v2040
        %2042 = vmatmul.f32.gmra.mxu0 %v795
        %v2043 = vpop.f32.mrf.mxu0
        %v2044 = vadd.f32 %v1931, %v2043
        %2045 = vmatmul.f32.gmra.mxu0 %v796
        %v2046 = vpop.f32.mrf.mxu0
        %v2047 = vadd.f32 %v1934, %v2046
        %2048 = vmatmul.f32.gmra.mxu0 %v797
        %v2049 = vpop.f32.mrf.mxu0
        %v2050 = vadd.f32 %v1937, %v2049
        %2051 = vmatmul.f32.gmra.mxu0 %v798
        %v2052 = vpop.f32.mrf.mxu0
        %v2053 = vadd.f32 %v1940, %v2052
        %2054 = vmatmul.f32.gmra.mxu0 %v799
        %v2055 = vpop.f32.mrf.mxu0
        %v2056 = vadd.f32 %v1943, %v2055
        %2057 = vmatmul.f32.gmra.mxu0 %v800
        %v2058 = vpop.f32.mrf.mxu0
        %v2059 = vadd.f32 %v1946, %v2058
        %2060 = vmatmul.f32.gmra.mxu0 %v801
        %v2061 = vpop.f32.mrf.mxu0
        %v2062 = vadd.f32 %v1949, %v2061
        %2063 = vmatmul.f32.gmra.mxu0 %v802
        %v2064 = vpop.f32.mrf.mxu0
        %v2065 = vadd.f32 %v1952, %v2064
        %2066 = vmatmul.f32.gmra.mxu0 %v803
        %v2067 = vpop.f32.mrf.mxu0
        %v2068 = vadd.f32 %v1955, %v2067
        %2069 = vmatmul.f32.gmra.mxu0 %v804
        %v2070 = vpop.f32.mrf.mxu0
        %v2071 = vadd.f32 %v1958, %v2070
        %2072 = vmatmul.f32.gmra.mxu0 %v805
        %v2073 = vpop.f32.mrf.mxu0
        %v2074 = vadd.f32 %v1961, %v2073
        %2075 = vdwg.mxu0
        %2076 = vmatpush.msra.mxu0 %v1462
        %2077 = vmatpush.msra.mxu0 %v1461
        %2078 = vmatpush.msra.mxu0 %v1460
        %2079 = vmatpush.msra.mxu0 %v1459
        %2080 = vmatpush.msra.mxu0 %v1458
        %2081 = vmatpush.msra.mxu0 %v1457
        %2082 = vmatpush.msra.mxu0 %v1456
        %2083 = vmatpush.msra.mxu0 %v1455
        %2084 = vmatpush.msra.mxu0 %v1454
        %2085 = vmatpush.msra.mxu0 %v1453
        %2086 = vmatpush.msra.mxu0 %v1452
        %2087 = vmatpush.msra.mxu0 %v1451
        %2088 = vmatpush.msra.mxu0 %v1450
        %2089 = vmatpush.msra.mxu0 %v1449
        %2090 = vmatpush.msra.mxu0 %v1448
        %2091 = vmatpush.msra.mxu0 %v1447
        %2092 = vmatmul.f32.gmra.mxu0 %v1271
        %v2093 = vpop.f32.mrf.mxu0
        %v2094 = vadd.f32 %v1981, %v2093
        %2095 = vmatmul.f32.gmra.mxu0 %v1272
        %v2096 = vpop.f32.mrf.mxu0
        %v2097 = vadd.f32 %v1984, %v2096
        %2098 = vmatmul.f32.gmra.mxu0 %v1273
        %v2099 = vpop.f32.mrf.mxu0
        %v2100 = vadd.f32 %v1987, %v2099
        %2101 = vmatmul.f32.gmra.mxu0 %v1274
        %v2102 = vpop.f32.mrf.mxu0
        %v2103 = vadd.f32 %v1990, %v2102
        %2104 = vmatmul.f32.gmra.mxu0 %v1275
        %v2105 = vpop.f32.mrf.mxu0
        %v2106 = vadd.f32 %v1993, %v2105
        %2107 = vmatmul.f32.gmra.mxu0 %v1276
        %v2108 = vpop.f32.mrf.mxu0
        %v2109 = vadd.f32 %v1996, %v2108
        %2110 = vmatmul.f32.gmra.mxu0 %v1277
        %v2111 = vpop.f32.mrf.mxu0
        %v2112 = vadd.f32 %v1999, %v2111
        %2113 = vmatmul.f32.gmra.mxu0 %v1278
        %v2114 = vpop.f32.mrf.mxu0
        %v2115 = vadd.f32 %v2002, %v2114
        %2116 = vmatmul.f32.gmra.mxu0 %v1279
        %v2117 = vpop.f32.mrf.mxu0
        %v2118 = vadd.f32 %v2005, %v2117
        %2119 = vmatmul.f32.gmra.mxu0 %v1280
        %v2120 = vpop.f32.mrf.mxu0
        %v2121 = vadd.f32 %v2008, %v2120
        %2122 = vmatmul.f32.gmra.mxu0 %v1281
        %v2123 = vpop.f32.mrf.mxu0
        %v2124 = vadd.f32 %v2011, %v2123
        %2125 = vmatmul.f32.gmra.mxu0 %v1282
        %v2126 = vpop.f32.mrf.mxu0
        %v2127 = vadd.f32 %v2014, %v2126
        %2128 = vmatmul.f32.gmra.mxu0 %v1283
        %v2129 = vpop.f32.mrf.mxu0
        %v2130 = vadd.f32 %v2017, %v2129
        %2131 = vmatmul.f32.gmra.mxu0 %v1284
        %v2132 = vpop.f32.mrf.mxu0
        %v2133 = vadd.f32 %v2020, %v2132
        %2134 = vmatmul.f32.gmra.mxu0 %v1285
        %v2135 = vpop.f32.mrf.mxu0
        %v2136 = vadd.f32 %v2023, %v2135
        %2137 = vmatmul.f32.gmra.mxu0 %v1286
        %v2138 = vpop.f32.mrf.mxu0
        %v2139 = vadd.f32 %v2026, %v2138
        %2140 = vmatmul.f32.gmra.mxu0 %v1287
        %v2141 = vpop.f32.mrf.mxu0
        %v2142 = vadd.f32 %v2029, %v2141
        %2143 = vmatmul.f32.gmra.mxu0 %v1288
        %v2144 = vpop.f32.mrf.mxu0
        %v2145 = vadd.f32 %v2032, %v2144
        %2146 = vmatmul.f32.gmra.mxu0 %v1289
        %v2147 = vpop.f32.mrf.mxu0
        %v2148 = vadd.f32 %v2035, %v2147
        %2149 = vmatmul.f32.gmra.mxu0 %v1290
        %v2150 = vpop.f32.mrf.mxu0
        %v2151 = vadd.f32 %v2038, %v2150
        %2152 = vmatmul.f32.gmra.mxu0 %v1291
        %v2153 = vpop.f32.mrf.mxu0
        %v2154 = vadd.f32 %v2041, %v2153
        %2155 = vmatmul.f32.gmra.mxu0 %v1292
        %v2156 = vpop.f32.mrf.mxu0
        %v2157 = vadd.f32 %v2044, %v2156
        %2158 = vmatmul.f32.gmra.mxu0 %v1293
        %v2159 = vpop.f32.mrf.mxu0
        %v2160 = vadd.f32 %v2047, %v2159
        %2161 = vmatmul.f32.gmra.mxu0 %v1294
        %v2162 = vpop.f32.mrf.mxu0
        %v2163 = vadd.f32 %v2050, %v2162
        %2164 = vmatmul.f32.gmra.mxu0 %v1295
        %v2165 = vpop.f32.mrf.mxu0
        %v2166 = vadd.f32 %v2053, %v2165
        %2167 = vmatmul.f32.gmra.mxu0 %v1296
        %v2168 = vpop.f32.mrf.mxu0
        %v2169 = vadd.f32 %v2056, %v2168
        %2170 = vmatmul.f32.gmra.mxu0 %v1297
        %v2171 = vpop.f32.mrf.mxu0
        %v2172 = vadd.f32 %v2059, %v2171
        %2173 = vmatmul.f32.gmra.mxu0 %v1298
        %v2174 = vpop.f32.mrf.mxu0
        %v2175 = vadd.f32 %v2062, %v2174
        %2176 = vmatmul.f32.gmra.mxu0 %v1299
        %v2177 = vpop.f32.mrf.mxu0
        %v2178 = vadd.f32 %v2065, %v2177
        %2179 = vmatmul.f32.gmra.mxu0 %v1300
        %v2180 = vpop.f32.mrf.mxu0
        %v2181 = vadd.f32 %v2068, %v2180
        %2182 = vmatmul.f32.gmra.mxu0 %v1301
        %v2183 = vpop.f32.mrf.mxu0
        %v2184 = vadd.f32 %v2071, %v2183
        %2185 = vmatmul.f32.gmra.mxu0 %v1302
        %v2186 = vpop.f32.mrf.mxu0
        %v2187 = vadd.f32 %v2074, %v2186
        %2188 = vdwg.mxu0
        %2189 = vmatpush.msra.mxu0 %v1478
        %2190 = vmatpush.msra.mxu0 %v1477
        %2191 = vmatpush.msra.mxu0 %v1476
        %2192 = vmatpush.msra.mxu0 %v1475
        %2193 = vmatpush.msra.mxu0 %v1474
        %2194 = vmatpush.msra.mxu0 %v1473
        %2195 = vmatpush.msra.mxu0 %v1472
        %2196 = vmatpush.msra.mxu0 %v1471
        %2197 = vmatpush.msra.mxu0 %v1470
        %2198 = vmatpush.msra.mxu0 %v1469
        %2199 = vmatpush.msra.mxu0 %v1468
        %2200 = vmatpush.msra.mxu0 %v1467
        %2201 = vmatpush.msra.mxu0 %v1466
        %2202 = vmatpush.msra.mxu0 %v1465
        %2203 = vmatpush.msra.mxu0 %v1464
        %2204 = vmatpush.msra.mxu0 %v1463
        %2205 = vmatmul.f32.gmra.mxu0 %v1303
        %v2206 = vpop.f32.mrf.mxu0
        %v2207 = vadd.f32 %v2094, %v2206
        %2208 = vmatmul.f32.gmra.mxu0 %v1304
        %v2209 = vpop.f32.mrf.mxu0
        %v2210 = vadd.f32 %v2097, %v2209
        %2211 = vmatmul.f32.gmra.mxu0 %v1305
        %v2212 = vpop.f32.mrf.mxu0
        %v2213 = vadd.f32 %v2100, %v2212
        %2214 = vmatmul.f32.gmra.mxu0 %v1306
        %v2215 = vpop.f32.mrf.mxu0
        %v2216 = vadd.f32 %v2103, %v2215
        %2217 = vmatmul.f32.gmra.mxu0 %v1307
        %v2218 = vpop.f32.mrf.mxu0
        %v2219 = vadd.f32 %v2106, %v2218
        %2220 = vmatmul.f32.gmra.mxu0 %v1308
        %v2221 = vpop.f32.mrf.mxu0
        %v2222 = vadd.f32 %v2109, %v2221
        %2223 = vmatmul.f32.gmra.mxu0 %v1309
        %v2224 = vpop.f32.mrf.mxu0
        %v2225 = vadd.f32 %v2112, %v2224
        %2226 = vmatmul.f32.gmra.mxu0 %v1310
        %v2227 = vpop.f32.mrf.mxu0
        %v2228 = vadd.f32 %v2115, %v2227
        %2229 = vmatmul.f32.gmra.mxu0 %v1311
        %v2230 = vpop.f32.mrf.mxu0
        %v2231 = vadd.f32 %v2118, %v2230
        %2232 = vmatmul.f32.gmra.mxu0 %v1312
        %v2233 = vpop.f32.mrf.mxu0
        %v2234 = vadd.f32 %v2121, %v2233
        %2235 = vmatmul.f32.gmra.mxu0 %v1313
        %v2236 = vpop.f32.mrf.mxu0
        %v2237 = vadd.f32 %v2124, %v2236
        %2238 = vmatmul.f32.gmra.mxu0 %v1314
        %v2239 = vpop.f32.mrf.mxu0
        %v2240 = vadd.f32 %v2127, %v2239
        %2241 = vmatmul.f32.gmra.mxu0 %v1315
        %v2242 = vpop.f32.mrf.mxu0
        %v2243 = vadd.f32 %v2130, %v2242
        %2244 = vmatmul.f32.gmra.mxu0 %v1316
        %v2245 = vpop.f32.mrf.mxu0
        %v2246 = vadd.f32 %v2133, %v2245
        %2247 = vmatmul.f32.gmra.mxu0 %v1317
        %v2248 = vpop.f32.mrf.mxu0
        %v2249 = vadd.f32 %v2136, %v2248
        %2250 = vmatmul.f32.gmra.mxu0 %v1318
        %v2251 = vpop.f32.mrf.mxu0
        %v2252 = vadd.f32 %v2139, %v2251
        %2253 = vmatmul.f32.gmra.mxu0 %v1319
        %v2254 = vpop.f32.mrf.mxu0
        %v2255 = vadd.f32 %v2142, %v2254
        %2256 = vmatmul.f32.gmra.mxu0 %v1320
        %v2257 = vpop.f32.mrf.mxu0
        %v2258 = vadd.f32 %v2145, %v2257
        %2259 = vmatmul.f32.gmra.mxu0 %v1321
        %v2260 = vpop.f32.mrf.mxu0
        %v2261 = vadd.f32 %v2148, %v2260
        %2262 = vmatmul.f32.gmra.mxu0 %v1322
        %v2263 = vpop.f32.mrf.mxu0
        %v2264 = vadd.f32 %v2151, %v2263
        %2265 = vmatmul.f32.gmra.mxu0 %v1323
        %v2266 = vpop.f32.mrf.mxu0
        %v2267 = vadd.f32 %v2154, %v2266
        %2268 = vmatmul.f32.gmra.mxu0 %v1324
        %v2269 = vpop.f32.mrf.mxu0
        %v2270 = vadd.f32 %v2157, %v2269
        %2271 = vmatmul.f32.gmra.mxu0 %v1325
        %v2272 = vpop.f32.mrf.mxu0
        %v2273 = vadd.f32 %v2160, %v2272
        %2274 = vmatmul.f32.gmra.mxu0 %v1326
        %v2275 = vpop.f32.mrf.mxu0
        %v2276 = vadd.f32 %v2163, %v2275
        %2277 = vmatmul.f32.gmra.mxu0 %v1327
        %v2278 = vpop.f32.mrf.mxu0
        %v2279 = vadd.f32 %v2166, %v2278
        %2280 = vmatmul.f32.gmra.mxu0 %v1328
        %v2281 = vpop.f32.mrf.mxu0
        %v2282 = vadd.f32 %v2169, %v2281
        %2283 = vmatmul.f32.gmra.mxu0 %v1329
        %v2284 = vpop.f32.mrf.mxu0
        %v2285 = vadd.f32 %v2172, %v2284
        %2286 = vmatmul.f32.gmra.mxu0 %v1330
        %v2287 = vpop.f32.mrf.mxu0
        %v2288 = vadd.f32 %v2175, %v2287
        %2289 = vmatmul.f32.gmra.mxu0 %v1331
        %v2290 = vpop.f32.mrf.mxu0
        %v2291 = vadd.f32 %v2178, %v2290
        %2292 = vmatmul.f32.gmra.mxu0 %v1332
        %v2293 = vpop.f32.mrf.mxu0
        %v2294 = vadd.f32 %v2181, %v2293
        %2295 = vmatmul.f32.gmra.mxu0 %v1333
        %v2296 = vpop.f32.mrf.mxu0
        %v2297 = vadd.f32 %v2184, %v2296
        %2298 = vmatmul.f32.gmra.mxu0 %v1334
        %v2299 = vpop.f32.mrf.mxu0
        %v2300 = vadd.f32 %v2187, %v2299
        %2301 = vdwg.mxu0
        %2302 = vmatpush.msra.mxu0 %v1494
        %2303 = vmatpush.msra.mxu0 %v1493
        %2304 = vmatpush.msra.mxu0 %v1492
        %2305 = vmatpush.msra.mxu0 %v1491
        %2306 = vmatpush.msra.mxu0 %v1490
        %2307 = vmatpush.msra.mxu0 %v1489
        %2308 = vmatpush.msra.mxu0 %v1488
        %2309 = vmatpush.msra.mxu0 %v1487
        %2310 = vmatpush.msra.mxu0 %v1486
        %2311 = vmatpush.msra.mxu0 %v1485
        %2312 = vmatpush.msra.mxu0 %v1484
        %2313 = vmatpush.msra.mxu0 %v1483
        %2314 = vmatpush.msra.mxu0 %v1482
        %2315 = vmatpush.msra.mxu0 %v1481
        %2316 = vmatpush.msra.mxu0 %v1480
        %2317 = vmatpush.msra.mxu0 %v1479
        %2318 = vmatmul.f32.gmra.mxu0 %v776
        %v2319 = vpop.f32.mrf.mxu0
        %v2320 = vadd.f32 %v2207, %v2319
        %2321 = vmatmul.f32.gmra.mxu0 %v777
        %v2322 = vpop.f32.mrf.mxu0
        %v2323 = vadd.f32 %v2210, %v2322
        %2324 = vmatmul.f32.gmra.mxu0 %v778
        %v2325 = vpop.f32.mrf.mxu0
        %v2326 = vadd.f32 %v2213, %v2325
        %2327 = vmatmul.f32.gmra.mxu0 %v779
        %v2328 = vpop.f32.mrf.mxu0
        %v2329 = vadd.f32 %v2216, %v2328
        %2330 = vmatmul.f32.gmra.mxu0 %v780
        %v2331 = vpop.f32.mrf.mxu0
        %v2332 = vadd.f32 %v2219, %v2331
        %2333 = vmatmul.f32.gmra.mxu0 %v781
        %v2334 = vpop.f32.mrf.mxu0
        %v2335 = vadd.f32 %v2222, %v2334
        %2336 = vmatmul.f32.gmra.mxu0 %v782
        %v2337 = vpop.f32.mrf.mxu0
        %v2338 = vadd.f32 %v2225, %v2337
        %2339 = vmatmul.f32.gmra.mxu0 %v783
        %v2340 = vpop.f32.mrf.mxu0
        %v2341 = vadd.f32 %v2228, %v2340
        %2342 = vmatmul.f32.gmra.mxu0 %v784
        %v2343 = vpop.f32.mrf.mxu0
        %v2344 = vadd.f32 %v2231, %v2343
        %2345 = vmatmul.f32.gmra.mxu0 %v785
        %v2346 = vpop.f32.mrf.mxu0
        %v2347 = vadd.f32 %v2234, %v2346
        %2348 = vmatmul.f32.gmra.mxu0 %v786
        %v2349 = vpop.f32.mrf.mxu0
        %v2350 = vadd.f32 %v2237, %v2349
        %2351 = vmatmul.f32.gmra.mxu0 %v787
        %v2352 = vpop.f32.mrf.mxu0
        %v2353 = vadd.f32 %v2240, %v2352
        %2354 = vmatmul.f32.gmra.mxu0 %v788
        %v2355 = vpop.f32.mrf.mxu0
        %v2356 = vadd.f32 %v2243, %v2355
        %2357 = vmatmul.f32.gmra.mxu0 %v789
        %v2358 = vpop.f32.mrf.mxu0
        %v2359 = vadd.f32 %v2246, %v2358
        %2360 = vmatmul.f32.gmra.mxu0 %v790
        %v2361 = vpop.f32.mrf.mxu0
        %v2362 = vadd.f32 %v2249, %v2361
        %2363 = vmatmul.f32.gmra.mxu0 %v791
        %v2364 = vpop.f32.mrf.mxu0
        %v2365 = vadd.f32 %v2252, %v2364
        %2366 = vmatmul.f32.gmra.mxu0 %v792
        %v2367 = vpop.f32.mrf.mxu0
        %v2368 = vadd.f32 %v2255, %v2367
        %2369 = vmatmul.f32.gmra.mxu0 %v793
        %v2370 = vpop.f32.mrf.mxu0
        %v2371 = vadd.f32 %v2258, %v2370
        %2372 = vmatmul.f32.gmra.mxu0 %v794
        %v2373 = vpop.f32.mrf.mxu0
        %v2374 = vadd.f32 %v2261, %v2373
        %2375 = vmatmul.f32.gmra.mxu0 %v795
        %v2376 = vpop.f32.mrf.mxu0
        %v2377 = vadd.f32 %v2264, %v2376
        %2378 = vmatmul.f32.gmra.mxu0 %v796
        %v2379 = vpop.f32.mrf.mxu0
        %v2380 = vadd.f32 %v2267, %v2379
        %2381 = vmatmul.f32.gmra.mxu0 %v797
        %v2382 = vpop.f32.mrf.mxu0
        %v2383 = vadd.f32 %v2270, %v2382
        %2384 = vmatmul.f32.gmra.mxu0 %v798
        %v2385 = vpop.f32.mrf.mxu0
        %v2386 = vadd.f32 %v2273, %v2385
        %2387 = vmatmul.f32.gmra.mxu0 %v799
        %v2388 = vpop.f32.mrf.mxu0
        %v2389 = vadd.f32 %v2276, %v2388
        %2390 = vmatmul.f32.gmra.mxu0 %v800
        %v2391 = vpop.f32.mrf.mxu0
        %v2392 = vadd.f32 %v2279, %v2391
        %2393 = vmatmul.f32.gmra.mxu0 %v801
        %v2394 = vpop.f32.mrf.mxu0
        %v2395 = vadd.f32 %v2282, %v2394
        %2396 = vmatmul.f32.gmra.mxu0 %v802
        %v2397 = vpop.f32.mrf.mxu0
        %v2398 = vadd.f32 %v2285, %v2397
        %2399 = vmatmul.f32.gmra.mxu0 %v803
        %v2400 = vpop.f32.mrf.mxu0
        %v2401 = vadd.f32 %v2288, %v2400
        %2402 = vmatmul.f32.gmra.mxu0 %v804
        %v2403 = vpop.f32.mrf.mxu0
        %v2404 = vadd.f32 %v2291, %v2403
        %2405 = vmatmul.f32.gmra.mxu0 %v805
        %v2406 = vpop.f32.mrf.mxu0
        %v2407 = vadd.f32 %v2294, %v2406
        %2408 = vmatmul.f32.gmra.mxu0 0.0
        %v2409 = vpop.f32.mrf.mxu0
        %v2410 = vadd.f32 %v2297, %v2409
        %2411 = vmatmul.f32.gmra.mxu0 0.0
        %v2412 = vpop.f32.mrf.mxu0
        %v2413 = vadd.f32 %v2300, %v2412
        %2414 = vdwg.mxu0
        %2415 = vmatpush.msra.mxu0 %v1510
        %2416 = vmatpush.msra.mxu0 %v1509
        %2417 = vmatpush.msra.mxu0 %v1508
        %2418 = vmatpush.msra.mxu0 %v1507
        %2419 = vmatpush.msra.mxu0 %v1506
        %2420 = vmatpush.msra.mxu0 %v1505
        %2421 = vmatpush.msra.mxu0 %v1504
        %2422 = vmatpush.msra.mxu0 %v1503
        %2423 = vmatpush.msra.mxu0 %v1502
        %2424 = vmatpush.msra.mxu0 %v1501
        %2425 = vmatpush.msra.mxu0 %v1500
        %2426 = vmatpush.msra.mxu0 %v1499
        %2427 = vmatpush.msra.mxu0 %v1498
        %2428 = vmatpush.msra.mxu0 %v1497
        %2429 = vmatpush.msra.mxu0 %v1496
        %2430 = vmatpush.msra.mxu0 %v1495
        %2431 = vmatmul.f32.gmra.mxu0 %v1335
        %v2432 = vpop.f32.mrf.mxu0
        %v2433 = vadd.f32 %v2320, %v2432
        %2434 = vmatmul.f32.gmra.mxu0 %v1336
        %v2435 = vpop.f32.mrf.mxu0
        %v2436 = vadd.f32 %v2323, %v2435
        %2437 = vmatmul.f32.gmra.mxu0 %v1337
        %v2438 = vpop.f32.mrf.mxu0
        %v2439 = vadd.f32 %v2326, %v2438
        %2440 = vmatmul.f32.gmra.mxu0 %v1338
        %v2441 = vpop.f32.mrf.mxu0
        %v2442 = vadd.f32 %v2329, %v2441
        %2443 = vmatmul.f32.gmra.mxu0 %v1339
        %v2444 = vpop.f32.mrf.mxu0
        %v2445 = vadd.f32 %v2332, %v2444
        %2446 = vmatmul.f32.gmra.mxu0 %v1340
        %v2447 = vpop.f32.mrf.mxu0
        %v2448 = vadd.f32 %v2335, %v2447
        %2449 = vmatmul.f32.gmra.mxu0 %v1341
        %v2450 = vpop.f32.mrf.mxu0
        %v2451 = vadd.f32 %v2338, %v2450
        %2452 = vmatmul.f32.gmra.mxu0 %v1342
        %v2453 = vpop.f32.mrf.mxu0
        %v2454 = vadd.f32 %v2341, %v2453
        %2455 = vmatmul.f32.gmra.mxu0 %v1343
        %v2456 = vpop.f32.mrf.mxu0
        %v2457 = vadd.f32 %v2344, %v2456
        %2458 = vmatmul.f32.gmra.mxu0 %v1344
        %v2459 = vpop.f32.mrf.mxu0
        %v2460 = vadd.f32 %v2347, %v2459
        %2461 = vmatmul.f32.gmra.mxu0 %v1345
        %v2462 = vpop.f32.mrf.mxu0
        %v2463 = vadd.f32 %v2350, %v2462
        %2464 = vmatmul.f32.gmra.mxu0 %v1346
        %v2465 = vpop.f32.mrf.mxu0
        %v2466 = vadd.f32 %v2353, %v2465
        %2467 = vmatmul.f32.gmra.mxu0 %v1347
        %v2468 = vpop.f32.mrf.mxu0
        %v2469 = vadd.f32 %v2356, %v2468
        %2470 = vmatmul.f32.gmra.mxu0 %v1348
        %v2471 = vpop.f32.mrf.mxu0
        %v2472 = vadd.f32 %v2359, %v2471
        %2473 = vmatmul.f32.gmra.mxu0 %v1349
        %v2474 = vpop.f32.mrf.mxu0
        %v2475 = vadd.f32 %v2362, %v2474
        %2476 = vmatmul.f32.gmra.mxu0 %v1350
        %v2477 = vpop.f32.mrf.mxu0
        %v2478 = vadd.f32 %v2365, %v2477
        %2479 = vmatmul.f32.gmra.mxu0 %v1351
        %v2480 = vpop.f32.mrf.mxu0
        %v2481 = vadd.f32 %v2368, %v2480
        %2482 = vmatmul.f32.gmra.mxu0 %v1352
        %v2483 = vpop.f32.mrf.mxu0
        %v2484 = vadd.f32 %v2371, %v2483
        %2485 = vmatmul.f32.gmra.mxu0 %v1353
        %v2486 = vpop.f32.mrf.mxu0
        %v2487 = vadd.f32 %v2374, %v2486
        %2488 = vmatmul.f32.gmra.mxu0 %v1354
        %v2489 = vpop.f32.mrf.mxu0
        %v2490 = vadd.f32 %v2377, %v2489
        %2491 = vmatmul.f32.gmra.mxu0 %v1355
        %v2492 = vpop.f32.mrf.mxu0
        %v2493 = vadd.f32 %v2380, %v2492
        %2494 = vmatmul.f32.gmra.mxu0 %v1356
        %v2495 = vpop.f32.mrf.mxu0
        %v2496 = vadd.f32 %v2383, %v2495
        %2497 = vmatmul.f32.gmra.mxu0 %v1357
        %v2498 = vpop.f32.mrf.mxu0
        %v2499 = vadd.f32 %v2386, %v2498
        %2500 = vmatmul.f32.gmra.mxu0 %v1358
        %v2501 = vpop.f32.mrf.mxu0
        %v2502 = vadd.f32 %v2389, %v2501
        %2503 = vmatmul.f32.gmra.mxu0 %v1359
        %v2504 = vpop.f32.mrf.mxu0
        %v2505 = vadd.f32 %v2392, %v2504
        %2506 = vmatmul.f32.gmra.mxu0 %v1360
        %v2507 = vpop.f32.mrf.mxu0
        %v2508 = vadd.f32 %v2395, %v2507
        %2509 = vmatmul.f32.gmra.mxu0 %v1361
        %v2510 = vpop.f32.mrf.mxu0
        %v2511 = vadd.f32 %v2398, %v2510
        %2512 = vmatmul.f32.gmra.mxu0 %v1362
        %v2513 = vpop.f32.mrf.mxu0
        %v2514 = vadd.f32 %v2401, %v2513
        %2515 = vmatmul.f32.gmra.mxu0 %v1363
        %v2516 = vpop.f32.mrf.mxu0
        %v2517 = vadd.f32 %v2404, %v2516
        %2518 = vmatmul.f32.gmra.mxu0 %v1364
        %v2519 = vpop.f32.mrf.mxu0
        %v2520 = vadd.f32 %v2407, %v2519
        %2521 = vmatmul.f32.gmra.mxu0 %v1365
        %v2522 = vpop.f32.mrf.mxu0
        %v2523 = vadd.f32 %v2410, %v2522
        %2524 = vmatmul.f32.gmra.mxu0 %v1366
        %v2525 = vpop.f32.mrf.mxu0
        %v2526 = vadd.f32 %v2413, %v2525
        %2527 = vdwg.mxu0
        %v2528 = vld [vmem:[#allocation7] sm:$0x1]
        %v2529 = vperm.slane %v2528, 0
        %v2530 = vmul.f32 %v2433, %v2529
        %v2531 = vmul.f32 %v2436, %v2529
        %v2532 = vmul.f32 %v2439, %v2529
        %v2533 = vmul.f32 %v2442, %v2529
        %v2534 = vmul.f32 %v2445, %v2529
        %v2535 = vmul.f32 %v2448, %v2529
        %v2536 = vmul.f32 %v2451, %v2529
        %v2537 = vmul.f32 %v2454, %v2529
        %v2538 = vmul.f32 %v2457, %v2529
        %v2539 = vmul.f32 %v2460, %v2529
        %v2540 = vmul.f32 %v2463, %v2529
        %v2541 = vmul.f32 %v2466, %v2529
        %v2542 = vmul.f32 %v2469, %v2529
        %v2543 = vmul.f32 %v2472, %v2529
        %v2544 = vmul.f32 %v2475, %v2529
        %v2545 = vmul.f32 %v2478, %v2529
        %v2546 = vmul.f32 %v2481, %v2529
        %v2547 = vmul.f32 %v2484, %v2529
        %v2548 = vmul.f32 %v2487, %v2529
        %v2549 = vmul.f32 %v2490, %v2529
        %v2550 = vmul.f32 %v2493, %v2529
        %v2551 = vmul.f32 %v2496, %v2529
        %v2552 = vmul.f32 %v2499, %v2529
        %v2553 = vmul.f32 %v2502, %v2529
        %v2554 = vmul.f32 %v2505, %v2529
        %v2555 = vmul.f32 %v2508, %v2529
        %v2556 = vmul.f32 %v2511, %v2529
        %v2557 = vmul.f32 %v2514, %v2529
        %v2558 = vmul.f32 %v2517, %v2529
        %v2559 = vmul.f32 %v2520, %v2529
        %v2560 = vmul.f32 %v2523, %v2529
        %v2561 = vmul.f32 %v2526, %v2529
        %v2562 = vld [vmem:[#allocation7 + $0x1] sm:$0x1]
        %v2563 = vperm.slane %v2562, 0
        %v2564 = vadd.f32 %v2530, %v2563
        %v2565 = vadd.f32 %v2531, %v2563
        %v2566 = vadd.f32 %v2532, %v2563
        %v2567 = vadd.f32 %v2533, %v2563
        %v2568 = vadd.f32 %v2534, %v2563
        %v2569 = vadd.f32 %v2535, %v2563
        %v2570 = vadd.f32 %v2536, %v2563
        %v2571 = vadd.f32 %v2537, %v2563
        %v2572 = vadd.f32 %v2538, %v2563
        %v2573 = vadd.f32 %v2539, %v2563
        %v2574 = vadd.f32 %v2540, %v2563
        %v2575 = vadd.f32 %v2541, %v2563
        %v2576 = vadd.f32 %v2542, %v2563
        %v2577 = vadd.f32 %v2543, %v2563
        %v2578 = vadd.f32 %v2544, %v2563
        %v2579 = vadd.f32 %v2545, %v2563
        %v2580 = vadd.f32 %v2546, %v2563
        %v2581 = vadd.f32 %v2547, %v2563
        %v2582 = vadd.f32 %v2548, %v2563
        %v2583 = vadd.f32 %v2549, %v2563
        %v2584 = vadd.f32 %v2550, %v2563
        %v2585 = vadd.f32 %v2551, %v2563
        %v2586 = vadd.f32 %v2552, %v2563
        %v2587 = vadd.f32 %v2553, %v2563
        %v2588 = vadd.f32 %v2554, %v2563
        %v2589 = vadd.f32 %v2555, %v2563
        %v2590 = vadd.f32 %v2556, %v2563
        %v2591 = vadd.f32 %v2557, %v2563
        %v2592 = vadd.f32 %v2558, %v2563
        %v2593 = vadd.f32 %v2559, %v2563
        %v2594 = vadd.f32 %v2560, %v2563
        %v2595 = vadd.f32 %v2561, %v2563
        %v2596 = vmax.f32 %v2564, 0.0
        %v2597 = vmax.f32 %v2565, 0.0
        %v2598 = vmax.f32 %v2566, 0.0
        %v2599 = vmax.f32 %v2567, 0.0
        %v2600 = vmax.f32 %v2568, 0.0
        %v2601 = vmax.f32 %v2569, 0.0
        %v2602 = vmax.f32 %v2570, 0.0
        %v2603 = vmax.f32 %v2571, 0.0
        %v2604 = vmax.f32 %v2572, 0.0
        %v2605 = vmax.f32 %v2573, 0.0
        %v2606 = vmax.f32 %v2574, 0.0
        %v2607 = vmax.f32 %v2575, 0.0
        %v2608 = vmax.f32 %v2576, 0.0
        %v2609 = vmax.f32 %v2577, 0.0
        %v2610 = vmax.f32 %v2578, 0.0
        %v2611 = vmax.f32 %v2579, 0.0
        %v2612 = vmax.f32 %v2580, 0.0
        %v2613 = vmax.f32 %v2581, 0.0
        %v2614 = vmax.f32 %v2582, 0.0
        %v2615 = vmax.f32 %v2583, 0.0
        %v2616 = vmax.f32 %v2584, 0.0
        %v2617 = vmax.f32 %v2585, 0.0
        %v2618 = vmax.f32 %v2586, 0.0
        %v2619 = vmax.f32 %v2587, 0.0
        %v2620 = vmax.f32 %v2588, 0.0
        %v2621 = vmax.f32 %v2589, 0.0
        %v2622 = vmax.f32 %v2590, 0.0
        %v2623 = vmax.f32 %v2591, 0.0
        %v2624 = vmax.f32 %v2592, 0.0
        %v2625 = vmax.f32 %v2593, 0.0
        %v2626 = vmax.f32 %v2594, 0.0
        %v2627 = vmax.f32 %v2595, 0.0
        %v2660 = vrot.slane %v2596, 7
        %v2661 = vsel %vm841, %v807, %v2660
        %v2662 = vrot.slane %v2597, 7
        %v2663 = vsel %vm841, %v2660, %v2662
        %v2664 = vrot.slane %v2598, 7
        %v2665 = vsel %vm841, %v2662, %v2664
        %v2666 = vrot.slane %v2599, 7
        %v2667 = vsel %vm841, %v2664, %v2666
        %v2668 = vrot.slane %v2600, 7
        %v2669 = vsel %vm841, %v2666, %v2668
        %v2670 = vrot.slane %v2601, 7
        %v2671 = vsel %vm841, %v2668, %v2670
        %v2672 = vrot.slane %v2602, 7
        %v2673 = vsel %vm841, %v2670, %v2672
        %v2674 = vrot.slane %v2603, 7
        %v2675 = vsel %vm841, %v2672, %v2674
        %v2676 = vrot.slane %v2604, 7
        %v2677 = vsel %vm841, %v2674, %v2676
        %v2678 = vrot.slane %v2605, 7
        %v2679 = vsel %vm841, %v2676, %v2678
        %v2680 = vrot.slane %v2606, 7
        %v2681 = vsel %vm841, %v2678, %v2680
        %v2682 = vrot.slane %v2607, 7
        %v2683 = vsel %vm841, %v2680, %v2682
        %v2684 = vrot.slane %v2608, 7
        %v2685 = vsel %vm841, %v2682, %v2684
        %v2686 = vrot.slane %v2609, 7
        %v2687 = vsel %vm841, %v2684, %v2686
        %v2688 = vrot.slane %v2610, 7
        %v2689 = vsel %vm841, %v2686, %v2688
        %v2690 = vrot.slane %v2611, 7
        %v2691 = vsel %vm841, %v2688, %v2690
        %v2692 = vrot.slane %v2612, 7
        %v2693 = vsel %vm841, %v2690, %v2692
        %v2694 = vrot.slane %v2613, 7
        %v2695 = vsel %vm841, %v2692, %v2694
        %v2696 = vrot.slane %v2614, 7
        %v2697 = vsel %vm841, %v2694, %v2696
        %v2698 = vrot.slane %v2615, 7
        %v2699 = vsel %vm841, %v2696, %v2698
        %v2700 = vrot.slane %v2616, 7
        %v2701 = vsel %vm841, %v2698, %v2700
        %v2702 = vrot.slane %v2617, 7
        %v2703 = vsel %vm841, %v2700, %v2702
        %v2704 = vrot.slane %v2618, 7
        %v2705 = vsel %vm841, %v2702, %v2704
        %v2706 = vrot.slane %v2619, 7
        %v2707 = vsel %vm841, %v2704, %v2706
        %v2708 = vrot.slane %v2620, 7
        %v2709 = vsel %vm841, %v2706, %v2708
        %v2710 = vrot.slane %v2621, 7
        %v2711 = vsel %vm841, %v2708, %v2710
        %v2712 = vrot.slane %v2622, 7
        %v2713 = vsel %vm841, %v2710, %v2712
        %v2714 = vrot.slane %v2623, 7
        %v2715 = vsel %vm841, %v2712, %v2714
        %v2716 = vrot.slane %v2624, 7
        %v2717 = vsel %vm841, %v2714, %v2716
        %v2718 = vrot.slane %v2625, 7
        %v2719 = vsel %vm841, %v2716, %v2718
        %v2720 = vrot.slane %v2626, 7
        %v2721 = vsel %vm841, %v2718, %v2720
        %v2722 = vrot.slane %v2627, 7
        %v2723 = vsel %vm841, %v2720, %v2722
        %v2724 = vsel %vm841, %v2722, %v807
        %v2758 = vrot.slane %v2596, 1
        %v2759 = vsel %vm943, %v944, %v2758
        %v2760 = vrot.slane %v2597, 1
        %v2761 = vsel %vm943, %v2758, %v2760
        %v2762 = vrot.slane %v2598, 1
        %v2763 = vsel %vm943, %v2760, %v2762
        %v2764 = vrot.slane %v2599, 1
        %v2765 = vsel %vm943, %v2762, %v2764
        %v2766 = vrot.slane %v2600, 1
        %v2767 = vsel %vm943, %v2764, %v2766
        %v2768 = vrot.slane %v2601, 1
        %v2769 = vsel %vm943, %v2766, %v2768
        %v2770 = vrot.slane %v2602, 1
        %v2771 = vsel %vm943, %v2768, %v2770
        %v2772 = vrot.slane %v2603, 1
        %v2773 = vsel %vm943, %v2770, %v2772
        %v2774 = vrot.slane %v2604, 1
        %v2775 = vsel %vm943, %v2772, %v2774
        %v2776 = vrot.slane %v2605, 1
        %v2777 = vsel %vm943, %v2774, %v2776
        %v2778 = vrot.slane %v2606, 1
        %v2779 = vsel %vm943, %v2776, %v2778
        %v2780 = vrot.slane %v2607, 1
        %v2781 = vsel %vm943, %v2778, %v2780
        %v2782 = vrot.slane %v2608, 1
        %v2783 = vsel %vm943, %v2780, %v2782
        %v2784 = vrot.slane %v2609, 1
        %v2785 = vsel %vm943, %v2782, %v2784
        %v2786 = vrot.slane %v2610, 1
        %v2787 = vsel %vm943, %v2784, %v2786
        %v2788 = vrot.slane %v2611, 1
        %v2789 = vsel %vm943, %v2786, %v2788
        %v2790 = vrot.slane %v2612, 1
        %v2791 = vsel %vm943, %v2788, %v2790
        %v2792 = vrot.slane %v2613, 1
        %v2793 = vsel %vm943, %v2790, %v2792
        %v2794 = vrot.slane %v2614, 1
        %v2795 = vsel %vm943, %v2792, %v2794
        %v2796 = vrot.slane %v2615, 1
        %v2797 = vsel %vm943, %v2794, %v2796
        %v2798 = vrot.slane %v2616, 1
        %v2799 = vsel %vm943, %v2796, %v2798
        %v2800 = vrot.slane %v2617, 1
        %v2801 = vsel %vm943, %v2798, %v2800
        %v2802 = vrot.slane %v2618, 1
        %v2803 = vsel %vm943, %v2800, %v2802
        %v2804 = vrot.slane %v2619, 1
        %v2805 = vsel %vm943, %v2802, %v2804
        %v2806 = vrot.slane %v2620, 1
        %v2807 = vsel %vm943, %v2804, %v2806
        %v2808 = vrot.slane %v2621, 1
        %v2809 = vsel %vm943, %v2806, %v2808
        %v2810 = vrot.slane %v2622, 1
        %v2811 = vsel %vm943, %v2808, %v2810
        %v2812 = vrot.slane %v2623, 1
        %v2813 = vsel %vm943, %v2810, %v2812
        %v2814 = vrot.slane %v2624, 1
        %v2815 = vsel %vm943, %v2812, %v2814
        %v2816 = vrot.slane %v2625, 1
        %v2817 = vsel %vm943, %v2814, %v2816
        %v2818 = vrot.slane %v2626, 1
        %v2819 = vsel %vm943, %v2816, %v2818
        %v2820 = vrot.slane %v2627, 1
        %v2821 = vsel %vm943, %v2818, %v2820
        %v2822 = vsel %vm943, %v2820, %v944
        %v2856 = vsel %vm1081, %v2661, 0.0
        %v2857 = vsel %vm1082, %v2663, 0.0
        %v2858 = vsel %vm1083, %v2665, 0.0
        %v2859 = vsel %vm1084, %v2667, 0.0
        %v2860 = vsel %vm1085, %v2669, 0.0
        %v2861 = vsel %vm1086, %v2671, 0.0
        %v2862 = vsel %vm1087, %v2673, 0.0
        %v2863 = vsel %vm1088, %v2675, 0.0
        %v2864 = vsel %vm1089, %v2677, 0.0
        %v2865 = vsel %vm1090, %v2679, 0.0
        %v2866 = vsel %vm1091, %v2681, 0.0
        %v2867 = vsel %vm1092, %v2683, 0.0
        %v2868 = vsel %vm1093, %v2685, 0.0
        %v2869 = vsel %vm1094, %v2687, 0.0
        %v2870 = vsel %vm1095, %v2689, 0.0
        %v2871 = vsel %vm1096, %v2691, 0.0
        %v2872 = vsel %vm1097, %v2693, 0.0
        %v2873 = vsel %vm1098, %v2695, 0.0
        %v2874 = vsel %vm1099, %v2697, 0.0
        %v2875 = vsel %vm1100, %v2699, 0.0
        %v2876 = vsel %vm1101, %v2701, 0.0
        %v2877 = vsel %vm1102, %v2703, 0.0
        %v2878 = vsel %vm1103, %v2705, 0.0
        %v2879 = vsel %vm1104, %v2707, 0.0
        %v2880 = vsel %vm1105, %v2709, 0.0
        %v2881 = vsel %vm1106, %v2711, 0.0
        %v2882 = vsel %vm1107, %v2713, 0.0
        %v2883 = vsel %vm1108, %v2715, 0.0
        %v2884 = vsel %vm1109, %v2717, 0.0
        %v2885 = vsel %vm1110, %v2719, 0.0
        %v2886 = vsel %vm1176, %v2759, 0.0
        %v2887 = vsel %vm1177, %v2761, 0.0
        %v2888 = vsel %vm1178, %v2763, 0.0
        %v2889 = vsel %vm1179, %v2765, 0.0
        %v2890 = vsel %vm1180, %v2767, 0.0
        %v2891 = vsel %vm1181, %v2769, 0.0
        %v2892 = vsel %vm1182, %v2771, 0.0
        %v2893 = vsel %vm1183, %v2773, 0.0
        %v2894 = vsel %vm1184, %v2775, 0.0
        %v2895 = vsel %vm1185, %v2777, 0.0
        %v2896 = vsel %vm1186, %v2779, 0.0
        %v2897 = vsel %vm1187, %v2781, 0.0
        %v2898 = vsel %vm1188, %v2783, 0.0
        %v2899 = vsel %vm1189, %v2785, 0.0
        %v2900 = vsel %vm1190, %v2787, 0.0
        %v2901 = vsel %vm1191, %v2789, 0.0
        %v2902 = vsel %vm1192, %v2791, 0.0
        %v2903 = vsel %vm1193, %v2793, 0.0
        %v2904 = vsel %vm1194, %v2795, 0.0
        %v2905 = vsel %vm1195, %v2797, 0.0
        %v2906 = vsel %vm1196, %v2799, 0.0
        %v2907 = vsel %vm1197, %v2801, 0.0
        %v2908 = vsel %vm1198, %v2803, 0.0
        %v2909 = vsel %vm1199, %v2805, 0.0
        %v2910 = vsel %vm1200, %v2807, 0.0
        %v2911 = vsel %vm1201, %v2809, 0.0
        %v2912 = vsel %vm1202, %v2811, 0.0
        %v2913 = vsel %vm1203, %v2813, 0.0
        %v2914 = vsel %vm1204, %v2815, 0.0
        %v2915 = vsel %vm1205, %v2817, 0.0
        %v2916 = vsel %vm1206, %v2819, 0.0
        %v2917 = vsel %vm1079, %v2661, 0.0
        %v2918 = vsel %vm1080, %v2663, 0.0
        %v2919 = vsel %vm1081, %v2665, 0.0
        %v2920 = vsel %vm1082, %v2667, 0.0
        %v2921 = vsel %vm1083, %v2669, 0.0
        %v2922 = vsel %vm1084, %v2671, 0.0
        %v2923 = vsel %vm1085, %v2673, 0.0
        %v2924 = vsel %vm1086, %v2675, 0.0
        %v2925 = vsel %vm1087, %v2677, 0.0
        %v2926 = vsel %vm1088, %v2679, 0.0
        %v2927 = vsel %vm1089, %v2681, 0.0
        %v2928 = vsel %vm1090, %v2683, 0.0
        %v2929 = vsel %vm1091, %v2685, 0.0
        %v2930 = vsel %vm1092, %v2687, 0.0
        %v2931 = vsel %vm1093, %v2689, 0.0
        %v2932 = vsel %vm1094, %v2691, 0.0
        %v2933 = vsel %vm1095, %v2693, 0.0
        %v2934 = vsel %vm1096, %v2695, 0.0
        %v2935 = vsel %vm1097, %v2697, 0.0
        %v2936 = vsel %vm1098, %v2699, 0.0
        %v2937 = vsel %vm1099, %v2701, 0.0
        %v2938 = vsel %vm1100, %v2703, 0.0
        %v2939 = vsel %vm1101, %v2705, 0.0
        %v2940 = vsel %vm1102, %v2707, 0.0
        %v2941 = vsel %vm1103, %v2709, 0.0
        %v2942 = vsel %vm1104, %v2711, 0.0
        %v2943 = vsel %vm1105, %v2713, 0.0
        %v2944 = vsel %vm1106, %v2715, 0.0
        %v2945 = vsel %vm1107, %v2717, 0.0
        %v2946 = vsel %vm1108, %v2719, 0.0
        %v2947 = vsel %vm1109, %v2721, 0.0
        %v2948 = vsel %vm1110, %v2723, 0.0
        %v2949 = vsel %vm1175, %v2761, 0.0
        %v2950 = vsel %vm1176, %v2763, 0.0
        %v2951 = vsel %vm1177, %v2765, 0.0
        %v2952 = vsel %vm1178, %v2767, 0.0
        %v2953 = vsel %vm1179, %v2769, 0.0
        %v2954 = vsel %vm1180, %v2771, 0.0
        %v2955 = vsel %vm1181, %v2773, 0.0
        %v2956 = vsel %vm1182, %v2775, 0.0
        %v2957 = vsel %vm1183, %v2777, 0.0
        %v2958 = vsel %vm1184, %v2779, 0.0
        %v2959 = vsel %vm1185, %v2781, 0.0
        %v2960 = vsel %vm1186, %v2783, 0.0
        %v2961 = vsel %vm1187, %v2785, 0.0
        %v2962 = vsel %vm1188, %v2787, 0.0
        %v2963 = vsel %vm1189, %v2789, 0.0
        %v2964 = vsel %vm1190, %v2791, 0.0
        %v2965 = vsel %vm1191, %v2793, 0.0
        %v2966 = vsel %vm1192, %v2795, 0.0
        %v2967 = vsel %vm1193, %v2797, 0.0
        %v2968 = vsel %vm1194, %v2799, 0.0
        %v2969 = vsel %vm1195, %v2801, 0.0
        %v2970 = vsel %vm1196, %v2803, 0.0
        %v2971 = vsel %vm1197, %v2805, 0.0
        %v2972 = vsel %vm1198, %v2807, 0.0
        %v2973 = vsel %vm1199, %v2809, 0.0
        %v2974 = vsel %vm1200, %v2811, 0.0
        %v2975 = vsel %vm1201, %v2813, 0.0
        %v2976 = vsel %vm1202, %v2815, 0.0
        %v2977 = vsel %vm1203, %v2817, 0.0
        %v2978 = vsel %vm1204, %v2819, 0.0
        %v2979 = vsel %vm1205, %v2821, 0.0
        %v2980 = vsel %vm1206, %v2822, 0.0
        %v2981 = vsel %vm1079, %v2665, 0.0
        %v2982 = vsel %vm1080, %v2667, 0.0
        %v2983 = vsel %vm1081, %v2669, 0.0
        %v2984 = vsel %vm1082, %v2671, 0.0
        %v2985 = vsel %vm1083, %v2673, 0.0
        %v2986 = vsel %vm1084, %v2675, 0.0
        %v2987 = vsel %vm1085, %v2677, 0.0
        %v2988 = vsel %vm1086, %v2679, 0.0
        %v2989 = vsel %vm1087, %v2681, 0.0
        %v2990 = vsel %vm1088, %v2683, 0.0
        %v2991 = vsel %vm1089, %v2685, 0.0
        %v2992 = vsel %vm1090, %v2687, 0.0
        %v2993 = vsel %vm1091, %v2689, 0.0
        %v2994 = vsel %vm1092, %v2691, 0.0
        %v2995 = vsel %vm1093, %v2693, 0.0
        %v2996 = vsel %vm1094, %v2695, 0.0
        %v2997 = vsel %vm1095, %v2697, 0.0
        %v2998 = vsel %vm1096, %v2699, 0.0
        %v2999 = vsel %vm1097, %v2701, 0.0
        %v3000 = vsel %vm1098, %v2703, 0.0
        %v3001 = vsel %vm1099, %v2705, 0.0
        %v3002 = vsel %vm1100, %v2707, 0.0
        %v3003 = vsel %vm1101, %v2709, 0.0
        %v3004 = vsel %vm1102, %v2711, 0.0
        %v3005 = vsel %vm1103, %v2713, 0.0
        %v3006 = vsel %vm1104, %v2715, 0.0
        %v3007 = vsel %vm1105, %v2717, 0.0
        %v3008 = vsel %vm1106, %v2719, 0.0
        %v3009 = vsel %vm1107, %v2721, 0.0
        %v3010 = vsel %vm1108, %v2723, 0.0
        %v3011 = vsel %vm1109, %v2724, 0.0
        %v3012 = vsel %vm1175, %v2765, 0.0
        %v3013 = vsel %vm1176, %v2767, 0.0
        %v3014 = vsel %vm1177, %v2769, 0.0
        %v3015 = vsel %vm1178, %v2771, 0.0
        %v3016 = vsel %vm1179, %v2773, 0.0
        %v3017 = vsel %vm1180, %v2775, 0.0
        %v3018 = vsel %vm1181, %v2777, 0.0
        %v3019 = vsel %vm1182, %v2779, 0.0
        %v3020 = vsel %vm1183, %v2781, 0.0
        %v3021 = vsel %vm1184, %v2783, 0.0
        %v3022 = vsel %vm1185, %v2785, 0.0
        %v3023 = vsel %vm1186, %v2787, 0.0
        %v3024 = vsel %vm1187, %v2789, 0.0
        %v3025 = vsel %vm1188, %v2791, 0.0
        %v3026 = vsel %vm1189, %v2793, 0.0
        %v3027 = vsel %vm1190, %v2795, 0.0
        %v3028 = vsel %vm1191, %v2797, 0.0
        %v3029 = vsel %vm1192, %v2799, 0.0
        %v3030 = vsel %vm1193, %v2801, 0.0
        %v3031 = vsel %vm1194, %v2803, 0.0
        %v3032 = vsel %vm1195, %v2805, 0.0
        %v3033 = vsel %vm1196, %v2807, 0.0
        %v3034 = vsel %vm1197, %v2809, 0.0
        %v3035 = vsel %vm1198, %v2811, 0.0
        %v3036 = vsel %vm1199, %v2813, 0.0
        %v3037 = vsel %vm1200, %v2815, 0.0
        %v3038 = vsel %vm1201, %v2817, 0.0
        %v3039 = vsel %vm1202, %v2819, 0.0
        %v3040 = vsel %vm1203, %v2821, 0.0
        %v3041 = vsel %vm1204, %v2822, 0.0
        %v3042 = vld [vmem:[#allocation8] sm:$0xff]
        %v3043 = vld [vmem:[#allocation8 + $0x8] sm:$0xff]
        %v3044 = vld [vmem:[#allocation8 + $0x10] sm:$0xff]
        %v3045 = vld [vmem:[#allocation8 + $0x18] sm:$0xff]
        %v3046 = vld [vmem:[#allocation8 + $0x20] sm:$0xff]
        %v3047 = vld [vmem:[#allocation8 + $0x28] sm:$0xff]
        %v3048 = vld [vmem:[#allocation8 + $0x30] sm:$0xff]
        %v3049 = vld [vmem:[#allocation8 + $0x38] sm:$0xff]
        %v3050 = vld [vmem:[#allocation8 + $0x40] sm:$0xff]
        %v3051 = vld [vmem:[#allocation8 + $0x48] sm:$0xff]
        %v3052 = vld [vmem:[#allocation8 + $0x50] sm:$0xff]
        %v3053 = vld [vmem:[#allocation8 + $0x58] sm:$0xff]
        %v3054 = vld [vmem:[#allocation8 + $0x60] sm:$0xff]
        %v3055 = vld [vmem:[#allocation8 + $0x68] sm:$0xff]
        %v3056 = vld [vmem:[#allocation8 + $0x70] sm:$0xff]
        %v3057 = vld [vmem:[#allocation8 + $0x78] sm:$0xff]
        %v3058 = vld [vmem:[#allocation8 + $0x80] sm:$0xff]
        %v3059 = vld [vmem:[#allocation8 + $0x88] sm:$0xff]
        %v3060 = vld [vmem:[#allocation8 + $0x90] sm:$0xff]
        %v3061 = vld [vmem:[#allocation8 + $0x98] sm:$0xff]
        %v3062 = vld [vmem:[#allocation8 + $0xa0] sm:$0xff]
        %v3063 = vld [vmem:[#allocation8 + $0xa8] sm:$0xff]
        %v3064 = vld [vmem:[#allocation8 + $0xb0] sm:$0xff]
        %v3065 = vld [vmem:[#allocation8 + $0xb8] sm:$0xff]
        %v3066 = vld [vmem:[#allocation8 + $0xc0] sm:$0xff]
        %v3067 = vld [vmem:[#allocation8 + $0xc8] sm:$0xff]
        %v3068 = vld [vmem:[#allocation8 + $0xd0] sm:$0xff]
        %v3069 = vld [vmem:[#allocation8 + $0xd8] sm:$0xff]
        %v3070 = vld [vmem:[#allocation8 + $0xe0] sm:$0xff]
        %v3071 = vld [vmem:[#allocation8 + $0xe8] sm:$0xff]
        %v3072 = vld [vmem:[#allocation8 + $0xf0] sm:$0xff]
        %v3073 = vld [vmem:[#allocation8 + $0xf8] sm:$0xff]
        %v3074 = vld [vmem:[#allocation8 + $0x100] sm:$0xff]
        %v3075 = vld [vmem:[#allocation8 + $0x108] sm:$0xff]
        %v3076 = vld [vmem:[#allocation8 + $0x110] sm:$0xff]
        %v3077 = vld [vmem:[#allocation8 + $0x118] sm:$0xff]
        %v3078 = vld [vmem:[#allocation8 + $0x120] sm:$0xff]
        %v3079 = vld [vmem:[#allocation8 + $0x128] sm:$0xff]
        %v3080 = vld [vmem:[#allocation8 + $0x130] sm:$0xff]
        %v3081 = vld [vmem:[#allocation8 + $0x138] sm:$0xff]
        %v3082 = vld [vmem:[#allocation8 + $0x140] sm:$0xff]
        %v3083 = vld [vmem:[#allocation8 + $0x148] sm:$0xff]
        %v3084 = vld [vmem:[#allocation8 + $0x150] sm:$0xff]
        %v3085 = vld [vmem:[#allocation8 + $0x158] sm:$0xff]
        %v3086 = vld [vmem:[#allocation8 + $0x160] sm:$0xff]
        %v3087 = vld [vmem:[#allocation8 + $0x168] sm:$0xff]
        %v3088 = vld [vmem:[#allocation8 + $0x170] sm:$0xff]
        %v3089 = vld [vmem:[#allocation8 + $0x178] sm:$0xff]
        %v3090 = vld [vmem:[#allocation8 + $0x180] sm:$0xff]
        %v3091 = vld [vmem:[#allocation8 + $0x188] sm:$0xff]
        %v3092 = vld [vmem:[#allocation8 + $0x190] sm:$0xff]
        %v3093 = vld [vmem:[#allocation8 + $0x198] sm:$0xff]
        %v3094 = vld [vmem:[#allocation8 + $0x1a0] sm:$0xff]
        %v3095 = vld [vmem:[#allocation8 + $0x1a8] sm:$0xff]
        %v3096 = vld [vmem:[#allocation8 + $0x1b0] sm:$0xff]
        %v3097 = vld [vmem:[#allocation8 + $0x1b8] sm:$0xff]
        %v3098 = vld [vmem:[#allocation8 + $0x1c0] sm:$0xff]
        %v3099 = vld [vmem:[#allocation8 + $0x1c8] sm:$0xff]
        %v3100 = vld [vmem:[#allocation8 + $0x1d0] sm:$0xff]
        %v3101 = vld [vmem:[#allocation8 + $0x1d8] sm:$0xff]
        %v3102 = vld [vmem:[#allocation8 + $0x1e0] sm:$0xff]
        %v3103 = vld [vmem:[#allocation8 + $0x1e8] sm:$0xff]
        %v3104 = vld [vmem:[#allocation8 + $0x1f0] sm:$0xff]
        %v3105 = vld [vmem:[#allocation8 + $0x1f8] sm:$0xff]
        %v3106 = vld [vmem:[#allocation8 + $0x200] sm:$0xff]
        %v3107 = vld [vmem:[#allocation8 + $0x208] sm:$0xff]
        %v3108 = vld [vmem:[#allocation8 + $0x210] sm:$0xff]
        %v3109 = vld [vmem:[#allocation8 + $0x218] sm:$0xff]
        %v3110 = vld [vmem:[#allocation8 + $0x220] sm:$0xff]
        %v3111 = vld [vmem:[#allocation8 + $0x228] sm:$0xff]
        %v3112 = vld [vmem:[#allocation8 + $0x230] sm:$0xff]
        %v3113 = vld [vmem:[#allocation8 + $0x238] sm:$0xff]
        %v3114 = vld [vmem:[#allocation8 + $0x240] sm:$0xff]
        %v3115 = vld [vmem:[#allocation8 + $0x248] sm:$0xff]
        %v3116 = vld [vmem:[#allocation8 + $0x250] sm:$0xff]
        %v3117 = vld [vmem:[#allocation8 + $0x258] sm:$0xff]
        %v3118 = vld [vmem:[#allocation8 + $0x260] sm:$0xff]
        %v3119 = vld [vmem:[#allocation8 + $0x268] sm:$0xff]
        %v3120 = vld [vmem:[#allocation8 + $0x270] sm:$0xff]
        %v3121 = vld [vmem:[#allocation8 + $0x278] sm:$0xff]
        %v3122 = vld [vmem:[#allocation8 + $0x280] sm:$0xff]
        %v3123 = vld [vmem:[#allocation8 + $0x288] sm:$0xff]
        %v3124 = vld [vmem:[#allocation8 + $0x290] sm:$0xff]
        %v3125 = vld [vmem:[#allocation8 + $0x298] sm:$0xff]
        %v3126 = vld [vmem:[#allocation8 + $0x2a0] sm:$0xff]
        %v3127 = vld [vmem:[#allocation8 + $0x2a8] sm:$0xff]
        %v3128 = vld [vmem:[#allocation8 + $0x2b0] sm:$0xff]
        %v3129 = vld [vmem:[#allocation8 + $0x2b8] sm:$0xff]
        %v3130 = vld [vmem:[#allocation8 + $0x2c0] sm:$0xff]
        %v3131 = vld [vmem:[#allocation8 + $0x2c8] sm:$0xff]
        %v3132 = vld [vmem:[#allocation8 + $0x2d0] sm:$0xff]
        %v3133 = vld [vmem:[#allocation8 + $0x2d8] sm:$0xff]
        %v3134 = vld [vmem:[#allocation8 + $0x2e0] sm:$0xff]
        %v3135 = vld [vmem:[#allocation8 + $0x2e8] sm:$0xff]
        %v3136 = vld [vmem:[#allocation8 + $0x2f0] sm:$0xff]
        %v3137 = vld [vmem:[#allocation8 + $0x2f8] sm:$0xff]
        %v3138 = vld [vmem:[#allocation8 + $0x300] sm:$0xff]
        %v3139 = vld [vmem:[#allocation8 + $0x308] sm:$0xff]
        %v3140 = vld [vmem:[#allocation8 + $0x310] sm:$0xff]
        %v3141 = vld [vmem:[#allocation8 + $0x318] sm:$0xff]
        %v3142 = vld [vmem:[#allocation8 + $0x320] sm:$0xff]
        %v3143 = vld [vmem:[#allocation8 + $0x328] sm:$0xff]
        %v3144 = vld [vmem:[#allocation8 + $0x330] sm:$0xff]
        %v3145 = vld [vmem:[#allocation8 + $0x338] sm:$0xff]
        %v3146 = vld [vmem:[#allocation8 + $0x340] sm:$0xff]
        %v3147 = vld [vmem:[#allocation8 + $0x348] sm:$0xff]
        %v3148 = vld [vmem:[#allocation8 + $0x350] sm:$0xff]
        %v3149 = vld [vmem:[#allocation8 + $0x358] sm:$0xff]
        %v3150 = vld [vmem:[#allocation8 + $0x360] sm:$0xff]
        %v3151 = vld [vmem:[#allocation8 + $0x368] sm:$0xff]
        %v3152 = vld [vmem:[#allocation8 + $0x370] sm:$0xff]
        %v3153 = vld [vmem:[#allocation8 + $0x378] sm:$0xff]
        %v3154 = vld [vmem:[#allocation8 + $0x380] sm:$0xff]
        %v3155 = vld [vmem:[#allocation8 + $0x388] sm:$0xff]
        %v3156 = vld [vmem:[#allocation8 + $0x390] sm:$0xff]
        %v3157 = vld [vmem:[#allocation8 + $0x398] sm:$0xff]
        %v3158 = vld [vmem:[#allocation8 + $0x3a0] sm:$0xff]
        %v3159 = vld [vmem:[#allocation8 + $0x3a8] sm:$0xff]
        %v3160 = vld [vmem:[#allocation8 + $0x3b0] sm:$0xff]
        %v3161 = vld [vmem:[#allocation8 + $0x3b8] sm:$0xff]
        %v3162 = vld [vmem:[#allocation8 + $0x3c0] sm:$0xff]
        %v3163 = vld [vmem:[#allocation8 + $0x3c8] sm:$0xff]
        %v3164 = vld [vmem:[#allocation8 + $0x3d0] sm:$0xff]
        %v3165 = vld [vmem:[#allocation8 + $0x3d8] sm:$0xff]
        %v3166 = vld [vmem:[#allocation8 + $0x3e0] sm:$0xff]
        %v3167 = vld [vmem:[#allocation8 + $0x3e8] sm:$0xff]
        %v3168 = vld [vmem:[#allocation8 + $0x3f0] sm:$0xff]
        %v3169 = vld [vmem:[#allocation8 + $0x3f8] sm:$0xff]
        %v3170 = vld [vmem:[#allocation8 + $0x400] sm:$0xff]
        %v3171 = vld [vmem:[#allocation8 + $0x408] sm:$0xff]
        %v3172 = vld [vmem:[#allocation8 + $0x410] sm:$0xff]
        %v3173 = vld [vmem:[#allocation8 + $0x418] sm:$0xff]
        %v3174 = vld [vmem:[#allocation8 + $0x420] sm:$0xff]
        %v3175 = vld [vmem:[#allocation8 + $0x428] sm:$0xff]
        %v3176 = vld [vmem:[#allocation8 + $0x430] sm:$0xff]
        %v3177 = vld [vmem:[#allocation8 + $0x438] sm:$0xff]
        %v3178 = vld [vmem:[#allocation8 + $0x440] sm:$0xff]
        %v3179 = vld [vmem:[#allocation8 + $0x448] sm:$0xff]
        %v3180 = vld [vmem:[#allocation8 + $0x450] sm:$0xff]
        %v3181 = vld [vmem:[#allocation8 + $0x458] sm:$0xff]
        %v3182 = vld [vmem:[#allocation8 + $0x460] sm:$0xff]
        %v3183 = vld [vmem:[#allocation8 + $0x468] sm:$0xff]
        %v3184 = vld [vmem:[#allocation8 + $0x470] sm:$0xff]
        %v3185 = vld [vmem:[#allocation8 + $0x478] sm:$0xff]
        %3186 = vmatpush.msra.mxu0 %v3057
        %3187 = vmatpush.msra.mxu0 %v3056
        %3188 = vmatpush.msra.mxu0 %v3055
        %3189 = vmatpush.msra.mxu0 %v3054
        %3190 = vmatpush.msra.mxu0 %v3053
        %3191 = vmatpush.msra.mxu0 %v3052
        %3192 = vmatpush.msra.mxu0 %v3051
        %3193 = vmatpush.msra.mxu0 %v3050
        %3194 = vmatpush.msra.mxu0 %v3049
        %3195 = vmatpush.msra.mxu0 %v3048
        %3196 = vmatpush.msra.mxu0 %v3047
        %3197 = vmatpush.msra.mxu0 %v3046
        %3198 = vmatpush.msra.mxu0 %v3045
        %3199 = vmatpush.msra.mxu0 %v3044
        %3200 = vmatpush.msra.mxu0 %v3043
        %3201 = vmatpush.msra.mxu0 %v3042
        %3202 = vmatmul.f32.gmra.mxu0 %v1111
        %v3203 = vpop.f32.mrf.mxu0
        %v3204 = vadd.f32 0.0, %v3203
        %3205 = vmatmul.f32.gmra.mxu0 %v1112
        %v3206 = vpop.f32.mrf.mxu0
        %v3207 = vadd.f32 0.0, %v3206
        %3208 = vmatmul.f32.gmra.mxu0 %v2856
        %v3209 = vpop.f32.mrf.mxu0
        %v3210 = vadd.f32 0.0, %v3209
        %3211 = vmatmul.f32.gmra.mxu0 %v2857
        %v3212 = vpop.f32.mrf.mxu0
        %v3213 = vadd.f32 0.0, %v3212
        %3214 = vmatmul.f32.gmra.mxu0 %v2858
        %v3215 = vpop.f32.mrf.mxu0
        %v3216 = vadd.f32 0.0, %v3215
        %3217 = vmatmul.f32.gmra.mxu0 %v2859
        %v3218 = vpop.f32.mrf.mxu0
        %v3219 = vadd.f32 0.0, %v3218
        %3220 = vmatmul.f32.gmra.mxu0 %v2860
        %v3221 = vpop.f32.mrf.mxu0
        %v3222 = vadd.f32 0.0, %v3221
        %3223 = vmatmul.f32.gmra.mxu0 %v2861
        %v3224 = vpop.f32.mrf.mxu0
        %v3225 = vadd.f32 0.0, %v3224
        %3226 = vmatmul.f32.gmra.mxu0 %v2862
        %v3227 = vpop.f32.mrf.mxu0
        %v3228 = vadd.f32 0.0, %v3227
        %3229 = vmatmul.f32.gmra.mxu0 %v2863
        %v3230 = vpop.f32.mrf.mxu0
        %v3231 = vadd.f32 0.0, %v3230
        %3232 = vmatmul.f32.gmra.mxu0 %v2864
        %v3233 = vpop.f32.mrf.mxu0
        %v3234 = vadd.f32 0.0, %v3233
        %3235 = vmatmul.f32.gmra.mxu0 %v2865
        %v3236 = vpop.f32.mrf.mxu0
        %v3237 = vadd.f32 0.0, %v3236
        %3238 = vmatmul.f32.gmra.mxu0 %v2866
        %v3239 = vpop.f32.mrf.mxu0
        %v3240 = vadd.f32 0.0, %v3239
        %3241 = vmatmul.f32.gmra.mxu0 %v2867
        %v3242 = vpop.f32.mrf.mxu0
        %v3243 = vadd.f32 0.0, %v3242
        %3244 = vmatmul.f32.gmra.mxu0 %v2868
        %v3245 = vpop.f32.mrf.mxu0
        %v3246 = vadd.f32 0.0, %v3245
        %3247 = vmatmul.f32.gmra.mxu0 %v2869
        %v3248 = vpop.f32.mrf.mxu0
        %v3249 = vadd.f32 0.0, %v3248
        %3250 = vmatmul.f32.gmra.mxu0 %v2870
        %v3251 = vpop.f32.mrf.mxu0
        %v3252 = vadd.f32 0.0, %v3251
        %3253 = vmatmul.f32.gmra.mxu0 %v2871
        %v3254 = vpop.f32.mrf.mxu0
        %v3255 = vadd.f32 0.0, %v3254
        %3256 = vmatmul.f32.gmra.mxu0 %v2872
        %v3257 = vpop.f32.mrf.mxu0
        %v3258 = vadd.f32 0.0, %v3257
        %3259 = vmatmul.f32.gmra.mxu0 %v2873
        %v3260 = vpop.f32.mrf.mxu0
        %v3261 = vadd.f32 0.0, %v3260
        %3262 = vmatmul.f32.gmra.mxu0 %v2874
        %v3263 = vpop.f32.mrf.mxu0
        %v3264 = vadd.f32 0.0, %v3263
        %3265 = vmatmul.f32.gmra.mxu0 %v2875
        %v3266 = vpop.f32.mrf.mxu0
        %v3267 = vadd.f32 0.0, %v3266
        %3268 = vmatmul.f32.gmra.mxu0 %v2876
        %v3269 = vpop.f32.mrf.mxu0
        %v3270 = vadd.f32 0.0, %v3269
        %3271 = vmatmul.f32.gmra.mxu0 %v2877
        %v3272 = vpop.f32.mrf.mxu0
        %v3273 = vadd.f32 0.0, %v3272
        %3274 = vmatmul.f32.gmra.mxu0 %v2878
        %v3275 = vpop.f32.mrf.mxu0
        %v3276 = vadd.f32 0.0, %v3275
        %3277 = vmatmul.f32.gmra.mxu0 %v2879
        %v3278 = vpop.f32.mrf.mxu0
        %v3279 = vadd.f32 0.0, %v3278
        %3280 = vmatmul.f32.gmra.mxu0 %v2880
        %v3281 = vpop.f32.mrf.mxu0
        %v3282 = vadd.f32 0.0, %v3281
        %3283 = vmatmul.f32.gmra.mxu0 %v2881
        %v3284 = vpop.f32.mrf.mxu0
        %v3285 = vadd.f32 0.0, %v3284
        %3286 = vmatmul.f32.gmra.mxu0 %v2882
        %v3287 = vpop.f32.mrf.mxu0
        %v3288 = vadd.f32 0.0, %v3287
        %3289 = vmatmul.f32.gmra.mxu0 %v2883
        %v3290 = vpop.f32.mrf.mxu0
        %v3291 = vadd.f32 0.0, %v3290
        %3292 = vmatmul.f32.gmra.mxu0 %v2884
        %v3293 = vpop.f32.mrf.mxu0
        %v3294 = vadd.f32 0.0, %v3293
        %3295 = vmatmul.f32.gmra.mxu0 %v2885
        %v3296 = vpop.f32.mrf.mxu0
        %v3297 = vadd.f32 0.0, %v3296
        %3298 = vdwg.mxu0
        %3299 = vmatpush.msra.mxu0 %v3073
        %3300 = vmatpush.msra.mxu0 %v3072
        %3301 = vmatpush.msra.mxu0 %v3071
        %3302 = vmatpush.msra.mxu0 %v3070
        %3303 = vmatpush.msra.mxu0 %v3069
        %3304 = vmatpush.msra.mxu0 %v3068
        %3305 = vmatpush.msra.mxu0 %v3067
        %3306 = vmatpush.msra.mxu0 %v3066
        %3307 = vmatpush.msra.mxu0 %v3065
        %3308 = vmatpush.msra.mxu0 %v3064
        %3309 = vmatpush.msra.mxu0 %v3063
        %3310 = vmatpush.msra.mxu0 %v3062
        %3311 = vmatpush.msra.mxu0 %v3061
        %3312 = vmatpush.msra.mxu0 %v3060
        %3313 = vmatpush.msra.mxu0 %v3059
        %3314 = vmatpush.msra.mxu0 %v3058
        %3315 = vmatmul.f32.gmra.mxu0 0.0
        %v3316 = vpop.f32.mrf.mxu0
        %v3317 = vadd.f32 %v3204, %v3316
        %3318 = vmatmul.f32.gmra.mxu0 0.0
        %v3319 = vpop.f32.mrf.mxu0
        %v3320 = vadd.f32 %v3207, %v3319
        %3321 = vmatmul.f32.gmra.mxu0 %v2596
        %v3322 = vpop.f32.mrf.mxu0
        %v3323 = vadd.f32 %v3210, %v3322
        %3324 = vmatmul.f32.gmra.mxu0 %v2597
        %v3325 = vpop.f32.mrf.mxu0
        %v3326 = vadd.f32 %v3213, %v3325
        %3327 = vmatmul.f32.gmra.mxu0 %v2598
        %v3328 = vpop.f32.mrf.mxu0
        %v3329 = vadd.f32 %v3216, %v3328
        %3330 = vmatmul.f32.gmra.mxu0 %v2599
        %v3331 = vpop.f32.mrf.mxu0
        %v3332 = vadd.f32 %v3219, %v3331
        %3333 = vmatmul.f32.gmra.mxu0 %v2600
        %v3334 = vpop.f32.mrf.mxu0
        %v3335 = vadd.f32 %v3222, %v3334
        %3336 = vmatmul.f32.gmra.mxu0 %v2601
        %v3337 = vpop.f32.mrf.mxu0
        %v3338 = vadd.f32 %v3225, %v3337
        %3339 = vmatmul.f32.gmra.mxu0 %v2602
        %v3340 = vpop.f32.mrf.mxu0
        %v3341 = vadd.f32 %v3228, %v3340
        %3342 = vmatmul.f32.gmra.mxu0 %v2603
        %v3343 = vpop.f32.mrf.mxu0
        %v3344 = vadd.f32 %v3231, %v3343
        %3345 = vmatmul.f32.gmra.mxu0 %v2604
        %v3346 = vpop.f32.mrf.mxu0
        %v3347 = vadd.f32 %v3234, %v3346
        %3348 = vmatmul.f32.gmra.mxu0 %v2605
        %v3349 = vpop.f32.mrf.mxu0
        %v3350 = vadd.f32 %v3237, %v3349
        %3351 = vmatmul.f32.gmra.mxu0 %v2606
        %v3352 = vpop.f32.mrf.mxu0
        %v3353 = vadd.f32 %v3240, %v3352
        %3354 = vmatmul.f32.gmra.mxu0 %v2607
        %v3355 = vpop.f32.mrf.mxu0
        %v3356 = vadd.f32 %v3243, %v3355
        %3357 = vmatmul.f32.gmra.mxu0 %v2608
        %v3358 = vpop.f32.mrf.mxu0
        %v3359 = vadd.f32 %v3246, %v3358
        %3360 = vmatmul.f32.gmra.mxu0 %v2609
        %v3361 = vpop.f32.mrf.mxu0
        %v3362 = vadd.f32 %v3249, %v3361
        %3363 = vmatmul.f32.gmra.mxu0 %v2610
        %v3364 = vpop.f32.mrf.mxu0
        %v3365 = vadd.f32 %v3252, %v3364
        %3366 = vmatmul.f32.gmra.mxu0 %v2611
        %v3367 = vpop.f32.mrf.mxu0
        %v3368 = vadd.f32 %v3255, %v3367
        %3369 = vmatmul.f32.gmra.mxu0 %v2612
        %v3370 = vpop.f32.mrf.mxu0
        %v3371 = vadd.f32 %v3258, %v3370
        %3372 = vmatmul.f32.gmra.mxu0 %v2613
        %v3373 = vpop.f32.mrf.mxu0
        %v3374 = vadd.f32 %v3261, %v3373
        %3375 = vmatmul.f32.gmra.mxu0 %v2614
        %v3376 = vpop.f32.mrf.mxu0
        %v3377 = vadd.f32 %v3264, %v3376
        %3378 = vmatmul.f32.gmra.mxu0 %v2615
        %v3379 = vpop.f32.mrf.mxu0
        %v3380 = vadd.f32 %v3267, %v3379
        %3381 = vmatmul.f32.gmra.mxu0 %v2616
        %v3382 = vpop.f32.mrf.mxu0
        %v3383 = vadd.f32 %v3270, %v3382
        %3384 = vmatmul.f32.gmra.mxu0 %v2617
        %v3385 = vpop.f32.mrf.mxu0
        %v3386 = vadd.f32 %v3273, %v3385
        %3387 = vmatmul.f32.gmra.mxu0 %v2618
        %v3388 = vpop.f32.mrf.mxu0
        %v3389 = vadd.f32 %v3276, %v3388
        %3390 = vmatmul.f32.gmra.mxu0 %v2619
        %v3391 = vpop.f32.mrf.mxu0
        %v3392 = vadd.f32 %v3279, %v3391
        %3393 = vmatmul.f32.gmra.mxu0 %v2620
        %v3394 = vpop.f32.mrf.mxu0
        %v3395 = vadd.f32 %v3282, %v3394
        %3396 = vmatmul.f32.gmra.mxu0 %v2621
        %v3397 = vpop.f32.mrf.mxu0
        %v3398 = vadd.f32 %v3285, %v3397
        %3399 = vmatmul.f32.gmra.mxu0 %v2622
        %v3400 = vpop.f32.mrf.mxu0
        %v3401 = vadd.f32 %v3288, %v3400
        %3402 = vmatmul.f32.gmra.mxu0 %v2623
        %v3403 = vpop.f32.mrf.mxu0
        %v3404 = vadd.f32 %v3291, %v3403
        %3405 = vmatmul.f32.gmra.mxu0 %v2624
        %v3406 = vpop.f32.mrf.mxu0
        %v3407 = vadd.f32 %v3294, %v3406
        %3408 = vmatmul.f32.gmra.mxu0 %v2625
        %v3409 = vpop.f32.mrf.mxu0
        %v3410 = vadd.f32 %v3297, %v3409
        %3411 = vdwg.mxu0
        %3412 = vmatpush.msra.mxu0 %v3089
        %3413 = vmatpush.msra.mxu0 %v3088
        %3414 = vmatpush.msra.mxu0 %v3087
        %3415 = vmatpush.msra.mxu0 %v3086
        %3416 = vmatpush.msra.mxu0 %v3085
        %3417 = vmatpush.msra.mxu0 %v3084
        %3418 = vmatpush.msra.mxu0 %v3083
        %3419 = vmatpush.msra.mxu0 %v3082
        %3420 = vmatpush.msra.mxu0 %v3081
        %3421 = vmatpush.msra.mxu0 %v3080
        %3422 = vmatpush.msra.mxu0 %v3079
        %3423 = vmatpush.msra.mxu0 %v3078
        %3424 = vmatpush.msra.mxu0 %v3077
        %3425 = vmatpush.msra.mxu0 %v3076
        %3426 = vmatpush.msra.mxu0 %v3075
        %3427 = vmatpush.msra.mxu0 %v3074
        %3428 = vmatmul.f32.gmra.mxu0 %v1207
        %v3429 = vpop.f32.mrf.mxu0
        %v3430 = vadd.f32 %v3317, %v3429
        %3431 = vmatmul.f32.gmra.mxu0 %v2886
        %v3432 = vpop.f32.mrf.mxu0
        %v3433 = vadd.f32 %v3320, %v3432
        %3434 = vmatmul.f32.gmra.mxu0 %v2887
        %v3435 = vpop.f32.mrf.mxu0
        %v3436 = vadd.f32 %v3323, %v3435
        %3437 = vmatmul.f32.gmra.mxu0 %v2888
        %v3438 = vpop.f32.mrf.mxu0
        %v3439 = vadd.f32 %v3326, %v3438
        %3440 = vmatmul.f32.gmra.mxu0 %v2889
        %v3441 = vpop.f32.mrf.mxu0
        %v3442 = vadd.f32 %v3329, %v3441
        %3443 = vmatmul.f32.gmra.mxu0 %v2890
        %v3444 = vpop.f32.mrf.mxu0
        %v3445 = vadd.f32 %v3332, %v3444
        %3446 = vmatmul.f32.gmra.mxu0 %v2891
        %v3447 = vpop.f32.mrf.mxu0
        %v3448 = vadd.f32 %v3335, %v3447
        %3449 = vmatmul.f32.gmra.mxu0 %v2892
        %v3450 = vpop.f32.mrf.mxu0
        %v3451 = vadd.f32 %v3338, %v3450
        %3452 = vmatmul.f32.gmra.mxu0 %v2893
        %v3453 = vpop.f32.mrf.mxu0
        %v3454 = vadd.f32 %v3341, %v3453
        %3455 = vmatmul.f32.gmra.mxu0 %v2894
        %v3456 = vpop.f32.mrf.mxu0
        %v3457 = vadd.f32 %v3344, %v3456
        %3458 = vmatmul.f32.gmra.mxu0 %v2895
        %v3459 = vpop.f32.mrf.mxu0
        %v3460 = vadd.f32 %v3347, %v3459
        %3461 = vmatmul.f32.gmra.mxu0 %v2896
        %v3462 = vpop.f32.mrf.mxu0
        %v3463 = vadd.f32 %v3350, %v3462
        %3464 = vmatmul.f32.gmra.mxu0 %v2897
        %v3465 = vpop.f32.mrf.mxu0
        %v3466 = vadd.f32 %v3353, %v3465
        %3467 = vmatmul.f32.gmra.mxu0 %v2898
        %v3468 = vpop.f32.mrf.mxu0
        %v3469 = vadd.f32 %v3356, %v3468
        %3470 = vmatmul.f32.gmra.mxu0 %v2899
        %v3471 = vpop.f32.mrf.mxu0
        %v3472 = vadd.f32 %v3359, %v3471
        %3473 = vmatmul.f32.gmra.mxu0 %v2900
        %v3474 = vpop.f32.mrf.mxu0
        %v3475 = vadd.f32 %v3362, %v3474
        %3476 = vmatmul.f32.gmra.mxu0 %v2901
        %v3477 = vpop.f32.mrf.mxu0
        %v3478 = vadd.f32 %v3365, %v3477
        %3479 = vmatmul.f32.gmra.mxu0 %v2902
        %v3480 = vpop.f32.mrf.mxu0
        %v3481 = vadd.f32 %v3368, %v3480
        %3482 = vmatmul.f32.gmra.mxu0 %v2903
        %v3483 = vpop.f32.mrf.mxu0
        %v3484 = vadd.f32 %v3371, %v3483
        %3485 = vmatmul.f32.gmra.mxu0 %v2904
        %v3486 = vpop.f32.mrf.mxu0
        %v3487 = vadd.f32 %v3374, %v3486
        %3488 = vmatmul.f32.gmra.mxu0 %v2905
        %v3489 = vpop.f32.mrf.mxu0
        %v3490 = vadd.f32 %v3377, %v3489
        %3491 = vmatmul.f32.gmra.mxu0 %v2906
        %v3492 = vpop.f32.mrf.mxu0
        %v3493 = vadd.f32 %v3380, %v3492
        %3494 = vmatmul.f32.gmra.mxu0 %v2907
        %v3495 = vpop.f32.mrf.mxu0
        %v3496 = vadd.f32 %v3383, %v3495
        %3497 = vmatmul.f32.gmra.mxu0 %v2908
        %v3498 = vpop.f32.mrf.mxu0
        %v3499 = vadd.f32 %v3386, %v3498
        %3500 = vmatmul.f32.gmra.mxu0 %v2909
        %v3501 = vpop.f32.mrf.mxu0
        %v3502 = vadd.f32 %v3389, %v3501
        %3503 = vmatmul.f32.gmra.mxu0 %v2910
        %v3504 = vpop.f32.mrf.mxu0
        %v3505 = vadd.f32 %v3392, %v3504
        %3506 = vmatmul.f32.gmra.mxu0 %v2911
        %v3507 = vpop.f32.mrf.mxu0
        %v3508 = vadd.f32 %v3395, %v3507
        %3509 = vmatmul.f32.gmra.mxu0 %v2912
        %v3510 = vpop.f32.mrf.mxu0
        %v3511 = vadd.f32 %v3398, %v3510
        %3512 = vmatmul.f32.gmra.mxu0 %v2913
        %v3513 = vpop.f32.mrf.mxu0
        %v3514 = vadd.f32 %v3401, %v3513
        %3515 = vmatmul.f32.gmra.mxu0 %v2914
        %v3516 = vpop.f32.mrf.mxu0
        %v3517 = vadd.f32 %v3404, %v3516
        %3518 = vmatmul.f32.gmra.mxu0 %v2915
        %v3519 = vpop.f32.mrf.mxu0
        %v3520 = vadd.f32 %v3407, %v3519
        %3521 = vmatmul.f32.gmra.mxu0 %v2916
        %v3522 = vpop.f32.mrf.mxu0
        %v3523 = vadd.f32 %v3410, %v3522
        %3524 = vdwg.mxu0
        %3525 = vmatpush.msra.mxu0 %v3105
        %3526 = vmatpush.msra.mxu0 %v3104
        %3527 = vmatpush.msra.mxu0 %v3103
        %3528 = vmatpush.msra.mxu0 %v3102
        %3529 = vmatpush.msra.mxu0 %v3101
        %3530 = vmatpush.msra.mxu0 %v3100
        %3531 = vmatpush.msra.mxu0 %v3099
        %3532 = vmatpush.msra.mxu0 %v3098
        %3533 = vmatpush.msra.mxu0 %v3097
        %3534 = vmatpush.msra.mxu0 %v3096
        %3535 = vmatpush.msra.mxu0 %v3095
        %3536 = vmatpush.msra.mxu0 %v3094
        %3537 = vmatpush.msra.mxu0 %v3093
        %3538 = vmatpush.msra.mxu0 %v3092
        %3539 = vmatpush.msra.mxu0 %v3091
        %3540 = vmatpush.msra.mxu0 %v3090
        %3541 = vmatmul.f32.gmra.mxu0 %v2917
        %v3542 = vpop.f32.mrf.mxu0
        %v3543 = vadd.f32 %v3430, %v3542
        %3544 = vmatmul.f32.gmra.mxu0 %v2918
        %v3545 = vpop.f32.mrf.mxu0
        %v3546 = vadd.f32 %v3433, %v3545
        %3547 = vmatmul.f32.gmra.mxu0 %v2919
        %v3548 = vpop.f32.mrf.mxu0
        %v3549 = vadd.f32 %v3436, %v3548
        %3550 = vmatmul.f32.gmra.mxu0 %v2920
        %v3551 = vpop.f32.mrf.mxu0
        %v3552 = vadd.f32 %v3439, %v3551
        %3553 = vmatmul.f32.gmra.mxu0 %v2921
        %v3554 = vpop.f32.mrf.mxu0
        %v3555 = vadd.f32 %v3442, %v3554
        %3556 = vmatmul.f32.gmra.mxu0 %v2922
        %v3557 = vpop.f32.mrf.mxu0
        %v3558 = vadd.f32 %v3445, %v3557
        %3559 = vmatmul.f32.gmra.mxu0 %v2923
        %v3560 = vpop.f32.mrf.mxu0
        %v3561 = vadd.f32 %v3448, %v3560
        %3562 = vmatmul.f32.gmra.mxu0 %v2924
        %v3563 = vpop.f32.mrf.mxu0
        %v3564 = vadd.f32 %v3451, %v3563
        %3565 = vmatmul.f32.gmra.mxu0 %v2925
        %v3566 = vpop.f32.mrf.mxu0
        %v3567 = vadd.f32 %v3454, %v3566
        %3568 = vmatmul.f32.gmra.mxu0 %v2926
        %v3569 = vpop.f32.mrf.mxu0
        %v3570 = vadd.f32 %v3457, %v3569
        %3571 = vmatmul.f32.gmra.mxu0 %v2927
        %v3572 = vpop.f32.mrf.mxu0
        %v3573 = vadd.f32 %v3460, %v3572
        %3574 = vmatmul.f32.gmra.mxu0 %v2928
        %v3575 = vpop.f32.mrf.mxu0
        %v3576 = vadd.f32 %v3463, %v3575
        %3577 = vmatmul.f32.gmra.mxu0 %v2929
        %v3578 = vpop.f32.mrf.mxu0
        %v3579 = vadd.f32 %v3466, %v3578
        %3580 = vmatmul.f32.gmra.mxu0 %v2930
        %v3581 = vpop.f32.mrf.mxu0
        %v3582 = vadd.f32 %v3469, %v3581
        %3583 = vmatmul.f32.gmra.mxu0 %v2931
        %v3584 = vpop.f32.mrf.mxu0
        %v3585 = vadd.f32 %v3472, %v3584
        %3586 = vmatmul.f32.gmra.mxu0 %v2932
        %v3587 = vpop.f32.mrf.mxu0
        %v3588 = vadd.f32 %v3475, %v3587
        %3589 = vmatmul.f32.gmra.mxu0 %v2933
        %v3590 = vpop.f32.mrf.mxu0
        %v3591 = vadd.f32 %v3478, %v3590
        %3592 = vmatmul.f32.gmra.mxu0 %v2934
        %v3593 = vpop.f32.mrf.mxu0
        %v3594 = vadd.f32 %v3481, %v3593
        %3595 = vmatmul.f32.gmra.mxu0 %v2935
        %v3596 = vpop.f32.mrf.mxu0
        %v3597 = vadd.f32 %v3484, %v3596
        %3598 = vmatmul.f32.gmra.mxu0 %v2936
        %v3599 = vpop.f32.mrf.mxu0
        %v3600 = vadd.f32 %v3487, %v3599
        %3601 = vmatmul.f32.gmra.mxu0 %v2937
        %v3602 = vpop.f32.mrf.mxu0
        %v3603 = vadd.f32 %v3490, %v3602
        %3604 = vmatmul.f32.gmra.mxu0 %v2938
        %v3605 = vpop.f32.mrf.mxu0
        %v3606 = vadd.f32 %v3493, %v3605
        %3607 = vmatmul.f32.gmra.mxu0 %v2939
        %v3608 = vpop.f32.mrf.mxu0
        %v3609 = vadd.f32 %v3496, %v3608
        %3610 = vmatmul.f32.gmra.mxu0 %v2940
        %v3611 = vpop.f32.mrf.mxu0
        %v3612 = vadd.f32 %v3499, %v3611
        %3613 = vmatmul.f32.gmra.mxu0 %v2941
        %v3614 = vpop.f32.mrf.mxu0
        %v3615 = vadd.f32 %v3502, %v3614
        %3616 = vmatmul.f32.gmra.mxu0 %v2942
        %v3617 = vpop.f32.mrf.mxu0
        %v3618 = vadd.f32 %v3505, %v3617
        %3619 = vmatmul.f32.gmra.mxu0 %v2943
        %v3620 = vpop.f32.mrf.mxu0
        %v3621 = vadd.f32 %v3508, %v3620
        %3622 = vmatmul.f32.gmra.mxu0 %v2944
        %v3623 = vpop.f32.mrf.mxu0
        %v3624 = vadd.f32 %v3511, %v3623
        %3625 = vmatmul.f32.gmra.mxu0 %v2945
        %v3626 = vpop.f32.mrf.mxu0
        %v3627 = vadd.f32 %v3514, %v3626
        %3628 = vmatmul.f32.gmra.mxu0 %v2946
        %v3629 = vpop.f32.mrf.mxu0
        %v3630 = vadd.f32 %v3517, %v3629
        %3631 = vmatmul.f32.gmra.mxu0 %v2947
        %v3632 = vpop.f32.mrf.mxu0
        %v3633 = vadd.f32 %v3520, %v3632
        %3634 = vmatmul.f32.gmra.mxu0 %v2948
        %v3635 = vpop.f32.mrf.mxu0
        %v3636 = vadd.f32 %v3523, %v3635
        %3637 = vdwg.mxu0
        %3638 = vmatpush.msra.mxu0 %v3121
        %3639 = vmatpush.msra.mxu0 %v3120
        %3640 = vmatpush.msra.mxu0 %v3119
        %3641 = vmatpush.msra.mxu0 %v3118
        %3642 = vmatpush.msra.mxu0 %v3117
        %3643 = vmatpush.msra.mxu0 %v3116
        %3644 = vmatpush.msra.mxu0 %v3115
        %3645 = vmatpush.msra.mxu0 %v3114
        %3646 = vmatpush.msra.mxu0 %v3113
        %3647 = vmatpush.msra.mxu0 %v3112
        %3648 = vmatpush.msra.mxu0 %v3111
        %3649 = vmatpush.msra.mxu0 %v3110
        %3650 = vmatpush.msra.mxu0 %v3109
        %3651 = vmatpush.msra.mxu0 %v3108
        %3652 = vmatpush.msra.mxu0 %v3107
        %3653 = vmatpush.msra.mxu0 %v3106
        %3654 = vmatmul.f32.gmra.mxu0 %v2596
        %v3655 = vpop.f32.mrf.mxu0
        %v3656 = vadd.f32 %v3543, %v3655
        %3657 = vmatmul.f32.gmra.mxu0 %v2597
        %v3658 = vpop.f32.mrf.mxu0
        %v3659 = vadd.f32 %v3546, %v3658
        %3660 = vmatmul.f32.gmra.mxu0 %v2598
        %v3661 = vpop.f32.mrf.mxu0
        %v3662 = vadd.f32 %v3549, %v3661
        %3663 = vmatmul.f32.gmra.mxu0 %v2599
        %v3664 = vpop.f32.mrf.mxu0
        %v3665 = vadd.f32 %v3552, %v3664
        %3666 = vmatmul.f32.gmra.mxu0 %v2600
        %v3667 = vpop.f32.mrf.mxu0
        %v3668 = vadd.f32 %v3555, %v3667
        %3669 = vmatmul.f32.gmra.mxu0 %v2601
        %v3670 = vpop.f32.mrf.mxu0
        %v3671 = vadd.f32 %v3558, %v3670
        %3672 = vmatmul.f32.gmra.mxu0 %v2602
        %v3673 = vpop.f32.mrf.mxu0
        %v3674 = vadd.f32 %v3561, %v3673
        %3675 = vmatmul.f32.gmra.mxu0 %v2603
        %v3676 = vpop.f32.mrf.mxu0
        %v3677 = vadd.f32 %v3564, %v3676
        %3678 = vmatmul.f32.gmra.mxu0 %v2604
        %v3679 = vpop.f32.mrf.mxu0
        %v3680 = vadd.f32 %v3567, %v3679
        %3681 = vmatmul.f32.gmra.mxu0 %v2605
        %v3682 = vpop.f32.mrf.mxu0
        %v3683 = vadd.f32 %v3570, %v3682
        %3684 = vmatmul.f32.gmra.mxu0 %v2606
        %v3685 = vpop.f32.mrf.mxu0
        %v3686 = vadd.f32 %v3573, %v3685
        %3687 = vmatmul.f32.gmra.mxu0 %v2607
        %v3688 = vpop.f32.mrf.mxu0
        %v3689 = vadd.f32 %v3576, %v3688
        %3690 = vmatmul.f32.gmra.mxu0 %v2608
        %v3691 = vpop.f32.mrf.mxu0
        %v3692 = vadd.f32 %v3579, %v3691
        %3693 = vmatmul.f32.gmra.mxu0 %v2609
        %v3694 = vpop.f32.mrf.mxu0
        %v3695 = vadd.f32 %v3582, %v3694
        %3696 = vmatmul.f32.gmra.mxu0 %v2610
        %v3697 = vpop.f32.mrf.mxu0
        %v3698 = vadd.f32 %v3585, %v3697
        %3699 = vmatmul.f32.gmra.mxu0 %v2611
        %v3700 = vpop.f32.mrf.mxu0
        %v3701 = vadd.f32 %v3588, %v3700
        %3702 = vmatmul.f32.gmra.mxu0 %v2612
        %v3703 = vpop.f32.mrf.mxu0
        %v3704 = vadd.f32 %v3591, %v3703
        %3705 = vmatmul.f32.gmra.mxu0 %v2613
        %v3706 = vpop.f32.mrf.mxu0
        %v3707 = vadd.f32 %v3594, %v3706
        %3708 = vmatmul.f32.gmra.mxu0 %v2614
        %v3709 = vpop.f32.mrf.mxu0
        %v3710 = vadd.f32 %v3597, %v3709
        %3711 = vmatmul.f32.gmra.mxu0 %v2615
        %v3712 = vpop.f32.mrf.mxu0
        %v3713 = vadd.f32 %v3600, %v3712
        %3714 = vmatmul.f32.gmra.mxu0 %v2616
        %v3715 = vpop.f32.mrf.mxu0
        %v3716 = vadd.f32 %v3603, %v3715
        %3717 = vmatmul.f32.gmra.mxu0 %v2617
        %v3718 = vpop.f32.mrf.mxu0
        %v3719 = vadd.f32 %v3606, %v3718
        %3720 = vmatmul.f32.gmra.mxu0 %v2618
        %v3721 = vpop.f32.mrf.mxu0
        %v3722 = vadd.f32 %v3609, %v3721
        %3723 = vmatmul.f32.gmra.mxu0 %v2619
        %v3724 = vpop.f32.mrf.mxu0
        %v3725 = vadd.f32 %v3612, %v3724
        %3726 = vmatmul.f32.gmra.mxu0 %v2620
        %v3727 = vpop.f32.mrf.mxu0
        %v3728 = vadd.f32 %v3615, %v3727
        %3729 = vmatmul.f32.gmra.mxu0 %v2621
        %v3730 = vpop.f32.mrf.mxu0
        %v3731 = vadd.f32 %v3618, %v3730
        %3732 = vmatmul.f32.gmra.mxu0 %v2622
        %v3733 = vpop.f32.mrf.mxu0
        %v3734 = vadd.f32 %v3621, %v3733
        %3735 = vmatmul.f32.gmra.mxu0 %v2623
        %v3736 = vpop.f32.mrf.mxu0
        %v3737 = vadd.f32 %v3624, %v3736
        %3738 = vmatmul.f32.gmra.mxu0 %v2624
        %v3739 = vpop.f32.mrf.mxu0
        %v3740 = vadd.f32 %v3627, %v3739
        %3741 = vmatmul.f32.gmra.mxu0 %v2625
        %v3742 = vpop.f32.mrf.mxu0
        %v3743 = vadd.f32 %v3630, %v3742
        %3744 = vmatmul.f32.gmra.mxu0 %v2626
        %v3745 = vpop.f32.mrf.mxu0
        %v3746 = vadd.f32 %v3633, %v3745
        %3747 = vmatmul.f32.gmra.mxu0 %v2627
        %v3748 = vpop.f32.mrf.mxu0
        %v3749 = vadd.f32 %v3636, %v3748
        %3750 = vdwg.mxu0
        %3751 = vmatpush.msra.mxu0 %v3137
        %3752 = vmatpush.msra.mxu0 %v3136
        %3753 = vmatpush.msra.mxu0 %v3135
        %3754 = vmatpush.msra.mxu0 %v3134
        %3755 = vmatpush.msra.mxu0 %v3133
        %3756 = vmatpush.msra.mxu0 %v3132
        %3757 = vmatpush.msra.mxu0 %v3131
        %3758 = vmatpush.msra.mxu0 %v3130
        %3759 = vmatpush.msra.mxu0 %v3129
        %3760 = vmatpush.msra.mxu0 %v3128
        %3761 = vmatpush.msra.mxu0 %v3127
        %3762 = vmatpush.msra.mxu0 %v3126
        %3763 = vmatpush.msra.mxu0 %v3125
        %3764 = vmatpush.msra.mxu0 %v3124
        %3765 = vmatpush.msra.mxu0 %v3123
        %3766 = vmatpush.msra.mxu0 %v3122
        %3767 = vmatmul.f32.gmra.mxu0 %v2949
        %v3768 = vpop.f32.mrf.mxu0
        %v3769 = vadd.f32 %v3656, %v3768
        %3770 = vmatmul.f32.gmra.mxu0 %v2950
        %v3771 = vpop.f32.mrf.mxu0
        %v3772 = vadd.f32 %v3659, %v3771
        %3773 = vmatmul.f32.gmra.mxu0 %v2951
        %v3774 = vpop.f32.mrf.mxu0
        %v3775 = vadd.f32 %v3662, %v3774
        %3776 = vmatmul.f32.gmra.mxu0 %v2952
        %v3777 = vpop.f32.mrf.mxu0
        %v3778 = vadd.f32 %v3665, %v3777
        %3779 = vmatmul.f32.gmra.mxu0 %v2953
        %v3780 = vpop.f32.mrf.mxu0
        %v3781 = vadd.f32 %v3668, %v3780
        %3782 = vmatmul.f32.gmra.mxu0 %v2954
        %v3783 = vpop.f32.mrf.mxu0
        %v3784 = vadd.f32 %v3671, %v3783
        %3785 = vmatmul.f32.gmra.mxu0 %v2955
        %v3786 = vpop.f32.mrf.mxu0
        %v3787 = vadd.f32 %v3674, %v3786
        %3788 = vmatmul.f32.gmra.mxu0 %v2956
        %v3789 = vpop.f32.mrf.mxu0
        %v3790 = vadd.f32 %v3677, %v3789
        %3791 = vmatmul.f32.gmra.mxu0 %v2957
        %v3792 = vpop.f32.mrf.mxu0
        %v3793 = vadd.f32 %v3680, %v3792
        %3794 = vmatmul.f32.gmra.mxu0 %v2958
        %v3795 = vpop.f32.mrf.mxu0
        %v3796 = vadd.f32 %v3683, %v3795
        %3797 = vmatmul.f32.gmra.mxu0 %v2959
        %v3798 = vpop.f32.mrf.mxu0
        %v3799 = vadd.f32 %v3686, %v3798
        %3800 = vmatmul.f32.gmra.mxu0 %v2960
        %v3801 = vpop.f32.mrf.mxu0
        %v3802 = vadd.f32 %v3689, %v3801
        %3803 = vmatmul.f32.gmra.mxu0 %v2961
        %v3804 = vpop.f32.mrf.mxu0
        %v3805 = vadd.f32 %v3692, %v3804
        %3806 = vmatmul.f32.gmra.mxu0 %v2962
        %v3807 = vpop.f32.mrf.mxu0
        %v3808 = vadd.f32 %v3695, %v3807
        %3809 = vmatmul.f32.gmra.mxu0 %v2963
        %v3810 = vpop.f32.mrf.mxu0
        %v3811 = vadd.f32 %v3698, %v3810
        %3812 = vmatmul.f32.gmra.mxu0 %v2964
        %v3813 = vpop.f32.mrf.mxu0
        %v3814 = vadd.f32 %v3701, %v3813
        %3815 = vmatmul.f32.gmra.mxu0 %v2965
        %v3816 = vpop.f32.mrf.mxu0
        %v3817 = vadd.f32 %v3704, %v3816
        %3818 = vmatmul.f32.gmra.mxu0 %v2966
        %v3819 = vpop.f32.mrf.mxu0
        %v3820 = vadd.f32 %v3707, %v3819
        %3821 = vmatmul.f32.gmra.mxu0 %v2967
        %v3822 = vpop.f32.mrf.mxu0
        %v3823 = vadd.f32 %v3710, %v3822
        %3824 = vmatmul.f32.gmra.mxu0 %v2968
        %v3825 = vpop.f32.mrf.mxu0
        %v3826 = vadd.f32 %v3713, %v3825
        %3827 = vmatmul.f32.gmra.mxu0 %v2969
        %v3828 = vpop.f32.mrf.mxu0
        %v3829 = vadd.f32 %v3716, %v3828
        %3830 = vmatmul.f32.gmra.mxu0 %v2970
        %v3831 = vpop.f32.mrf.mxu0
        %v3832 = vadd.f32 %v3719, %v3831
        %3833 = vmatmul.f32.gmra.mxu0 %v2971
        %v3834 = vpop.f32.mrf.mxu0
        %v3835 = vadd.f32 %v3722, %v3834
        %3836 = vmatmul.f32.gmra.mxu0 %v2972
        %v3837 = vpop.f32.mrf.mxu0
        %v3838 = vadd.f32 %v3725, %v3837
        %3839 = vmatmul.f32.gmra.mxu0 %v2973
        %v3840 = vpop.f32.mrf.mxu0
        %v3841 = vadd.f32 %v3728, %v3840
        %3842 = vmatmul.f32.gmra.mxu0 %v2974
        %v3843 = vpop.f32.mrf.mxu0
        %v3844 = vadd.f32 %v3731, %v3843
        %3845 = vmatmul.f32.gmra.mxu0 %v2975
        %v3846 = vpop.f32.mrf.mxu0
        %v3847 = vadd.f32 %v3734, %v3846
        %3848 = vmatmul.f32.gmra.mxu0 %v2976
        %v3849 = vpop.f32.mrf.mxu0
        %v3850 = vadd.f32 %v3737, %v3849
        %3851 = vmatmul.f32.gmra.mxu0 %v2977
        %v3852 = vpop.f32.mrf.mxu0
        %v3853 = vadd.f32 %v3740, %v3852
        %3854 = vmatmul.f32.gmra.mxu0 %v2978
        %v3855 = vpop.f32.mrf.mxu0
        %v3856 = vadd.f32 %v3743, %v3855
        %3857 = vmatmul.f32.gmra.mxu0 %v2979
        %v3858 = vpop.f32.mrf.mxu0
        %v3859 = vadd.f32 %v3746, %v3858
        %3860 = vmatmul.f32.gmra.mxu0 %v2980
        %v3861 = vpop.f32.mrf.mxu0
        %v3862 = vadd.f32 %v3749, %v3861
        %3863 = vdwg.mxu0
        %3864 = vmatpush.msra.mxu0 %v3153
        %3865 = vmatpush.msra.mxu0 %v3152
        %3866 = vmatpush.msra.mxu0 %v3151
        %3867 = vmatpush.msra.mxu0 %v3150
        %3868 = vmatpush.msra.mxu0 %v3149
        %3869 = vmatpush.msra.mxu0 %v3148
        %3870 = vmatpush.msra.mxu0 %v3147
        %3871 = vmatpush.msra.mxu0 %v3146
        %3872 = vmatpush.msra.mxu0 %v3145
        %3873 = vmatpush.msra.mxu0 %v3144
        %3874 = vmatpush.msra.mxu0 %v3143
        %3875 = vmatpush.msra.mxu0 %v3142
        %3876 = vmatpush.msra.mxu0 %v3141
        %3877 = vmatpush.msra.mxu0 %v3140
        %3878 = vmatpush.msra.mxu0 %v3139
        %3879 = vmatpush.msra.mxu0 %v3138
        %3880 = vmatmul.f32.gmra.mxu0 %v2981
        %v3881 = vpop.f32.mrf.mxu0
        %v3882 = vadd.f32 %v3769, %v3881
        %3883 = vmatmul.f32.gmra.mxu0 %v2982
        %v3884 = vpop.f32.mrf.mxu0
        %v3885 = vadd.f32 %v3772, %v3884
        %3886 = vmatmul.f32.gmra.mxu0 %v2983
        %v3887 = vpop.f32.mrf.mxu0
        %v3888 = vadd.f32 %v3775, %v3887
        %3889 = vmatmul.f32.gmra.mxu0 %v2984
        %v3890 = vpop.f32.mrf.mxu0
        %v3891 = vadd.f32 %v3778, %v3890
        %3892 = vmatmul.f32.gmra.mxu0 %v2985
        %v3893 = vpop.f32.mrf.mxu0
        %v3894 = vadd.f32 %v3781, %v3893
        %3895 = vmatmul.f32.gmra.mxu0 %v2986
        %v3896 = vpop.f32.mrf.mxu0
        %v3897 = vadd.f32 %v3784, %v3896
        %3898 = vmatmul.f32.gmra.mxu0 %v2987
        %v3899 = vpop.f32.mrf.mxu0
        %v3900 = vadd.f32 %v3787, %v3899
        %3901 = vmatmul.f32.gmra.mxu0 %v2988
        %v3902 = vpop.f32.mrf.mxu0
        %v3903 = vadd.f32 %v3790, %v3902
        %3904 = vmatmul.f32.gmra.mxu0 %v2989
        %v3905 = vpop.f32.mrf.mxu0
        %v3906 = vadd.f32 %v3793, %v3905
        %3907 = vmatmul.f32.gmra.mxu0 %v2990
        %v3908 = vpop.f32.mrf.mxu0
        %v3909 = vadd.f32 %v3796, %v3908
        %3910 = vmatmul.f32.gmra.mxu0 %v2991
        %v3911 = vpop.f32.mrf.mxu0
        %v3912 = vadd.f32 %v3799, %v3911
        %3913 = vmatmul.f32.gmra.mxu0 %v2992
        %v3914 = vpop.f32.mrf.mxu0
        %v3915 = vadd.f32 %v3802, %v3914
        %3916 = vmatmul.f32.gmra.mxu0 %v2993
        %v3917 = vpop.f32.mrf.mxu0
        %v3918 = vadd.f32 %v3805, %v3917
        %3919 = vmatmul.f32.gmra.mxu0 %v2994
        %v3920 = vpop.f32.mrf.mxu0
        %v3921 = vadd.f32 %v3808, %v3920
        %3922 = vmatmul.f32.gmra.mxu0 %v2995
        %v3923 = vpop.f32.mrf.mxu0
        %v3924 = vadd.f32 %v3811, %v3923
        %3925 = vmatmul.f32.gmra.mxu0 %v2996
        %v3926 = vpop.f32.mrf.mxu0
        %v3927 = vadd.f32 %v3814, %v3926
        %3928 = vmatmul.f32.gmra.mxu0 %v2997
        %v3929 = vpop.f32.mrf.mxu0
        %v3930 = vadd.f32 %v3817, %v3929
        %3931 = vmatmul.f32.gmra.mxu0 %v2998
        %v3932 = vpop.f32.mrf.mxu0
        %v3933 = vadd.f32 %v3820, %v3932
        %3934 = vmatmul.f32.gmra.mxu0 %v2999
        %v3935 = vpop.f32.mrf.mxu0
        %v3936 = vadd.f32 %v3823, %v3935
        %3937 = vmatmul.f32.gmra.mxu0 %v3000
        %v3938 = vpop.f32.mrf.mxu0
        %v3939 = vadd.f32 %v3826, %v3938
        %3940 = vmatmul.f32.gmra.mxu0 %v3001
        %v3941 = vpop.f32.mrf.mxu0
        %v3942 = vadd.f32 %v3829, %v3941
        %3943 = vmatmul.f32.gmra.mxu0 %v3002
        %v3944 = vpop.f32.mrf.mxu0
        %v3945 = vadd.f32 %v3832, %v3944
        %3946 = vmatmul.f32.gmra.mxu0 %v3003
        %v3947 = vpop.f32.mrf.mxu0
        %v3948 = vadd.f32 %v3835, %v3947
        %3949 = vmatmul.f32.gmra.mxu0 %v3004
        %v3950 = vpop.f32.mrf.mxu0
        %v3951 = vadd.f32 %v3838, %v3950
        %3952 = vmatmul.f32.gmra.mxu0 %v3005
        %v3953 = vpop.f32.mrf.mxu0
        %v3954 = vadd.f32 %v3841, %v3953
        %3955 = vmatmul.f32.gmra.mxu0 %v3006
        %v3956 = vpop.f32.mrf.mxu0
        %v3957 = vadd.f32 %v3844, %v3956
        %3958 = vmatmul.f32.gmra.mxu0 %v3007
        %v3959 = vpop.f32.mrf.mxu0
        %v3960 = vadd.f32 %v3847, %v3959
        %3961 = vmatmul.f32.gmra.mxu0 %v3008
        %v3962 = vpop.f32.mrf.mxu0
        %v3963 = vadd.f32 %v3850, %v3962
        %3964 = vmatmul.f32.gmra.mxu0 %v3009
        %v3965 = vpop.f32.mrf.mxu0
        %v3966 = vadd.f32 %v3853, %v3965
        %3967 = vmatmul.f32.gmra.mxu0 %v3010
        %v3968 = vpop.f32.mrf.mxu0
        %v3969 = vadd.f32 %v3856, %v3968
        %3970 = vmatmul.f32.gmra.mxu0 %v3011
        %v3971 = vpop.f32.mrf.mxu0
        %v3972 = vadd.f32 %v3859, %v3971
        %3973 = vmatmul.f32.gmra.mxu0 %v1334
        %v3974 = vpop.f32.mrf.mxu0
        %v3975 = vadd.f32 %v3862, %v3974
        %3976 = vdwg.mxu0
        %3977 = vmatpush.msra.mxu0 %v3169
        %3978 = vmatpush.msra.mxu0 %v3168
        %3979 = vmatpush.msra.mxu0 %v3167
        %3980 = vmatpush.msra.mxu0 %v3166
        %3981 = vmatpush.msra.mxu0 %v3165
        %3982 = vmatpush.msra.mxu0 %v3164
        %3983 = vmatpush.msra.mxu0 %v3163
        %3984 = vmatpush.msra.mxu0 %v3162
        %3985 = vmatpush.msra.mxu0 %v3161
        %3986 = vmatpush.msra.mxu0 %v3160
        %3987 = vmatpush.msra.mxu0 %v3159
        %3988 = vmatpush.msra.mxu0 %v3158
        %3989 = vmatpush.msra.mxu0 %v3157
        %3990 = vmatpush.msra.mxu0 %v3156
        %3991 = vmatpush.msra.mxu0 %v3155
        %3992 = vmatpush.msra.mxu0 %v3154
        %3993 = vmatmul.f32.gmra.mxu0 %v2598
        %v3994 = vpop.f32.mrf.mxu0
        %v3995 = vadd.f32 %v3882, %v3994
        %3996 = vmatmul.f32.gmra.mxu0 %v2599
        %v3997 = vpop.f32.mrf.mxu0
        %v3998 = vadd.f32 %v3885, %v3997
        %3999 = vmatmul.f32.gmra.mxu0 %v2600
        %v4000 = vpop.f32.mrf.mxu0
        %v4001 = vadd.f32 %v3888, %v4000
        %4002 = vmatmul.f32.gmra.mxu0 %v2601
        %v4003 = vpop.f32.mrf.mxu0
        %v4004 = vadd.f32 %v3891, %v4003
        %4005 = vmatmul.f32.gmra.mxu0 %v2602
        %v4006 = vpop.f32.mrf.mxu0
        %v4007 = vadd.f32 %v3894, %v4006
        %4008 = vmatmul.f32.gmra.mxu0 %v2603
        %v4009 = vpop.f32.mrf.mxu0
        %v4010 = vadd.f32 %v3897, %v4009
        %4011 = vmatmul.f32.gmra.mxu0 %v2604
        %v4012 = vpop.f32.mrf.mxu0
        %v4013 = vadd.f32 %v3900, %v4012
        %4014 = vmatmul.f32.gmra.mxu0 %v2605
        %v4015 = vpop.f32.mrf.mxu0
        %v4016 = vadd.f32 %v3903, %v4015
        %4017 = vmatmul.f32.gmra.mxu0 %v2606
        %v4018 = vpop.f32.mrf.mxu0
        %v4019 = vadd.f32 %v3906, %v4018
        %4020 = vmatmul.f32.gmra.mxu0 %v2607
        %v4021 = vpop.f32.mrf.mxu0
        %v4022 = vadd.f32 %v3909, %v4021
        %4023 = vmatmul.f32.gmra.mxu0 %v2608
        %v4024 = vpop.f32.mrf.mxu0
        %v4025 = vadd.f32 %v3912, %v4024
        %4026 = vmatmul.f32.gmra.mxu0 %v2609
        %v4027 = vpop.f32.mrf.mxu0
        %v4028 = vadd.f32 %v3915, %v4027
        %4029 = vmatmul.f32.gmra.mxu0 %v2610
        %v4030 = vpop.f32.mrf.mxu0
        %v4031 = vadd.f32 %v3918, %v4030
        %4032 = vmatmul.f32.gmra.mxu0 %v2611
        %v4033 = vpop.f32.mrf.mxu0
        %v4034 = vadd.f32 %v3921, %v4033
        %4035 = vmatmul.f32.gmra.mxu0 %v2612
        %v4036 = vpop.f32.mrf.mxu0
        %v4037 = vadd.f32 %v3924, %v4036
        %4038 = vmatmul.f32.gmra.mxu0 %v2613
        %v4039 = vpop.f32.mrf.mxu0
        %v4040 = vadd.f32 %v3927, %v4039
        %4041 = vmatmul.f32.gmra.mxu0 %v2614
        %v4042 = vpop.f32.mrf.mxu0
        %v4043 = vadd.f32 %v3930, %v4042
        %4044 = vmatmul.f32.gmra.mxu0 %v2615
        %v4045 = vpop.f32.mrf.mxu0
        %v4046 = vadd.f32 %v3933, %v4045
        %4047 = vmatmul.f32.gmra.mxu0 %v2616
        %v4048 = vpop.f32.mrf.mxu0
        %v4049 = vadd.f32 %v3936, %v4048
        %4050 = vmatmul.f32.gmra.mxu0 %v2617
        %v4051 = vpop.f32.mrf.mxu0
        %v4052 = vadd.f32 %v3939, %v4051
        %4053 = vmatmul.f32.gmra.mxu0 %v2618
        %v4054 = vpop.f32.mrf.mxu0
        %v4055 = vadd.f32 %v3942, %v4054
        %4056 = vmatmul.f32.gmra.mxu0 %v2619
        %v4057 = vpop.f32.mrf.mxu0
        %v4058 = vadd.f32 %v3945, %v4057
        %4059 = vmatmul.f32.gmra.mxu0 %v2620
        %v4060 = vpop.f32.mrf.mxu0
        %v4061 = vadd.f32 %v3948, %v4060
        %4062 = vmatmul.f32.gmra.mxu0 %v2621
        %v4063 = vpop.f32.mrf.mxu0
        %v4064 = vadd.f32 %v3951, %v4063
        %4065 = vmatmul.f32.gmra.mxu0 %v2622
        %v4066 = vpop.f32.mrf.mxu0
        %v4067 = vadd.f32 %v3954, %v4066
        %4068 = vmatmul.f32.gmra.mxu0 %v2623
        %v4069 = vpop.f32.mrf.mxu0
        %v4070 = vadd.f32 %v3957, %v4069
        %4071 = vmatmul.f32.gmra.mxu0 %v2624
        %v4072 = vpop.f32.mrf.mxu0
        %v4073 = vadd.f32 %v3960, %v4072
        %4074 = vmatmul.f32.gmra.mxu0 %v2625
        %v4075 = vpop.f32.mrf.mxu0
        %v4076 = vadd.f32 %v3963, %v4075
        %4077 = vmatmul.f32.gmra.mxu0 %v2626
        %v4078 = vpop.f32.mrf.mxu0
        %v4079 = vadd.f32 %v3966, %v4078
        %4080 = vmatmul.f32.gmra.mxu0 %v2627
        %v4081 = vpop.f32.mrf.mxu0
        %v4082 = vadd.f32 %v3969, %v4081
        %4083 = vmatmul.f32.gmra.mxu0 0.0
        %v4084 = vpop.f32.mrf.mxu0
        %v4085 = vadd.f32 %v3972, %v4084
        %4086 = vmatmul.f32.gmra.mxu0 0.0
        %v4087 = vpop.f32.mrf.mxu0
        %v4088 = vadd.f32 %v3975, %v4087
        %4089 = vdwg.mxu0
        %4090 = vmatpush.msra.mxu0 %v3185
        %4091 = vmatpush.msra.mxu0 %v3184
        %4092 = vmatpush.msra.mxu0 %v3183
        %4093 = vmatpush.msra.mxu0 %v3182
        %4094 = vmatpush.msra.mxu0 %v3181
        %4095 = vmatpush.msra.mxu0 %v3180
        %4096 = vmatpush.msra.mxu0 %v3179
        %4097 = vmatpush.msra.mxu0 %v3178
        %4098 = vmatpush.msra.mxu0 %v3177
        %4099 = vmatpush.msra.mxu0 %v3176
        %4100 = vmatpush.msra.mxu0 %v3175
        %4101 = vmatpush.msra.mxu0 %v3174
        %4102 = vmatpush.msra.mxu0 %v3173
        %4103 = vmatpush.msra.mxu0 %v3172
        %4104 = vmatpush.msra.mxu0 %v3171
        %4105 = vmatpush.msra.mxu0 %v3170
        %4106 = vmatmul.f32.gmra.mxu0 %v3012
        %v4107 = vpop.f32.mrf.mxu0
        %v4108 = vadd.f32 %v3995, %v4107
        %4109 = vmatmul.f32.gmra.mxu0 %v3013
        %v4110 = vpop.f32.mrf.mxu0
        %v4111 = vadd.f32 %v3998, %v4110
        %4112 = vmatmul.f32.gmra.mxu0 %v3014
        %v4113 = vpop.f32.mrf.mxu0
        %v4114 = vadd.f32 %v4001, %v4113
        %4115 = vmatmul.f32.gmra.mxu0 %v3015
        %v4116 = vpop.f32.mrf.mxu0
        %v4117 = vadd.f32 %v4004, %v4116
        %4118 = vmatmul.f32.gmra.mxu0 %v3016
        %v4119 = vpop.f32.mrf.mxu0
        %v4120 = vadd.f32 %v4007, %v4119
        %4121 = vmatmul.f32.gmra.mxu0 %v3017
        %v4122 = vpop.f32.mrf.mxu0
        %v4123 = vadd.f32 %v4010, %v4122
        %4124 = vmatmul.f32.gmra.mxu0 %v3018
        %v4125 = vpop.f32.mrf.mxu0
        %v4126 = vadd.f32 %v4013, %v4125
        %4127 = vmatmul.f32.gmra.mxu0 %v3019
        %v4128 = vpop.f32.mrf.mxu0
        %v4129 = vadd.f32 %v4016, %v4128
        %4130 = vmatmul.f32.gmra.mxu0 %v3020
        %v4131 = vpop.f32.mrf.mxu0
        %v4132 = vadd.f32 %v4019, %v4131
        %4133 = vmatmul.f32.gmra.mxu0 %v3021
        %v4134 = vpop.f32.mrf.mxu0
        %v4135 = vadd.f32 %v4022, %v4134
        %4136 = vmatmul.f32.gmra.mxu0 %v3022
        %v4137 = vpop.f32.mrf.mxu0
        %v4138 = vadd.f32 %v4025, %v4137
        %4139 = vmatmul.f32.gmra.mxu0 %v3023
        %v4140 = vpop.f32.mrf.mxu0
        %v4141 = vadd.f32 %v4028, %v4140
        %4142 = vmatmul.f32.gmra.mxu0 %v3024
        %v4143 = vpop.f32.mrf.mxu0
        %v4144 = vadd.f32 %v4031, %v4143
        %4145 = vmatmul.f32.gmra.mxu0 %v3025
        %v4146 = vpop.f32.mrf.mxu0
        %v4147 = vadd.f32 %v4034, %v4146
        %4148 = vmatmul.f32.gmra.mxu0 %v3026
        %v4149 = vpop.f32.mrf.mxu0
        %v4150 = vadd.f32 %v4037, %v4149
        %4151 = vmatmul.f32.gmra.mxu0 %v3027
        %v4152 = vpop.f32.mrf.mxu0
        %v4153 = vadd.f32 %v4040, %v4152
        %4154 = vmatmul.f32.gmra.mxu0 %v3028
        %v4155 = vpop.f32.mrf.mxu0
        %v4156 = vadd.f32 %v4043, %v4155
        %4157 = vmatmul.f32.gmra.mxu0 %v3029
        %v4158 = vpop.f32.mrf.mxu0
        %v4159 = vadd.f32 %v4046, %v4158
        %4160 = vmatmul.f32.gmra.mxu0 %v3030
        %v4161 = vpop.f32.mrf.mxu0
        %v4162 = vadd.f32 %v4049, %v4161
        %4163 = vmatmul.f32.gmra.mxu0 %v3031
        %v4164 = vpop.f32.mrf.mxu0
        %v4165 = vadd.f32 %v4052, %v4164
        %4166 = vmatmul.f32.gmra.mxu0 %v3032
        %v4167 = vpop.f32.mrf.mxu0
        %v4168 = vadd.f32 %v4055, %v4167
        %4169 = vmatmul.f32.gmra.mxu0 %v3033
        %v4170 = vpop.f32.mrf.mxu0
        %v4171 = vadd.f32 %v4058, %v4170
        %4172 = vmatmul.f32.gmra.mxu0 %v3034
        %v4173 = vpop.f32.mrf.mxu0
        %v4174 = vadd.f32 %v4061, %v4173
        %4175 = vmatmul.f32.gmra.mxu0 %v3035
        %v4176 = vpop.f32.mrf.mxu0
        %v4177 = vadd.f32 %v4064, %v4176
        %4178 = vmatmul.f32.gmra.mxu0 %v3036
        %v4179 = vpop.f32.mrf.mxu0
        %v4180 = vadd.f32 %v4067, %v4179
        %4181 = vmatmul.f32.gmra.mxu0 %v3037
        %v4182 = vpop.f32.mrf.mxu0
        %v4183 = vadd.f32 %v4070, %v4182
        %4184 = vmatmul.f32.gmra.mxu0 %v3038
        %v4185 = vpop.f32.mrf.mxu0
        %v4186 = vadd.f32 %v4073, %v4185
        %4187 = vmatmul.f32.gmra.mxu0 %v3039
        %v4188 = vpop.f32.mrf.mxu0
        %v4189 = vadd.f32 %v4076, %v4188
        %4190 = vmatmul.f32.gmra.mxu0 %v3040
        %v4191 = vpop.f32.mrf.mxu0
        %v4192 = vadd.f32 %v4079, %v4191
        %4193 = vmatmul.f32.gmra.mxu0 %v3041
        %v4194 = vpop.f32.mrf.mxu0
        %v4195 = vadd.f32 %v4082, %v4194
        %4196 = vmatmul.f32.gmra.mxu0 %v1365
        %v4197 = vpop.f32.mrf.mxu0
        %v4198 = vadd.f32 %v4085, %v4197
        %4199 = vmatmul.f32.gmra.mxu0 %v1366
        %v4200 = vpop.f32.mrf.mxu0
        %v4201 = vadd.f32 %v4088, %v4200
        %4202 = vdwg.mxu0
        %v4203 = vld [vmem:[%s4] sm:$0x1]
        %v4204 = vperm.slane %v4203, 0
        %v4205 = vmul.f32 %v4108, %v4204
        %v4206 = vmul.f32 %v4111, %v4204
        %v4207 = vmul.f32 %v4114, %v4204
        %v4208 = vmul.f32 %v4117, %v4204
        %v4209 = vmul.f32 %v4120, %v4204
        %v4210 = vmul.f32 %v4123, %v4204
        %v4211 = vmul.f32 %v4126, %v4204
        %v4212 = vmul.f32 %v4129, %v4204
        %v4213 = vmul.f32 %v4132, %v4204
        %v4214 = vmul.f32 %v4135, %v4204
        %v4215 = vmul.f32 %v4138, %v4204
        %v4216 = vmul.f32 %v4141, %v4204
        %v4217 = vmul.f32 %v4144, %v4204
        %v4218 = vmul.f32 %v4147, %v4204
        %v4219 = vmul.f32 %v4150, %v4204
        %v4220 = vmul.f32 %v4153, %v4204
        %v4221 = vmul.f32 %v4156, %v4204
        %v4222 = vmul.f32 %v4159, %v4204
        %v4223 = vmul.f32 %v4162, %v4204
        %v4224 = vmul.f32 %v4165, %v4204
        %v4225 = vmul.f32 %v4168, %v4204
        %v4226 = vmul.f32 %v4171, %v4204
        %v4227 = vmul.f32 %v4174, %v4204
        %v4228 = vmul.f32 %v4177, %v4204
        %v4229 = vmul.f32 %v4180, %v4204
        %v4230 = vmul.f32 %v4183, %v4204
        %v4231 = vmul.f32 %v4186, %v4204
        %v4232 = vmul.f32 %v4189, %v4204
        %v4233 = vmul.f32 %v4192, %v4204
        %v4234 = vmul.f32 %v4195, %v4204
        %v4235 = vmul.f32 %v4198, %v4204
        %v4236 = vmul.f32 %v4201, %v4204
        %v4237 = vld [vmem:[%s4 + $0x1] sm:$0x1]
        %v4238 = vperm.slane %v4237, 0
        %v4239 = vadd.f32 %v4205, %v4238
        %v4240 = vadd.f32 %v4206, %v4238
        %v4241 = vadd.f32 %v4207, %v4238
        %v4242 = vadd.f32 %v4208, %v4238
        %v4243 = vadd.f32 %v4209, %v4238
        %v4244 = vadd.f32 %v4210, %v4238
        %v4245 = vadd.f32 %v4211, %v4238
        %v4246 = vadd.f32 %v4212, %v4238
        %v4247 = vadd.f32 %v4213, %v4238
        %v4248 = vadd.f32 %v4214, %v4238
        %v4249 = vadd.f32 %v4215, %v4238
        %v4250 = vadd.f32 %v4216, %v4238
        %v4251 = vadd.f32 %v4217, %v4238
        %v4252 = vadd.f32 %v4218, %v4238
        %v4253 = vadd.f32 %v4219, %v4238
        %v4254 = vadd.f32 %v4220, %v4238
        %v4255 = vadd.f32 %v4221, %v4238
        %v4256 = vadd.f32 %v4222, %v4238
        %v4257 = vadd.f32 %v4223, %v4238
        %v4258 = vadd.f32 %v4224, %v4238
        %v4259 = vadd.f32 %v4225, %v4238
        %v4260 = vadd.f32 %v4226, %v4238
        %v4261 = vadd.f32 %v4227, %v4238
        %v4262 = vadd.f32 %v4228, %v4238
        %v4263 = vadd.f32 %v4229, %v4238
        %v4264 = vadd.f32 %v4230, %v4238
        %v4265 = vadd.f32 %v4231, %v4238
        %v4266 = vadd.f32 %v4232, %v4238
        %v4267 = vadd.f32 %v4233, %v4238
        %v4268 = vadd.f32 %v4234, %v4238
        %v4269 = vadd.f32 %v4235, %v4238
        %v4270 = vadd.f32 %v4236, %v4238
        %v4271 = vmax.f32 %v4239, 0.0
        %v4272 = vmax.f32 %v4240, 0.0
        %v4273 = vmax.f32 %v4241, 0.0
        %v4274 = vmax.f32 %v4242, 0.0
        %v4275 = vmax.f32 %v4243, 0.0
        %v4276 = vmax.f32 %v4244, 0.0
        %v4277 = vmax.f32 %v4245, 0.0
        %v4278 = vmax.f32 %v4246, 0.0
        %v4279 = vmax.f32 %v4247, 0.0
        %v4280 = vmax.f32 %v4248, 0.0
        %v4281 = vmax.f32 %v4249, 0.0
        %v4282 = vmax.f32 %v4250, 0.0
        %v4283 = vmax.f32 %v4251, 0.0
        %v4284 = vmax.f32 %v4252, 0.0
        %v4285 = vmax.f32 %v4253, 0.0
        %v4286 = vmax.f32 %v4254, 0.0
        %v4287 = vmax.f32 %v4255, 0.0
        %v4288 = vmax.f32 %v4256, 0.0
        %v4289 = vmax.f32 %v4257, 0.0
        %v4290 = vmax.f32 %v4258, 0.0
        %v4291 = vmax.f32 %v4259, 0.0
        %v4292 = vmax.f32 %v4260, 0.0
        %v4293 = vmax.f32 %v4261, 0.0
        %v4294 = vmax.f32 %v4262, 0.0
        %v4295 = vmax.f32 %v4263, 0.0
        %v4296 = vmax.f32 %v4264, 0.0
        %v4297 = vmax.f32 %v4265, 0.0
        %v4298 = vmax.f32 %v4266, 0.0
        %v4299 = vmax.f32 %v4267, 0.0
        %v4300 = vmax.f32 %v4268, 0.0
        %v4301 = vmax.f32 %v4269, 0.0
        %v4302 = vmax.f32 %v4270, 0.0
        %4303 = vst [vmem:[%s292] sm:$0xff] %v4271
        %4304 = vst [vmem:[%s292 + $0x8] sm:$0xff] %v4272
        %4305 = vst [vmem:[%s292 + $0x10] sm:$0xff] %v4273
        %4306 = vst [vmem:[%s292 + $0x18] sm:$0xff] %v4274
        %4307 = vst [vmem:[%s292 + $0x20] sm:$0xff] %v4275
        %4308 = vst [vmem:[%s292 + $0x28] sm:$0xff] %v4276
        %4309 = vst [vmem:[%s292 + $0x30] sm:$0xff] %v4277
        %4310 = vst [vmem:[%s292 + $0x38] sm:$0xff] %v4278
        %4311 = vst [vmem:[%s292 + $0x40] sm:$0xff] %v4279
        %4312 = vst [vmem:[%s292 + $0x48] sm:$0xff] %v4280
        %4313 = vst [vmem:[%s292 + $0x50] sm:$0xff] %v4281
        %4314 = vst [vmem:[%s292 + $0x58] sm:$0xff] %v4282
        %4315 = vst [vmem:[%s292 + $0x60] sm:$0xff] %v4283
        %4316 = vst [vmem:[%s292 + $0x68] sm:$0xff] %v4284
        %4317 = vst [vmem:[%s292 + $0x70] sm:$0xff] %v4285
        %4318 = vst [vmem:[%s292 + $0x78] sm:$0xff] %v4286
        %4319 = vst [vmem:[%s292 + $0x80] sm:$0xff] %v4287
        %4320 = vst [vmem:[%s292 + $0x88] sm:$0xff] %v4288
        %4321 = vst [vmem:[%s292 + $0x90] sm:$0xff] %v4289
        %4322 = vst [vmem:[%s292 + $0x98] sm:$0xff] %v4290
        %4323 = vst [vmem:[%s292 + $0xa0] sm:$0xff] %v4291
        %4324 = vst [vmem:[%s292 + $0xa8] sm:$0xff] %v4292
        %4325 = vst [vmem:[%s292 + $0xb0] sm:$0xff] %v4293
        %4326 = vst [vmem:[%s292 + $0xb8] sm:$0xff] %v4294
        %4327 = vst [vmem:[%s292 + $0xc0] sm:$0xff] %v4295
        %4328 = vst [vmem:[%s292 + $0xc8] sm:$0xff] %v4296
        %4329 = vst [vmem:[%s292 + $0xd0] sm:$0xff] %v4297
        %4330 = vst [vmem:[%s292 + $0xd8] sm:$0xff] %v4298
        %4331 = vst [vmem:[%s292 + $0xe0] sm:$0xff] %v4299
        %4332 = vst [vmem:[%s292 + $0xe8] sm:$0xff] %v4300
        %4333 = vst [vmem:[%s292 + $0xf0] sm:$0xff] %v4301
        %4334 = vst [vmem:[%s292 + $0xf8] sm:$0xff] %v4302
        %s4335 = sand.u32 %s142, 1
        %s4336 = scalar_lea.sflag [#allocation4], %s4335
        %s4337 = sand.u32 %s142, 1
        %s4338 = smul.addr %s4337, 256
        %s4339 = scalar_lea.vmem [#allocation10], %s4338
        // Predicated region
        $region57: #{tpu_custom_call.1} parent=39 // pred_check
          %p4340 = pneg %p152
        $region58: #{tpu_custom_call.1} parent=39 // pred_check_branch
          %4342 = sbr.rel (%p4340) target = $region60
        $region59: #{tpu_custom_call.1} parent=39 // pred_region
          %4344 = vsyncadd %s4336, 0
          %s4345 = smul.addr %s24, 32
          %s4346 = smul.addr %s4345, 8
          %s4347 = scalar_lea.hbm %s5, %s4346
          %s4348 = sshll.u32 %s4339, 4
          %s4349 = int_to_ptr.vmem [resolvable:$true] %s4348
          %s4350 = sshll.u32 %s4347, 4
          %s4351 = int_to_ptr.hbm [resolvable:$true] %s4350
          %4356 = dma.vmem_to_hbm [thread:$0]  %s4349, 4096, %s4351, %s4336, 128, 128, 8
        $region60: #{tpu_custom_call.1} parent=39 // pred_fallthru
          _
      $region40: #{tpu_custom_call.1} parent=5 // pred_fallthru
        _
      %p4357 = scmp.le.s32.totalorder 2, %s19
      // Predicated region
      $region61: #{tpu_custom_call.1} parent=5 // pred_check
        %p4358 = pneg %p4357
      $region62: #{tpu_custom_call.1} parent=5 // pred_check_branch
        %4360 = sbr.rel (%p4358) target = $region64
      $region63: #{tpu_custom_call.1} parent=5 // pred_region
        %s4361 = ssub.s32 %s19, 2
        // Predicated region
        $region65: #{tpu_custom_call.1} parent=63 // pred_check
          %p4362 = pneg %p158
        $region66: #{tpu_custom_call.1} parent=63 // pred_check_branch
          %4364 = sbr.rel (%p4362) target = $region68
        $region67: #{tpu_custom_call.1} parent=63 // pred_region
          %s4365 = sand.u32 %s143, 1
          %s4366 = scalar_lea.sflag [#allocation4], %s4365
          %s4367 = sand.u32 %s143, 1
          %s4368 = smul.addr %s4367, 256
          %s4369 = scalar_lea.vmem [#allocation10], %s4368
          %4371 = dma.done %s4366, 4096
        $region68: #{tpu_custom_call.1} parent=63 // pred_fallthru
          _
      $region64: #{tpu_custom_call.1} parent=5 // pred_fallthru
        _
    $region6: #{tpu_custom_call.1} parent=1 // loop_footer
      %s23 = sadd.s32 1, %s19
    $region7: #{tpu_custom_call.1} parent=1 // loop_footer_branch
      %18 = sbr.rel target = $region3
    $region8: #{tpu_custom_call.1} parent=1 // loop_exit
      _
    %4372 = vsyncpa [#allocation3], 1
    %s4373 = scalar_lea.sflag [#allocation3], 1
    %4374 = vsyncpa %s4373, 1
    %4375 = vsyncpa [#allocation6], 1
    %4376 = vsyncpa [#allocation9], 1
    %4377 = vsyncpa [#allocation4], 1
    %s4378 = scalar_lea.sflag [#allocation4], 1
    %4379 = vsyncpa %s4378, 1

</llo_original>
